<compile_context>
chip_gen: v5e
topology: v5e:2x2
jax: 0.10.0
libtpu: 0.0.40
codegen_flags: <defaults>
</compile_context>

<pallas_src>
import functools

import jax
import jax.numpy as jnp
import numpy as np
from jax.experimental import pallas as pl
from jax.experimental.pallas import tpu as pltpu


def rcab_kernel(xe_ref, t1_ref, b1_ref, t2_ref, b2_ref,
                wd_ref, bd_ref, wu_ref, bu_ref,
                o_ref, h1_ref, *, H, W, C, K, res_scale):
    """One batch element per grid step.  All activations are (rows, W*C)."""
    P = K // 2
    WC = W * C
    He = H + 2 * P        # conv1 is evaluated on H+2P rows -> conv2 halo for free

    def conv_rows(read_lhs, n_rows, t_ref, b_ref):
        # SAME 3x3 conv as K accumulating lane-dense MXU dots: the kx / C_in
        # contraction is block-banded inside t_ref[ky]; the ky tap is just a
        # row offset of the LHS read.  f32 accumulation.
        acc = None
        for ky in range(K):
            lhs = read_lhs(ky, n_rows)                              # (n, WC) bf16
            d = jnp.dot(lhs, t_ref[ky], preferred_element_type=jnp.float32)
            acc = d if acc is None else acc + d
        return acc + b_ref[...]                                     # + (1, WC)

    # ---- conv1 + bias + ReLU on the extended row range ---------------------
    # (vertical zero padding was added wrapper-side, so every read here is a
    # plain row-offset load from the f32 input block)
    def read_x(ky, n):
        return xe_ref[0, ky:ky + n, :].astype(jnp.bfloat16)

    h1e = jnp.maximum(conv_rows(read_x, He, t1_ref, b1_ref), 0.0)   # (He, WC)

    # Rows of h1e outside the image must act as conv2's zero padding.
    row = jax.lax.broadcasted_iota(jnp.int32, (He, 1), 0)
    h1e = jnp.where((row >= P) & (row < P + H), h1e, 0.0)
    h1_ref[...] = h1e                                               # aligned full store

    # ---- conv2 + bias -------------------------------------------------------
    def read_h1(ky, n):
        return h1_ref[ky:ky + n, :].astype(jnp.bfloat16)

    h2 = conv_rows(read_h1, H, t2_ref, b2_ref)                      # (H, WC) f32

    # ---- channel attention on VPU/XLU/EUP -----------------------------------
    # wd_ref already folds the 1/(H*W) of the global average pool; wu/bu are
    # W-replicated wrapper-side so the gate comes out directly as (1, W*C).
    colsum = jnp.sum(h2, axis=0, keepdims=True)                     # (1, WC)
    z = jnp.maximum(
        jnp.sum(wd_ref[...] * colsum, axis=1, keepdims=True) + bd_ref[...],
        0.0)                                                        # (Cm, 1)
    gate = jax.nn.sigmoid(
        jnp.sum(wu_ref[...] * z, axis=0, keepdims=True) + bu_ref[...])  # (1, WC)

    # ---- epilogue: gated residual, lane-dense wide store --------------------
    x_res = xe_ref[0, 2 * P:2 * P + H, :]                           # (H, WC) f32
    o_ref[0] = (h2 * (gate * res_scale) + x_res).astype(o_ref.dtype)


def _row_toeplitz_weights(w_hwio, W):
    """HWIO (K, K, C, Co) conv weights -> (K, W*C, W*Co) bf16 block-banded mats.

    T[ky, wi*C + ci, wo*Co + co] = w[ky, wi - wo + P, ci, co] when that kx tap
    exists, 0 otherwise; the zero band implements SAME zero padding along W.
    """
    K, _, C, Co = w_hwio.shape
    P = K // 2
    w_np = np.asarray(w_hwio, np.float32)
    t = np.zeros((K, W * C, W * Co), np.float32)
    for ky in range(K):
        for kx in range(K):
            for wo in range(W):
                wi = wo + kx - P
                if 0 <= wi < W:
                    t[ky, wi * C:(wi + 1) * C, wo * Co:(wo + 1) * Co] = w_np[ky, kx]
    return jnp.asarray(t, jnp.bfloat16)


def rcab_forward_nhwc(x_nhwc, params, res_scale=1.0):
    """Core entry point, NHWC activations (no layout transposes inside)."""
    w1, b1, w2, b2, wd, bd, wu, bu = params
    B, H, W, C = x_nhwc.shape
    K = w1.shape[0]
    Cm = wd.shape[1]
    P = K // 2
    WC = W * C
    He = H + 2 * P

    # Lane-dense activation slab (channels merged into the lane axis) with 2P
    # zero rows top/bottom so the kernel never needs an unaligned store or an
    # explicitly padded input scratch.
    x_ext = jnp.pad(x_nhwc.reshape(B, H, WC), ((0, 0), (2 * P, 2 * P), (0, 0)))

    t1 = _row_toeplitz_weights(w1, W)              # (K, WC, WC) bf16
    t2 = _row_toeplitz_weights(w2, W)
    b1t = jnp.tile(b1.reshape(1, C), (1, W))       # (1, WC)
    b2t = jnp.tile(b2.reshape(1, C), (1, W))
    wdt = jnp.tile(wd, (W, 1)).T / float(H * W)    # (Cm, WC), mean folded in
    bdc = bd.reshape(Cm, 1)                        # (Cm, 1)
    wut = jnp.tile(wu, (1, W))                     # (Cm, WC)
    but = jnp.tile(bu.reshape(1, C), (1, W))       # (1, WC)

    kernel = functools.partial(rcab_kernel, H=H, W=W, C=C, K=K,
                               res_scale=float(res_scale))
    out_dense = pl.pallas_call(
        kernel,
        out_shape=jax.ShapeDtypeStruct((B, H, WC), x_nhwc.dtype),
        grid_spec=pltpu.PrefetchScalarGridSpec(
            num_scalar_prefetch=0,
            grid=(B,),
            in_specs=[
                pl.BlockSpec((1, H + 4 * P, WC), lambda b: (b, 0, 0)),  # x (+2P rows each side)
                pl.BlockSpec((K, WC, WC), lambda b: (0, 0, 0)),         # conv1 banded weights
                pl.BlockSpec((1, WC), lambda b: (0, 0)),                # conv1 bias (tiled)
                pl.BlockSpec((K, WC, WC), lambda b: (0, 0, 0)),         # conv2 banded weights
                pl.BlockSpec((1, WC), lambda b: (0, 0)),                # conv2 bias (tiled)
                pl.BlockSpec((Cm, WC), lambda b: (0, 0)),               # CA down (mean folded)
                pl.BlockSpec((Cm, 1), lambda b: (0, 0)),                # CA down bias
                pl.BlockSpec((Cm, WC), lambda b: (0, 0)),               # CA up (tiled)
                pl.BlockSpec((1, WC), lambda b: (0, 0)),                # CA up bias (tiled)
            ],
            out_specs=pl.BlockSpec((1, H, WC), lambda b: (b, 0, 0)),
            scratch_shapes=[pltpu.VMEM((He, WC), jnp.float32)],         # h1 (+halo rows)
        ),
        compiler_params=pltpu.CompilerParams(
            dimension_semantics=("parallel",),
            vmem_limit_bytes=32 * 1024 * 1024,
        ),
    )(x_ext, t1, b1t, t2, b2t, wdt, bdc, wut, but)
    return out_dense.reshape(B, H, W, C)


def rcab_forward(x_nchw, params, res_scale=1.0):
    """PyTorch-layout entry point: x_nchw (B, C, H, W) float32."""
    x = jnp.transpose(x_nchw, (0, 2, 3, 1))                   # NHWC
    out = rcab_forward_nhwc(x, params, res_scale)
    return jnp.transpose(out, (0, 3, 1, 2))                   # back to NCHW


def rcab_reference(x_nchw, params, res_scale=1.0):
    """Pure-JAX f32 reference for validation."""
    w1, b1, w2, b2, wd, bd, wu, bu = params
    x = jnp.transpose(x_nchw, (0, 2, 3, 1))
    dn = jax.lax.conv_dimension_numbers(x.shape, w1.shape, ('NHWC', 'HWIO', 'NHWC'))
    h1 = jax.lax.conv_general_dilated(x, w1, (1, 1), 'SAME',
                                      dimension_numbers=dn) + b1.reshape(1, 1, 1, -1)
    h1 = jnp.maximum(h1, 0.0)
    h2 = jax.lax.conv_general_dilated(h1, w2, (1, 1), 'SAME',
                                      dimension_numbers=dn) + b2.reshape(1, 1, 1, -1)
    pooled = jnp.mean(h2, axis=(1, 2), keepdims=True)
    z = jnp.maximum(jnp.einsum('bijc,cm->bijm', pooled, wd) + bd.reshape(1, 1, 1, -1), 0.0)
    y = jax.nn.sigmoid(jnp.einsum('bijm,mc->bijc', z, wu) + bu.reshape(1, 1, 1, -1))
    res = h2 * y * res_scale + x
    return jnp.transpose(res, (0, 3, 1, 2))


def init_params(key, n_feat, kernel_size, reduction):
    """Deterministic synthetic parameters (shapes match the PyTorch module)."""
    C, K, Cm = n_feat, kernel_size, n_feat // reduction
    ks = jax.random.split(key, 8)
    scale = 0.1
    w1 = scale * jax.random.normal(ks[0], (K, K, C, C), jnp.float32)   # HWIO
    b1 = scale * jax.random.normal(ks[1], (1, C), jnp.float32)
    w2 = scale * jax.random.normal(ks[2], (K, K, C, C), jnp.float32)
    b2 = scale * jax.random.normal(ks[3], (1, C), jnp.float32)
    wd = scale * jax.random.normal(ks[4], (C, Cm), jnp.float32)        # 1x1 conv down
    bd = scale * jax.random.normal(ks[5], (1, Cm), jnp.float32)
    wu = scale * jax.random.normal(ks[6], (Cm, C), jnp.float32)        # 1x1 conv up
    bu = scale * jax.random.normal(ks[7], (1, C), jnp.float32)
    return (w1, b1, w2, b2, wd, bd, wu, bu)


if __name__ == "__main__":
    # Small RCAB config: n_feat=32, kernel_size=3, reduction=4 (so C//r = 8).
    B, C, H, W = 2, 32, 16, 16
    K, reduction, res_scale = 3, 4, 1.0

    key = jax.random.PRNGKey(0)
    kx, kp = jax.random.split(key)
    x = jax.random.normal(kx, (B, C, H, W), jnp.float32)
    params = init_params(kp, C, K, reduction)

    out = rcab_forward(x, params, res_scale)
    out = jax.block_until_ready(out)

    ref = rcab_reference(x, params, res_scale)
    assert out.shape == (B, C, H, W)
    # bf16 MXU operands for the two 3x3 convs give ~1e-2 level absolute
    # deviation vs the f32 reference; accumulation and the CA layer stay f32.
    err = jnp.max(jnp.abs(out - ref))
    assert jnp.allclose(out, ref, atol=5e-2, rtol=5e-2), f"max abs err {err}"

    print("KERNEL_OK")
</pallas_src>

<mosaic_0001>
module attributes {stable_mosaic.version = 11 : i64} {
  func.func @rcab_kernel(%arg0: i32, %arg1: memref<1x20x512xf32, #tpu.memory_space<vmem>>, %arg2: memref<3x512x512xbf16, #tpu.memory_space<vmem>>, %arg3: memref<1x512xf32, #tpu.memory_space<vmem>>, %arg4: memref<3x512x512xbf16, #tpu.memory_space<vmem>>, %arg5: memref<1x512xf32, #tpu.memory_space<vmem>>, %arg6: memref<8x512xf32, #tpu.memory_space<vmem>>, %arg7: memref<8x1xf32, #tpu.memory_space<vmem>>, %arg8: memref<8x512xf32, #tpu.memory_space<vmem>>, %arg9: memref<1x512xf32, #tpu.memory_space<vmem>>, %arg10: memref<1x16x512xf32, #tpu.memory_space<vmem>>, %arg11: memref<18x512xf32, #tpu.memory_space<vmem>>) attributes {dimension_semantics = [#tpu.dimension_semantics<parallel>], iteration_bounds = array<i64: 2>, scalar_prefetch = 0 : i64, scratch_operands = 1 : i64, tpu.core_type = #tpu.core_type<tc>, window_params = [{transform_indices = @transform_0, window_bounds = array<i64: 1, 20, 512>}, {pipeline_mode = #tpu.pipeline_mode<synchronous>, transform_indices = @transform_1, window_bounds = array<i64: 3, 512, 512>}, {pipeline_mode = #tpu.pipeline_mode<synchronous>, transform_indices = @transform_2, window_bounds = array<i64: 1, 512>}, {pipeline_mode = #tpu.pipeline_mode<synchronous>, transform_indices = @transform_3, window_bounds = array<i64: 3, 512, 512>}, {pipeline_mode = #tpu.pipeline_mode<synchronous>, transform_indices = @transform_4, window_bounds = array<i64: 1, 512>}, {pipeline_mode = #tpu.pipeline_mode<synchronous>, transform_indices = @transform_5, window_bounds = array<i64: 8, 512>}, {pipeline_mode = #tpu.pipeline_mode<synchronous>, transform_indices = @transform_6, window_bounds = array<i64: 8, 1>}, {pipeline_mode = #tpu.pipeline_mode<synchronous>, transform_indices = @transform_7, window_bounds = array<i64: 8, 512>}, {pipeline_mode = #tpu.pipeline_mode<synchronous>, transform_indices = @transform_8, window_bounds = array<i64: 1, 512>}, {transform_indices = @transform_9, window_bounds = array<i64: 1, 16, 512>}]} {
    %c0 = arith.constant 0 : index
    %c0_0 = arith.constant 0 : index
    %c0_1 = arith.constant 0 : index
    %0 = vector.load %arg1[%c0, %c0_0, %c0_1] : memref<1x20x512xf32, #tpu.memory_space<vmem>>, vector<1x18x512xf32>
    %1 = vector.shape_cast %0 : vector<1x18x512xf32> to vector<18x512xf32>
    %2 = arith.truncf %1 : vector<18x512xf32> to vector<18x512xbf16>
    %c0_2 = arith.constant 0 : index
    %c0_3 = arith.constant 0 : index
    %c0_4 = arith.constant 0 : index
    %3 = vector.load %arg2[%c0_2, %c0_3, %c0_4] : memref<3x512x512xbf16, #tpu.memory_space<vmem>>, vector<1x512x512xbf16>
    %4 = vector.shape_cast %3 : vector<1x512x512xbf16> to vector<512x512xbf16>
    %cst = arith.constant dense<0.000000e+00> : vector<18x512xf32>
    %5 = tpu.matmul %2, %4, %cst {dimension_numbers = #tpu.dot_dimension_numbers<[1], [0], [0], [1], [0, 0, 1, 1], [], []>} : vector<18x512xbf16>, vector<512x512xbf16>, vector<18x512xf32> -> vector<18x512xf32>
    %c0_5 = arith.constant 0 : index
    %c1 = arith.constant 1 : index
    %c0_6 = arith.constant 0 : index
    %6 = vector.load %arg1[%c0_5, %c1, %c0_6] : memref<1x20x512xf32, #tpu.memory_space<vmem>>, vector<1x18x512xf32>
    %7 = vector.shape_cast %6 : vector<1x18x512xf32> to vector<18x512xf32>
    %8 = arith.truncf %7 : vector<18x512xf32> to vector<18x512xbf16>
    %c1_7 = arith.constant 1 : index
    %c0_8 = arith.constant 0 : index
    %c0_9 = arith.constant 0 : index
    %9 = vector.load %arg2[%c1_7, %c0_8, %c0_9] : memref<3x512x512xbf16, #tpu.memory_space<vmem>>, vector<1x512x512xbf16>
    %10 = vector.shape_cast %9 : vector<1x512x512xbf16> to vector<512x512xbf16>
    %cst_10 = arith.constant dense<0.000000e+00> : vector<18x512xf32>
    %11 = tpu.matmul %8, %10, %cst_10 {dimension_numbers = #tpu.dot_dimension_numbers<[1], [0], [0], [1], [0, 0, 1, 1], [], []>} : vector<18x512xbf16>, vector<512x512xbf16>, vector<18x512xf32> -> vector<18x512xf32>
    %12 = arith.addf %5, %11 : vector<18x512xf32>
    %c0_11 = arith.constant 0 : index
    %c2 = arith.constant 2 : index
    %c0_12 = arith.constant 0 : index
    %13 = vector.load %arg1[%c0_11, %c2, %c0_12] : memref<1x20x512xf32, #tpu.memory_space<vmem>>, vector<1x18x512xf32>
    %14 = vector.shape_cast %13 : vector<1x18x512xf32> to vector<18x512xf32>
    %15 = arith.truncf %14 : vector<18x512xf32> to vector<18x512xbf16>
    %c2_13 = arith.constant 2 : index
    %c0_14 = arith.constant 0 : index
    %c0_15 = arith.constant 0 : index
    %16 = vector.load %arg2[%c2_13, %c0_14, %c0_15] : memref<3x512x512xbf16, #tpu.memory_space<vmem>>, vector<1x512x512xbf16>
    %17 = vector.shape_cast %16 : vector<1x512x512xbf16> to vector<512x512xbf16>
    %cst_16 = arith.constant dense<0.000000e+00> : vector<18x512xf32>
    %18 = tpu.matmul %15, %17, %cst_16 {dimension_numbers = #tpu.dot_dimension_numbers<[1], [0], [0], [1], [0, 0, 1, 1], [], []>} : vector<18x512xbf16>, vector<512x512xbf16>, vector<18x512xf32> -> vector<18x512xf32>
    %19 = arith.addf %12, %18 : vector<18x512xf32>
    %c0_17 = arith.constant 0 : index
    %c0_18 = arith.constant 0 : index
    %20 = vector.load %arg3[%c0_17, %c0_18] : memref<1x512xf32, #tpu.memory_space<vmem>>, vector<1x512xf32>
    %21 = vector.broadcast %20 : vector<1x512xf32> to vector<18x512xf32>
    %22 = arith.addf %19, %21 : vector<18x512xf32>
    %cst_19 = arith.constant 0.000000e+00 : f32
    %23 = vector.broadcast %cst_19 : f32 to vector<18x512xf32>
    %24 = arith.maximumf %22, %23 : vector<18x512xf32>
    %25 = tpu.iota {dimensions = array<i32: 0>} : vector<18x1xi32>
    %c1_i32 = arith.constant 1 : i32
    %26 = vector.broadcast %c1_i32 : i32 to vector<18x1xi32>
    %27 = arith.cmpi sge, %25, %26 : vector<18x1xi32>
    %c17_i32 = arith.constant 17 : i32
    %28 = vector.broadcast %c17_i32 : i32 to vector<18x1xi32>
    %29 = arith.cmpi slt, %25, %28 : vector<18x1xi32>
    %30 = arith.andi %27, %29 : vector<18x1xi1>
    %cst_20 = arith.constant 0.000000e+00 : f32
    %31 = vector.shape_cast %30 : vector<18x1xi1> to vector<18x1xi1>
    %32 = vector.broadcast %31 : vector<18x1xi1> to vector<18x512xi1>
    %33 = vector.broadcast %cst_20 : f32 to vector<18x512xf32>
    %34 = arith.select %32, %24, %33 : vector<18x512xi1>, vector<18x512xf32>
    %c0_21 = arith.constant 0 : index
    %c0_22 = arith.constant 0 : index
    %35 = vector.load %arg11[%c0_21, %c0_22] : memref<18x512xf32, #tpu.memory_space<vmem>>, vector<18x512xf32>
    tpu.vector_store %arg11[%c0_21, %c0_22], %34 {strides = array<i32>} : memref<18x512xf32, #tpu.memory_space<vmem>>, vector<18x512xf32>,
    %c0_23 = arith.constant 0 : index
    %c0_24 = arith.constant 0 : index
    %36 = vector.load %arg11[%c0_23, %c0_24] : memref<18x512xf32, #tpu.memory_space<vmem>>, vector<16x512xf32>
    %37 = arith.truncf %36 : vector<16x512xf32> to vector<16x512xbf16>
    %c0_25 = arith.constant 0 : index
    %c0_26 = arith.constant 0 : index
    %c0_27 = arith.constant 0 : index
    %38 = vector.load %arg4[%c0_25, %c0_26, %c0_27] : memref<3x512x512xbf16, #tpu.memory_space<vmem>>, vector<1x512x512xbf16>
    %39 = vector.shape_cast %38 : vector<1x512x512xbf16> to vector<512x512xbf16>
    %cst_28 = arith.constant dense<0.000000e+00> : vector<16x512xf32>
    %40 = tpu.matmul %37, %39, %cst_28 {dimension_numbers = #tpu.dot_dimension_numbers<[1], [0], [0], [1], [0, 0, 1, 1], [], []>} : vector<16x512xbf16>, vector<512x512xbf16>, vector<16x512xf32> -> vector<16x512xf32>
    %c1_29 = arith.constant 1 : index
    %c0_30 = arith.constant 0 : index
    %41 = vector.load %arg11[%c1_29, %c0_30] : memref<18x512xf32, #tpu.memory_space<vmem>>, vector<16x512xf32>
    %42 = arith.truncf %41 : vector<16x512xf32> to vector<16x512xbf16>
    %c1_31 = arith.constant 1 : index
    %c0_32 = arith.constant 0 : index
    %c0_33 = arith.constant 0 : index
    %43 = vector.load %arg4[%c1_31, %c0_32, %c0_33] : memref<3x512x512xbf16, #tpu.memory_space<vmem>>, vector<1x512x512xbf16>
    %44 = vector.shape_cast %43 : vector<1x512x512xbf16> to vector<512x512xbf16>
    %cst_34 = arith.constant dense<0.000000e+00> : vector<16x512xf32>
    %45 = tpu.matmul %42, %44, %cst_34 {dimension_numbers = #tpu.dot_dimension_numbers<[1], [0], [0], [1], [0, 0, 1, 1], [], []>} : vector<16x512xbf16>, vector<512x512xbf16>, vector<16x512xf32> -> vector<16x512xf32>
    %46 = arith.addf %40, %45 : vector<16x512xf32>
    %c2_35 = arith.constant 2 : index
    %c0_36 = arith.constant 0 : index
    %47 = vector.load %arg11[%c2_35, %c0_36] : memref<18x512xf32, #tpu.memory_space<vmem>>, vector<16x512xf32>
    %48 = arith.truncf %47 : vector<16x512xf32> to vector<16x512xbf16>
    %c2_37 = arith.constant 2 : index
    %c0_38 = arith.constant 0 : index
    %c0_39 = arith.constant 0 : index
    %49 = vector.load %arg4[%c2_37, %c0_38, %c0_39] : memref<3x512x512xbf16, #tpu.memory_space<vmem>>, vector<1x512x512xbf16>
    %50 = vector.shape_cast %49 : vector<1x512x512xbf16> to vector<512x512xbf16>
    %cst_40 = arith.constant dense<0.000000e+00> : vector<16x512xf32>
    %51 = tpu.matmul %48, %50, %cst_40 {dimension_numbers = #tpu.dot_dimension_numbers<[1], [0], [0], [1], [0, 0, 1, 1], [], []>} : vector<16x512xbf16>, vector<512x512xbf16>, vector<16x512xf32> -> vector<16x512xf32>
    %52 = arith.addf %46, %51 : vector<16x512xf32>
    %c0_41 = arith.constant 0 : index
    %c0_42 = arith.constant 0 : index
    %53 = vector.load %arg5[%c0_41, %c0_42] : memref<1x512xf32, #tpu.memory_space<vmem>>, vector<1x512xf32>
    %54 = vector.broadcast %53 : vector<1x512xf32> to vector<16x512xf32>
    %55 = arith.addf %52, %54 : vector<16x512xf32>
    %cst_43 = arith.constant dense<0.000000e+00> : vector<512xf32>
    %56 = vector.multi_reduction <add>, %55, %cst_43 [0] : vector<16x512xf32> to vector<512xf32>
    %57 = vector.shape_cast %56 : vector<512xf32> to vector<1x512xf32>
    %c0_44 = arith.constant 0 : index
    %c0_45 = arith.constant 0 : index
    %58 = vector.load %arg6[%c0_44, %c0_45] : memref<8x512xf32, #tpu.memory_space<vmem>>, vector<8x512xf32>
    %59 = vector.broadcast %57 : vector<1x512xf32> to vector<8x512xf32>
    %60 = arith.mulf %58, %59 : vector<8x512xf32>
    %cst_46 = arith.constant dense<0.000000e+00> : vector<8xf32>
    %61 = vector.multi_reduction <add>, %60, %cst_46 [1] : vector<8x512xf32> to vector<8xf32>
    %62 = vector.shape_cast %61 : vector<8xf32> to vector<8x1xf32>
    %c0_47 = arith.constant 0 : index
    %c0_48 = arith.constant 0 : index
    %63 = vector.load %arg7[%c0_47, %c0_48] : memref<8x1xf32, #tpu.memory_space<vmem>>, vector<8x1xf32>
    %64 = arith.addf %62, %63 : vector<8x1xf32>
    %cst_49 = arith.constant 0.000000e+00 : f32
    %65 = vector.broadcast %cst_49 : f32 to vector<8x1xf32>
    %66 = arith.maximumf %64, %65 : vector<8x1xf32>
    %c0_50 = arith.constant 0 : index
    %c0_51 = arith.constant 0 : index
    %67 = vector.load %arg8[%c0_50, %c0_51] : memref<8x512xf32, #tpu.memory_space<vmem>>, vector<8x512xf32>
    %68 = vector.broadcast %66 : vector<8x1xf32> to vector<8x512xf32>
    %69 = arith.mulf %67, %68 : vector<8x512xf32>
    %cst_52 = arith.constant dense<0.000000e+00> : vector<512xf32>
    %70 = vector.multi_reduction <add>, %69, %cst_52 [0] : vector<8x512xf32> to vector<512xf32>
    %71 = vector.shape_cast %70 : vector<512xf32> to vector<1x512xf32>
    %c0_53 = arith.constant 0 : index
    %c0_54 = arith.constant 0 : index
    %72 = vector.load %arg9[%c0_53, %c0_54] : memref<1x512xf32, #tpu.memory_space<vmem>>, vector<1x512xf32>
    %73 = arith.addf %71, %72 : vector<1x512xf32>
    %74 = arith.negf %73 : vector<1x512xf32>
    %75 = math.exp %74 : vector<1x512xf32>
    %cst_55 = arith.constant 1.000000e+00 : f32
    %76 = vector.broadcast %cst_55 : f32 to vector<1x512xf32>
    %77 = arith.addf %76, %75 : vector<1x512xf32>
    %78 = arith.divf %76, %77 : vector<1x512xf32>
    %c0_56 = arith.constant 0 : index
    %c2_57 = arith.constant 2 : index
    %c0_58 = arith.constant 0 : index
    %79 = vector.load %arg1[%c0_56, %c2_57, %c0_58] : memref<1x20x512xf32, #tpu.memory_space<vmem>>, vector<1x16x512xf32>
    %80 = vector.shape_cast %79 : vector<1x16x512xf32> to vector<16x512xf32>
    %cst_59 = arith.constant 1.000000e+00 : f32
    %81 = vector.broadcast %cst_59 : f32 to vector<1x512xf32>
    %82 = arith.mulf %78, %81 : vector<1x512xf32>
    %83 = vector.broadcast %82 : vector<1x512xf32> to vector<16x512xf32>
    %84 = arith.mulf %55, %83 : vector<16x512xf32>
    %85 = arith.addf %84, %80 : vector<16x512xf32>
    %c0_60 = arith.constant 0 : index
    %c0_61 = arith.constant 0 : index
    %c0_62 = arith.constant 0 : index
    %86 = vector.load %arg10[%c0_60, %c0_61, %c0_62] : memref<1x16x512xf32, #tpu.memory_space<vmem>>, vector<1x16x512xf32>
    %87 = vector.shape_cast %86 : vector<1x16x512xf32> to vector<16x512xf32>
    %88 = vector.shape_cast %85 : vector<16x512xf32> to vector<1x16x512xf32>
    tpu.vector_store %arg10[%c0_60, %c0_61, %c0_62], %88 {strides = array<i32>} : memref<1x16x512xf32, #tpu.memory_space<vmem>>, vector<1x16x512xf32>,
    return
  }
  func.func @transform_0(%arg0: i32) -> (i32, i32, i32) {
    %c0_i32 = arith.constant 0 : i32
    %c0_i32_0 = arith.constant 0 : i32
    %c0_i32_1 = arith.constant 0 : i32
    return %arg0, %c0_i32, %c0_i32_0 : i32, i32, i32
  }
  func.func @transform_1(%arg0: i32) -> (i32, i32, i32) {
    %c0_i32 = arith.constant 0 : i32
    %c0_i32_0 = arith.constant 0 : i32
    %c0_i32_1 = arith.constant 0 : i32
    %c0_i32_2 = arith.constant 0 : i32
    return %c0_i32, %c0_i32_0, %c0_i32_1 : i32, i32, i32
  }
  func.func @transform_2(%arg0: i32) -> (i32, i32) {
    %c0_i32 = arith.constant 0 : i32
    %c0_i32_0 = arith.constant 0 : i32
    %c0_i32_1 = arith.constant 0 : i32
    return %c0_i32, %c0_i32_0 : i32, i32
  }
  func.func @transform_3(%arg0: i32) -> (i32, i32, i32) {
    %c0_i32 = arith.constant 0 : i32
    %c0_i32_0 = arith.constant 0 : i32
    %c0_i32_1 = arith.constant 0 : i32
    %c0_i32_2 = arith.constant 0 : i32
    return %c0_i32, %c0_i32_0, %c0_i32_1 : i32, i32, i32
  }
  func.func @transform_4(%arg0: i32) -> (i32, i32) {
    %c0_i32 = arith.constant 0 : i32
    %c0_i32_0 = arith.constant 0 : i32
    %c0_i32_1 = arith.constant 0 : i32
    return %c0_i32, %c0_i32_0 : i32, i32
  }
  func.func @transform_5(%arg0: i32) -> (i32, i32) {
    %c0_i32 = arith.constant 0 : i32
    %c0_i32_0 = arith.constant 0 : i32
    %c0_i32_1 = arith.constant 0 : i32
    return %c0_i32, %c0_i32_0 : i32, i32
  }
  func.func @transform_6(%arg0: i32) -> (i32, i32) {
    %c0_i32 = arith.constant 0 : i32
    %c0_i32_0 = arith.constant 0 : i32
    %c0_i32_1 = arith.constant 0 : i32
    return %c0_i32, %c0_i32_0 : i32, i32
  }
  func.func @transform_7(%arg0: i32) -> (i32, i32) {
    %c0_i32 = arith.constant 0 : i32
    %c0_i32_0 = arith.constant 0 : i32
    %c0_i32_1 = arith.constant 0 : i32
    return %c0_i32, %c0_i32_0 : i32, i32
  }
  func.func @transform_8(%arg0: i32) -> (i32, i32) {
    %c0_i32 = arith.constant 0 : i32
    %c0_i32_0 = arith.constant 0 : i32
    %c0_i32_1 = arith.constant 0 : i32
    return %c0_i32, %c0_i32_0 : i32, i32
  }
  func.func @transform_9(%arg0: i32) -> (i32, i32, i32) {
    %c0_i32 = arith.constant 0 : i32
    %c0_i32_0 = arith.constant 0 : i32
    %c0_i32_1 = arith.constant 0 : i32
    return %arg0, %c0_i32, %c0_i32_0 : i32, i32, i32
  }
}

</mosaic_0001>

<llo_original>
// kernel: tpu_custom_call.1
$region0: #{tpu_custom_call.1}
  #allocation0 [shape = 'u32[]', space=smem, size = 0x4, offset = 0x4, fixed_abs, tag = 'smem constant byte address 0x4 - core index']
  #allocation1 [shape = 'u32[72,128]{1,0:T(1,128)}', space=vmem, size = 0x9000, scoped, tag = 'internal scratch']
  #allocation2 [shape = 'f32[18,512]{1,0:T(8,128)}', space=vmem, size = 0xc000, scoped, tag = 'scratch operand']
  %s0 = inlined_call_operand.vmem [shape: f32[2,20,512], index: 0, kind: input, shape index: {}]
  %s1 = inlined_call_operand.hbm [shape: bf16[3,512,512], index: 1, kind: input, shape index: {}]
  %s2 = inlined_call_operand.hbm [shape: f32[1,512], index: 2, kind: input, shape index: {}]
  %s3 = inlined_call_operand.hbm [shape: bf16[3,512,512], index: 3, kind: input, shape index: {}]
  %s4 = inlined_call_operand.hbm [shape: f32[1,512], index: 4, kind: input, shape index: {}]
  %s5 = inlined_call_operand.hbm [shape: f32[8,512], index: 5, kind: input, shape index: {}]
  %s6 = inlined_call_operand.vmem [shape: f32[8,1], index: 6, kind: input, shape index: {}]
  %s7 = inlined_call_operand.hbm [shape: f32[8,512], index: 7, kind: input, shape index: {}]
  %s8 = inlined_call_operand.hbm [shape: f32[1,512], index: 8, kind: input, shape index: {}]
  %s9 = inlined_call_operand.hbm [shape: f32[2,16,512], index: 9, kind: output, shape index: {}]
  %s10 = sld [smem:[#allocation0]]
  $region97: #{tpu_custom_call.1} parent=0
    _
  %s12 = ssub.s32 1, %s10
  %s13 = scalar_select 0, %s12, %s10
  $region1: #{tpu_custom_call.1} parent=0
    #allocation3 [shape = 'u8[1572864]{0}', space=vmem, size = 0x180000, scoped, tag = 'input window, operand 1, single buffered']
    #allocation4 [shape = 's32[2]{0}', space=sflag, size = 0x8, scoped, tag = 'scoped memory for tpu_custom_call.1']
    #allocation5 [shape = 's32[2]{0}', space=sflag, size = 0x8, scoped, tag = 'scoped memory for tpu_custom_call.1']
    #allocation6 [shape = 'u8[2048]{0}', space=vmem, size = 0x800, scoped, tag = 'input window, operand 2, single buffered']
    #allocation7 [shape = 's32[1]{0}', space=sflag, size = 0x4, scoped, tag = 'scoped memory for tpu_custom_call.1']
    #allocation8 [shape = 'u8[1572864]{0}', space=vmem, size = 0x180000, scoped, tag = 'input window, operand 3, single buffered']
    #allocation9 [shape = 'u8[2048]{0}', space=vmem, size = 0x800, scoped, tag = 'input window, operand 4, single buffered']
    #allocation10 [shape = 's32[1]{0}', space=sflag, size = 0x4, scoped, tag = 'scoped memory for tpu_custom_call.1']
    #allocation11 [shape = 'u8[16384]{0}', space=vmem, size = 0x4000, scoped, tag = 'input window, operand 5, single buffered']
    #allocation12 [shape = 'u8[16384]{0}', space=vmem, size = 0x4000, scoped, tag = 'input window, operand 7, single buffered']
    #allocation13 [shape = 's32[1]{0}', space=sflag, size = 0x4, scoped, tag = 'scoped memory for tpu_custom_call.1']
    #allocation14 [shape = 'u8[2048]{0}', space=vmem, size = 0x800, scoped, tag = 'input window, operand 8, single buffered']
    #allocation15 [shape = 'u8[65536]{0}', space=vmem, size = 0x10000, scoped, tag = 'output window, operand 0']
    %14 = vsyncpa [#allocation4], 0
    %15 = vsyncpa [#allocation7], 0
    %16 = vsyncpa [#allocation10], 0
    %17 = vsyncpa [#allocation13], 0
    %18 = vsyncpa [#allocation5], 0
    %s19 = scalar_lea.sflag [#allocation5], 1
    %20 = vsyncpa %s19, 0
    loop: start=0, step=1, limit=4
    $region2: #{tpu_custom_call.1} parent=1 // loop_pre_header
      _
    $region3: #{tpu_custom_call.1} parent=1 // loop_header
      %s22 = sphi 0, %s26
      %p23 = scmp.ge.s32.totalorder %s22, 4
      %s32 = sphi 0, %s34
      %s35 = sphi 0, %s32
      %s36 = sphi 0, %s35
      %s52 = sphi 0, %s36
      %s56 = sphi 0, %s56
      %s58 = sphi 0, %s56
      %s59 = sphi 0, %s58
      %s73 = sphi 0, %s59
      %s77 = sphi 0, %s77
      %s79 = sphi 0, %s77
      %s80 = sphi 0, %s79
      %s94 = sphi 0, %s80
      %s98 = sphi 0, %s98
      %s100 = sphi 0, %s98
      %s101 = sphi 0, %s100
      %s115 = sphi 0, %s101
      %s119 = sphi 0, %s119
      %s121 = sphi 0, %s119
      %s122 = sphi 0, %s121
      %s136 = sphi 0, %s122
      %s140 = sphi 0, %s140
      %s142 = sphi 0, %s140
      %s143 = sphi 0, %s142
      %s157 = sphi 0, %s143
      %s161 = sphi 0, %s161
      %s163 = sphi 0, %s161
      %s164 = sphi 0, %s163
      %s178 = sphi 0, %s164
      %s182 = sphi 0, %s182
      %s184 = sphi 0, %s182
      %s185 = sphi 0, %s184
      %s199 = sphi 0, %s185
      %s203 = sphi 0, %s203
      %s205 = sphi 0, %s203
      %s206 = sphi 0, %s205
      %s220 = sphi 0, %s206
      %s226 = sphi 0, %s228
      %s229 = sphi 0, %s226
      %s230 = sphi 0, %s229
      %s246 = sphi 0, %s230
    $region4: #{tpu_custom_call.1} parent=1 // loop_header_branch
      %25 = sbr.rel (%p23) target = $region8
    $region5: #{tpu_custom_call.1} parent=1 // loop_body
      %s27 = ssub.s32 %s22, 1
      %s28 = ssub.s32 %s22, 2
      %s29 = sadd.s32 %s22, 1
      %s30 = ssub.s32 %s22, %s29
      %p31 = scmp.eq.s32.totalorder %s30, 0
      %s33 = sadd.s32 %s32, 1
      %s34 = scalar_select %p31, %s32, %s33
      %p37 = pneg %p31
      %p38 = scmp.eq.s32.totalorder %s22, 1
      %p39 = por %p37, %p38
      %p40 = scmp.ne.s32.totalorder %s32, %s35
      %p41 = scmp.eq.s32.totalorder %s22, 0
      %p42 = por %p40, %p41
      %p43 = scmp.ne.s32.totalorder %s32, %s35
      %p44 = scmp.eq.s32.totalorder %s27, 1
      %p45 = por %p43, %p44
      %p46 = scmp.ne.s32.totalorder %s35, %s36
      %p47 = scmp.eq.s32.totalorder %s27, 0
      %p48 = por %p46, %p47
      %p49 = scmp.ne.s32.totalorder %s35, %s36
      %p50 = scmp.eq.s32.totalorder %s28, 1
      %p51 = por %p49, %p50
      %p53 = scmp.ne.s32.totalorder %s36, %s52
      %p54 = scmp.eq.s32.totalorder %s28, 0
      %p55 = por %p53, %p54
      %s57 = sadd.s32 %s56, 1
      %p60 = scmp.eq.s32.totalorder %s22, 1
      %p61 = scmp.ne.s32.totalorder %s56, %s58
      %p62 = scmp.eq.s32.totalorder %s22, 0
      %p63 = por %p61, %p62
      %p64 = scmp.ne.s32.totalorder %s56, %s58
      %p65 = scmp.eq.s32.totalorder %s27, 1
      %p66 = por %p64, %p65
      %p67 = scmp.ne.s32.totalorder %s58, %s59
      %p68 = scmp.eq.s32.totalorder %s27, 0
      %p69 = por %p67, %p68
      %p70 = scmp.ne.s32.totalorder %s58, %s59
      %p71 = scmp.eq.s32.totalorder %s28, 1
      %p72 = por %p70, %p71
      %p74 = scmp.ne.s32.totalorder %s59, %s73
      %p75 = scmp.eq.s32.totalorder %s28, 0
      %p76 = por %p74, %p75
      %s78 = sadd.s32 %s77, 1
      %p81 = scmp.eq.s32.totalorder %s22, 1
      %p82 = scmp.ne.s32.totalorder %s77, %s79
      %p83 = scmp.eq.s32.totalorder %s22, 0
      %p84 = por %p82, %p83
      %p85 = scmp.ne.s32.totalorder %s77, %s79
      %p86 = scmp.eq.s32.totalorder %s27, 1
      %p87 = por %p85, %p86
      %p88 = scmp.ne.s32.totalorder %s79, %s80
      %p89 = scmp.eq.s32.totalorder %s27, 0
      %p90 = por %p88, %p89
      %p91 = scmp.ne.s32.totalorder %s79, %s80
      %p92 = scmp.eq.s32.totalorder %s28, 1
      %p93 = por %p91, %p92
      %p95 = scmp.ne.s32.totalorder %s80, %s94
      %p96 = scmp.eq.s32.totalorder %s28, 0
      %p97 = por %p95, %p96
      %s99 = sadd.s32 %s98, 1
      %p102 = scmp.eq.s32.totalorder %s22, 1
      %p103 = scmp.ne.s32.totalorder %s98, %s100
      %p104 = scmp.eq.s32.totalorder %s22, 0
      %p105 = por %p103, %p104
      %p106 = scmp.ne.s32.totalorder %s98, %s100
      %p107 = scmp.eq.s32.totalorder %s27, 1
      %p108 = por %p106, %p107
      %p109 = scmp.ne.s32.totalorder %s100, %s101
      %p110 = scmp.eq.s32.totalorder %s27, 0
      %p111 = por %p109, %p110
      %p112 = scmp.ne.s32.totalorder %s100, %s101
      %p113 = scmp.eq.s32.totalorder %s28, 1
      %p114 = por %p112, %p113
      %p116 = scmp.ne.s32.totalorder %s101, %s115
      %p117 = scmp.eq.s32.totalorder %s28, 0
      %p118 = por %p116, %p117
      %s120 = sadd.s32 %s119, 1
      %p123 = scmp.eq.s32.totalorder %s22, 1
      %p124 = scmp.ne.s32.totalorder %s119, %s121
      %p125 = scmp.eq.s32.totalorder %s22, 0
      %p126 = por %p124, %p125
      %p127 = scmp.ne.s32.totalorder %s119, %s121
      %p128 = scmp.eq.s32.totalorder %s27, 1
      %p129 = por %p127, %p128
      %p130 = scmp.ne.s32.totalorder %s121, %s122
      %p131 = scmp.eq.s32.totalorder %s27, 0
      %p132 = por %p130, %p131
      %p133 = scmp.ne.s32.totalorder %s121, %s122
      %p134 = scmp.eq.s32.totalorder %s28, 1
      %p135 = por %p133, %p134
      %p137 = scmp.ne.s32.totalorder %s122, %s136
      %p138 = scmp.eq.s32.totalorder %s28, 0
      %p139 = por %p137, %p138
      %s141 = sadd.s32 %s140, 1
      %p144 = scmp.eq.s32.totalorder %s22, 1
      %p145 = scmp.ne.s32.totalorder %s140, %s142
      %p146 = scmp.eq.s32.totalorder %s22, 0
      %p147 = por %p145, %p146
      %p148 = scmp.ne.s32.totalorder %s140, %s142
      %p149 = scmp.eq.s32.totalorder %s27, 1
      %p150 = por %p148, %p149
      %p151 = scmp.ne.s32.totalorder %s142, %s143
      %p152 = scmp.eq.s32.totalorder %s27, 0
      %p153 = por %p151, %p152
      %p154 = scmp.ne.s32.totalorder %s142, %s143
      %p155 = scmp.eq.s32.totalorder %s28, 1
      %p156 = por %p154, %p155
      %p158 = scmp.ne.s32.totalorder %s143, %s157
      %p159 = scmp.eq.s32.totalorder %s28, 0
      %p160 = por %p158, %p159
      %s162 = sadd.s32 %s161, 1
      %p165 = scmp.eq.s32.totalorder %s22, 1
      %p166 = scmp.ne.s32.totalorder %s161, %s163
      %p167 = scmp.eq.s32.totalorder %s22, 0
      %p168 = por %p166, %p167
      %p169 = scmp.ne.s32.totalorder %s161, %s163
      %p170 = scmp.eq.s32.totalorder %s27, 1
      %p171 = por %p169, %p170
      %p172 = scmp.ne.s32.totalorder %s163, %s164
      %p173 = scmp.eq.s32.totalorder %s27, 0
      %p174 = por %p172, %p173
      %p175 = scmp.ne.s32.totalorder %s163, %s164
      %p176 = scmp.eq.s32.totalorder %s28, 1
      %p177 = por %p175, %p176
      %p179 = scmp.ne.s32.totalorder %s164, %s178
      %p180 = scmp.eq.s32.totalorder %s28, 0
      %p181 = por %p179, %p180
      %s183 = sadd.s32 %s182, 1
      %p186 = scmp.eq.s32.totalorder %s22, 1
      %p187 = scmp.ne.s32.totalorder %s182, %s184
      %p188 = scmp.eq.s32.totalorder %s22, 0
      %p189 = por %p187, %p188
      %p190 = scmp.ne.s32.totalorder %s182, %s184
      %p191 = scmp.eq.s32.totalorder %s27, 1
      %p192 = por %p190, %p191
      %p193 = scmp.ne.s32.totalorder %s184, %s185
      %p194 = scmp.eq.s32.totalorder %s27, 0
      %p195 = por %p193, %p194
      %p196 = scmp.ne.s32.totalorder %s184, %s185
      %p197 = scmp.eq.s32.totalorder %s28, 1
      %p198 = por %p196, %p197
      %p200 = scmp.ne.s32.totalorder %s185, %s199
      %p201 = scmp.eq.s32.totalorder %s28, 0
      %p202 = por %p200, %p201
      %s204 = sadd.s32 %s203, 1
      %p207 = scmp.eq.s32.totalorder %s22, 1
      %p208 = scmp.ne.s32.totalorder %s203, %s205
      %p209 = scmp.eq.s32.totalorder %s22, 0
      %p210 = por %p208, %p209
      %p211 = scmp.ne.s32.totalorder %s203, %s205
      %p212 = scmp.eq.s32.totalorder %s27, 1
      %p213 = por %p211, %p212
      %p214 = scmp.ne.s32.totalorder %s205, %s206
      %p215 = scmp.eq.s32.totalorder %s27, 0
      %p216 = por %p214, %p215
      %p217 = scmp.ne.s32.totalorder %s205, %s206
      %p218 = scmp.eq.s32.totalorder %s28, 1
      %p219 = por %p217, %p218
      %p221 = scmp.ne.s32.totalorder %s206, %s220
      %p222 = scmp.eq.s32.totalorder %s28, 0
      %p223 = por %p221, %p222
      %s224 = ssub.s32 %s22, %s29
      %p225 = scmp.eq.s32.totalorder %s224, 0
      %s227 = sadd.s32 %s226, 1
      %s228 = scalar_select %p225, %s226, %s227
      %p231 = pneg %p225
      %p232 = scmp.eq.s32.totalorder %s22, 1
      %p233 = por %p231, %p232
      %p234 = scmp.ne.s32.totalorder %s226, %s229
      %p235 = scmp.eq.s32.totalorder %s22, 0
      %p236 = por %p234, %p235
      %p237 = scmp.ne.s32.totalorder %s226, %s229
      %p238 = scmp.eq.s32.totalorder %s27, 1
      %p239 = por %p237, %p238
      %p240 = scmp.ne.s32.totalorder %s229, %s230
      %p241 = scmp.eq.s32.totalorder %s27, 0
      %p242 = por %p240, %p241
      %p243 = scmp.ne.s32.totalorder %s229, %s230
      %p244 = scmp.eq.s32.totalorder %s28, 1
      %p245 = por %p243, %p244
      %p247 = scmp.ne.s32.totalorder %s230, %s246
      %p248 = scmp.eq.s32.totalorder %s28, 0
      %p249 = por %p247, %p248
      %p250 = scmp.le.s32.totalorder 1, %s22
      %p251 = scmp.lt.s32.totalorder %s22, 3
      %p252 = pnand %p250, %p251
      %p253 = pneg %p252
      // Predicated region
      $region9: #{tpu_custom_call.1} parent=5 // pred_check
        _
      $region10: #{tpu_custom_call.1} parent=5 // pred_check_branch
        %255 = sbr.rel (%p252) target = $region12
      $region11: #{tpu_custom_call.1} parent=5 // pred_region
        %s256 = ssub.s32 %s22, 1
        // Predicated region
        $region13: #{tpu_custom_call.1} parent=11 // pred_check
          %p257 = pneg %p69
        $region14: #{tpu_custom_call.1} parent=11 // pred_check_branch
          %259 = sbr.rel (%p257) target = $region16
        $region15: #{tpu_custom_call.1} parent=11 // pred_region
          %261 = vsyncadd [#allocation4], 0
          %s262 = sshll.u32 %s1, 4
          %s263 = int_to_ptr.hbm [resolvable:$true] %s262
          %s264 = sshll.u32 [#allocation3], 4
          %s265 = int_to_ptr.vmem [resolvable:$true] %s264
          %270 = dma.hbm_to_vmem [thread:$0]  %s263, 49152, %s265, [#allocation4], 256, 256, 16
        $region16: #{tpu_custom_call.1} parent=11 // pred_fallthru
          _
        // Predicated region
        $region17: #{tpu_custom_call.1} parent=11 // pred_check
          %p271 = pneg %p90
        $region18: #{tpu_custom_call.1} parent=11 // pred_check_branch
          %273 = sbr.rel (%p271) target = $region20
        $region19: #{tpu_custom_call.1} parent=11 // pred_region
          %275 = vsyncadd [#allocation7], 0
          %s277 = sshll.u32 %s2, 4
          %s278 = int_to_ptr.hbm [resolvable:$true] %s277
          %s279 = sshll.u32 [#allocation6], 4
          %s280 = int_to_ptr.vmem [resolvable:$true] %s279
          %282 = dma.hbm_to_vmem [thread:$0]  %s278, 64, %s280, [#allocation7]
        $region20: #{tpu_custom_call.1} parent=11 // pred_fallthru
          _
        // Predicated region
        $region21: #{tpu_custom_call.1} parent=11 // pred_check
          %p283 = pneg %p111
        $region22: #{tpu_custom_call.1} parent=11 // pred_check_branch
          %285 = sbr.rel (%p283) target = $region24
        $region23: #{tpu_custom_call.1} parent=11 // pred_region
          %287 = vsyncadd [#allocation7], 0
          %s288 = sshll.u32 %s3, 4
          %s289 = int_to_ptr.hbm [resolvable:$true] %s288
          %s290 = sshll.u32 [#allocation8], 4
          %s291 = int_to_ptr.vmem [resolvable:$true] %s290
          %296 = dma.hbm_to_vmem [thread:$0]  %s289, 49152, %s291, [#allocation7], 256, 256, 16
        $region24: #{tpu_custom_call.1} parent=11 // pred_fallthru
          _
        // Predicated region
        $region25: #{tpu_custom_call.1} parent=11 // pred_check
          %p297 = pneg %p132
        $region26: #{tpu_custom_call.1} parent=11 // pred_check_branch
          %299 = sbr.rel (%p297) target = $region28
        $region27: #{tpu_custom_call.1} parent=11 // pred_region
          %301 = vsyncadd [#allocation10], 0
          %s303 = sshll.u32 %s4, 4
          %s304 = int_to_ptr.hbm [resolvable:$true] %s303
          %s305 = sshll.u32 [#allocation9], 4
          %s306 = int_to_ptr.vmem [resolvable:$true] %s305
          %308 = dma.hbm_to_vmem [thread:$0]  %s304, 64, %s306, [#allocation10]
        $region28: #{tpu_custom_call.1} parent=11 // pred_fallthru
          _
        // Predicated region
        $region29: #{tpu_custom_call.1} parent=11 // pred_check
          %p309 = pneg %p153
        $region30: #{tpu_custom_call.1} parent=11 // pred_check_branch
          %311 = sbr.rel (%p309) target = $region32
        $region31: #{tpu_custom_call.1} parent=11 // pred_region
          %313 = vsyncadd [#allocation10], 0
          %s315 = sshll.u32 %s5, 4
          %s316 = int_to_ptr.hbm [resolvable:$true] %s315
          %s317 = sshll.u32 [#allocation11], 4
          %s318 = int_to_ptr.vmem [resolvable:$true] %s317
          %320 = dma.hbm_to_vmem [thread:$0]  %s316, 512, %s318, [#allocation10]
        $region32: #{tpu_custom_call.1} parent=11 // pred_fallthru
          _
        // Predicated region
        $region33: #{tpu_custom_call.1} parent=11 // pred_check
          %p321 = pneg %p174
        $region34: #{tpu_custom_call.1} parent=11 // pred_check_branch
          %323 = sbr.rel (%p321) target = $region36
        $region35: #{tpu_custom_call.1} parent=11 // pred_region
          _
        $region36: #{tpu_custom_call.1} parent=11 // pred_fallthru
          _
        // Predicated region
        $region37: #{tpu_custom_call.1} parent=11 // pred_check
          %p324 = pneg %p195
        $region38: #{tpu_custom_call.1} parent=11 // pred_check_branch
          %326 = sbr.rel (%p324) target = $region40
        $region39: #{tpu_custom_call.1} parent=11 // pred_region
          %328 = vsyncadd [#allocation13], 0
          %s330 = sshll.u32 %s7, 4
          %s331 = int_to_ptr.hbm [resolvable:$true] %s330
          %s332 = sshll.u32 [#allocation12], 4
          %s333 = int_to_ptr.vmem [resolvable:$true] %s332
          %335 = dma.hbm_to_vmem [thread:$0]  %s331, 512, %s333, [#allocation13]
        $region40: #{tpu_custom_call.1} parent=11 // pred_fallthru
          _
        // Predicated region
        $region41: #{tpu_custom_call.1} parent=11 // pred_check
          %p336 = pneg %p216
        $region42: #{tpu_custom_call.1} parent=11 // pred_check_branch
          %338 = sbr.rel (%p336) target = $region44
        $region43: #{tpu_custom_call.1} parent=11 // pred_region
          %340 = vsyncadd [#allocation13], 0
          %s342 = sshll.u32 %s8, 4
          %s343 = int_to_ptr.hbm [resolvable:$true] %s342
          %s344 = sshll.u32 [#allocation14], 4
          %s345 = int_to_ptr.vmem [resolvable:$true] %s344
          %347 = dma.hbm_to_vmem [thread:$0]  %s343, 64, %s345, [#allocation13]
        $region44: #{tpu_custom_call.1} parent=11 // pred_fallthru
          _
      $region12: #{tpu_custom_call.1} parent=5 // pred_fallthru
        _
      %p348 = scmp.lt.s32.totalorder %s22, 2
      // Predicated region
      $region45: #{tpu_custom_call.1} parent=5 // pred_check
        %p349 = pneg %p348
      $region46: #{tpu_custom_call.1} parent=5 // pred_check_branch
        %351 = sbr.rel (%p349) target = $region48
      $region47: #{tpu_custom_call.1} parent=5 // pred_region
        // Predicated region
        $region49: #{tpu_custom_call.1} parent=47 // pred_check
          %p352 = pneg %p42
        $region50: #{tpu_custom_call.1} parent=47 // pred_check_branch
          %354 = sbr.rel (%p352) target = $region52
        $region51: #{tpu_custom_call.1} parent=47 // pred_region
          %p355 = scmp.lt.s32.totalorder %s22, 1
          %s356 = scalar_select %p355, %s22, 1
          %s357 = smul.addr %s356, 12
          %s358 = smul.addr %s357, 8
          %s359 = scalar_lea.vmem %s0, %s358
        $region52: #{tpu_custom_call.1} parent=47 // pred_fallthru
          _
      $region48: #{tpu_custom_call.1} parent=5 // pred_fallthru
        _
      %p360 = scmp.le.s32.totalorder 1, %s22
      %p361 = scmp.lt.s32.totalorder %s22, 3
      %p362 = pnand %p360, %p361
      %p363 = pneg %p362
      // Predicated region
      $region53: #{tpu_custom_call.1} parent=5 // pred_check
        _
      $region54: #{tpu_custom_call.1} parent=5 // pred_check_branch
        %365 = sbr.rel (%p362) target = $region56
      $region55: #{tpu_custom_call.1} parent=5 // pred_region
        %s366 = ssub.s32 %s22, 1
        // Predicated region
        $region57: #{tpu_custom_call.1} parent=55 // pred_check
          %p367 = pneg %p69
        $region58: #{tpu_custom_call.1} parent=55 // pred_check_branch
          %369 = sbr.rel (%p367) target = $region60
        $region59: #{tpu_custom_call.1} parent=55 // pred_region
          %371 = dma.done [#allocation4], 49152
        $region60: #{tpu_custom_call.1} parent=55 // pred_fallthru
          _
        // Predicated region
        $region61: #{tpu_custom_call.1} parent=55 // pred_check
          %p372 = pneg %p90
        $region62: #{tpu_custom_call.1} parent=55 // pred_check_branch
          %374 = sbr.rel (%p372) target = $region64
        $region63: #{tpu_custom_call.1} parent=55 // pred_region
          %376 = dma.done [#allocation7], 64
        $region64: #{tpu_custom_call.1} parent=55 // pred_fallthru
          _
        // Predicated region
        $region65: #{tpu_custom_call.1} parent=55 // pred_check
          %p377 = pneg %p111
        $region66: #{tpu_custom_call.1} parent=55 // pred_check_branch
          %379 = sbr.rel (%p377) target = $region68
        $region67: #{tpu_custom_call.1} parent=55 // pred_region
          %381 = dma.done [#allocation7], 49152
        $region68: #{tpu_custom_call.1} parent=55 // pred_fallthru
          _
        // Predicated region
        $region69: #{tpu_custom_call.1} parent=55 // pred_check
          %p382 = pneg %p132
        $region70: #{tpu_custom_call.1} parent=55 // pred_check_branch
          %384 = sbr.rel (%p382) target = $region72
        $region71: #{tpu_custom_call.1} parent=55 // pred_region
          %386 = dma.done [#allocation10], 64
        $region72: #{tpu_custom_call.1} parent=55 // pred_fallthru
          _
        // Predicated region
        $region73: #{tpu_custom_call.1} parent=55 // pred_check
          %p387 = pneg %p153
        $region74: #{tpu_custom_call.1} parent=55 // pred_check_branch
          %389 = sbr.rel (%p387) target = $region76
        $region75: #{tpu_custom_call.1} parent=55 // pred_region
          %391 = dma.done [#allocation10], 512
        $region76: #{tpu_custom_call.1} parent=55 // pred_fallthru
          _
        // Predicated region
        $region77: #{tpu_custom_call.1} parent=55 // pred_check
          %p392 = pneg %p195
        $region78: #{tpu_custom_call.1} parent=55 // pred_check_branch
          %394 = sbr.rel (%p392) target = $region80
        $region79: #{tpu_custom_call.1} parent=55 // pred_region
          %396 = dma.done [#allocation13], 512
        $region80: #{tpu_custom_call.1} parent=55 // pred_fallthru
          _
        // Predicated region
        $region81: #{tpu_custom_call.1} parent=55 // pred_check
          %p397 = pneg %p216
        $region82: #{tpu_custom_call.1} parent=55 // pred_check_branch
          %399 = sbr.rel (%p397) target = $region84
        $region83: #{tpu_custom_call.1} parent=55 // pred_region
          %401 = dma.done [#allocation13], 64
        $region84: #{tpu_custom_call.1} parent=55 // pred_fallthru
          _
        %p402 = scmp.lt.s32.totalorder %s27, 1
        %s403 = scalar_select %p402, %s27, 1
        %s404 = smul.addr %s403, 12
        %s405 = smul.addr %s404, 8
        %s406 = scalar_lea.vmem %s0, %s405
        %p407 = pneg %p48
        %p408 = pneg %p45
        %p409 = pneg %p69
        %p410 = pneg %p66
        %p411 = pneg %p90
        %p412 = pneg %p87
        %p413 = pneg %p111
        %p414 = pneg %p108
        %p415 = pneg %p132
        %p416 = pneg %p129
        %p417 = pneg %p153
        %p418 = pneg %p150
        %p419 = pneg %p174
        %p420 = pneg %p171
        %p421 = pneg %p195
        %p422 = pneg %p192
        %p423 = pneg %p216
        %p424 = pneg %p213
        %p425 = pneg %p242
        %p426 = pneg %p239
        %s427 = sand.u32 %s229, 1
        %s428 = scalar_lea.sflag [#allocation5], %s427
        %s429 = sand.u32 %s229, 1
        %s430 = smul.addr %s429, 64
        %s431 = scalar_lea.vmem [#allocation15], %s430
        %p432 = scmp.lt.s32.totalorder %s27, 1
        %s433 = scalar_select %p432, %s27, 1
        %s434 = smul.addr %s433, 12
        %s435 = smul.addr %s434, 8
        %s436 = scalar_lea.vmem %s0, %s435
        %v437 = vld [vmem:[%s436] sm:$0xff]
        %v438 = vld [vmem:[%s436 + $0x8] sm:$0xff]
        %v439 = vld [vmem:[%s436 + $0x10] sm:$0xff]
        %v440 = vld [vmem:[%s436 + $0x18] sm:$0xff]
        %v441 = vld [vmem:[%s436 + $0x20] sm:$0xff]
        %v442 = vld [vmem:[%s436 + $0x28] sm:$0xff]
        %v443 = vld [vmem:[%s436 + $0x30] sm:$0xff]
        %v444 = vld [vmem:[%s436 + $0x38] sm:$0xff]
        %v445 = vld [vmem:[%s436 + $0x40] sm:$0x3]
        %v446 = vld [vmem:[%s436 + $0x48] sm:$0x3]
        %v447 = vld [vmem:[%s436 + $0x50] sm:$0x3]
        %v448 = vld [vmem:[%s436 + $0x58] sm:$0x3]
        %v449 = vpack.c.bf16 %v441, %v437
        %v450 = vpack.c.bf16 %v442, %v438
        %v451 = vpack.c.bf16 %v443, %v439
        %v452 = vpack.c.bf16 %v444, %v440
        %v453 = vpack.c.bf16 %v445, %v445
        %v454 = vpack.c.bf16 %v446, %v446
        %v455 = vpack.c.bf16 %v447, %v447
        %v456 = vpack.c.bf16 %v448, %v448
        %v457 = vld [vmem:[#allocation3] sm:$0xff]
        %v458 = vld [vmem:[#allocation3 + $0x8] sm:$0xff]
        %v459 = vld [vmem:[#allocation3 + $0x10] sm:$0xff]
        %v460 = vld [vmem:[#allocation3 + $0x18] sm:$0xff]
        %v461 = vld [vmem:[#allocation3 + $0x20] sm:$0xff]
        %v462 = vld [vmem:[#allocation3 + $0x28] sm:$0xff]
        %v463 = vld [vmem:[#allocation3 + $0x30] sm:$0xff]
        %v464 = vld [vmem:[#allocation3 + $0x38] sm:$0xff]
        %v465 = vld [vmem:[#allocation3 + $0x40] sm:$0xff]
        %v466 = vld [vmem:[#allocation3 + $0x48] sm:$0xff]
        %v467 = vld [vmem:[#allocation3 + $0x50] sm:$0xff]
        %v468 = vld [vmem:[#allocation3 + $0x58] sm:$0xff]
        %v469 = vld [vmem:[#allocation3 + $0x60] sm:$0xff]
        %v470 = vld [vmem:[#allocation3 + $0x68] sm:$0xff]
        %v471 = vld [vmem:[#allocation3 + $0x70] sm:$0xff]
        %v472 = vld [vmem:[#allocation3 + $0x78] sm:$0xff]
        %v473 = vld [vmem:[#allocation3 + $0x80] sm:$0xff]
        %v474 = vld [vmem:[#allocation3 + $0x88] sm:$0xff]
        %v475 = vld [vmem:[#allocation3 + $0x90] sm:$0xff]
        %v476 = vld [vmem:[#allocation3 + $0x98] sm:$0xff]
        %v477 = vld [vmem:[#allocation3 + $0xa0] sm:$0xff]
        %v478 = vld [vmem:[#allocation3 + $0xa8] sm:$0xff]
        %v479 = vld [vmem:[#allocation3 + $0xb0] sm:$0xff]
        %v480 = vld [vmem:[#allocation3 + $0xb8] sm:$0xff]
        %v481 = vld [vmem:[#allocation3 + $0xc0] sm:$0xff]
        %v482 = vld [vmem:[#allocation3 + $0xc8] sm:$0xff]
        %v483 = vld [vmem:[#allocation3 + $0xd0] sm:$0xff]
        %v484 = vld [vmem:[#allocation3 + $0xd8] sm:$0xff]
        %v485 = vld [vmem:[#allocation3 + $0xe0] sm:$0xff]
        %v486 = vld [vmem:[#allocation3 + $0xe8] sm:$0xff]
        %v487 = vld [vmem:[#allocation3 + $0xf0] sm:$0xff]
        %v488 = vld [vmem:[#allocation3 + $0xf8] sm:$0xff]
        %v489 = vld [vmem:[#allocation3 + $0x100] sm:$0xff]
        %v490 = vld [vmem:[#allocation3 + $0x108] sm:$0xff]
        %v491 = vld [vmem:[#allocation3 + $0x110] sm:$0xff]
        %v492 = vld [vmem:[#allocation3 + $0x118] sm:$0xff]
        %v493 = vld [vmem:[#allocation3 + $0x120] sm:$0xff]
        %v494 = vld [vmem:[#allocation3 + $0x128] sm:$0xff]
        %v495 = vld [vmem:[#allocation3 + $0x130] sm:$0xff]
        %v496 = vld [vmem:[#allocation3 + $0x138] sm:$0xff]
        %v497 = vld [vmem:[#allocation3 + $0x140] sm:$0xff]
        %v498 = vld [vmem:[#allocation3 + $0x148] sm:$0xff]
        %v499 = vld [vmem:[#allocation3 + $0x150] sm:$0xff]
        %v500 = vld [vmem:[#allocation3 + $0x158] sm:$0xff]
        %v501 = vld [vmem:[#allocation3 + $0x160] sm:$0xff]
        %v502 = vld [vmem:[#allocation3 + $0x168] sm:$0xff]
        %v503 = vld [vmem:[#allocation3 + $0x170] sm:$0xff]
        %v504 = vld [vmem:[#allocation3 + $0x178] sm:$0xff]
        %v505 = vld [vmem:[#allocation3 + $0x180] sm:$0xff]
        %v506 = vld [vmem:[#allocation3 + $0x188] sm:$0xff]
        %v507 = vld [vmem:[#allocation3 + $0x190] sm:$0xff]
        %v508 = vld [vmem:[#allocation3 + $0x198] sm:$0xff]
        %v509 = vld [vmem:[#allocation3 + $0x1a0] sm:$0xff]
        %v510 = vld [vmem:[#allocation3 + $0x1a8] sm:$0xff]
        %v511 = vld [vmem:[#allocation3 + $0x1b0] sm:$0xff]
        %v512 = vld [vmem:[#allocation3 + $0x1b8] sm:$0xff]
        %v513 = vld [vmem:[#allocation3 + $0x1c0] sm:$0xff]
        %v514 = vld [vmem:[#allocation3 + $0x1c8] sm:$0xff]
        %v515 = vld [vmem:[#allocation3 + $0x1d0] sm:$0xff]
        %v516 = vld [vmem:[#allocation3 + $0x1d8] sm:$0xff]
        %v517 = vld [vmem:[#allocation3 + $0x1e0] sm:$0xff]
        %v518 = vld [vmem:[#allocation3 + $0x1e8] sm:$0xff]
        %v519 = vld [vmem:[#allocation3 + $0x1f0] sm:$0xff]
        %v520 = vld [vmem:[#allocation3 + $0x1f8] sm:$0xff]
        %v521 = vld [vmem:[#allocation3 + $0x200] sm:$0xff]
        %v522 = vld [vmem:[#allocation3 + $0x208] sm:$0xff]
        %v523 = vld [vmem:[#allocation3 + $0x210] sm:$0xff]
        %v524 = vld [vmem:[#allocation3 + $0x218] sm:$0xff]
        %v525 = vld [vmem:[#allocation3 + $0x220] sm:$0xff]
        %v526 = vld [vmem:[#allocation3 + $0x228] sm:$0xff]
        %v527 = vld [vmem:[#allocation3 + $0x230] sm:$0xff]
        %v528 = vld [vmem:[#allocation3 + $0x238] sm:$0xff]
        %v529 = vld [vmem:[#allocation3 + $0x240] sm:$0xff]
        %v530 = vld [vmem:[#allocation3 + $0x248] sm:$0xff]
        %v531 = vld [vmem:[#allocation3 + $0x250] sm:$0xff]
        %v532 = vld [vmem:[#allocation3 + $0x258] sm:$0xff]
        %v533 = vld [vmem:[#allocation3 + $0x260] sm:$0xff]
        %v534 = vld [vmem:[#allocation3 + $0x268] sm:$0xff]
        %v535 = vld [vmem:[#allocation3 + $0x270] sm:$0xff]
        %v536 = vld [vmem:[#allocation3 + $0x278] sm:$0xff]
        %v537 = vld [vmem:[#allocation3 + $0x280] sm:$0xff]
        %v538 = vld [vmem:[#allocation3 + $0x288] sm:$0xff]
        %v539 = vld [vmem:[#allocation3 + $0x290] sm:$0xff]
        %v540 = vld [vmem:[#allocation3 + $0x298] sm:$0xff]
        %v541 = vld [vmem:[#allocation3 + $0x2a0] sm:$0xff]
        %v542 = vld [vmem:[#allocation3 + $0x2a8] sm:$0xff]
        %v543 = vld [vmem:[#allocation3 + $0x2b0] sm:$0xff]
        %v544 = vld [vmem:[#allocation3 + $0x2b8] sm:$0xff]
        %v545 = vld [vmem:[#allocation3 + $0x2c0] sm:$0xff]
        %v546 = vld [vmem:[#allocation3 + $0x2c8] sm:$0xff]
        %v547 = vld [vmem:[#allocation3 + $0x2d0] sm:$0xff]
        %v548 = vld [vmem:[#allocation3 + $0x2d8] sm:$0xff]
        %v549 = vld [vmem:[#allocation3 + $0x2e0] sm:$0xff]
        %v550 = vld [vmem:[#allocation3 + $0x2e8] sm:$0xff]
        %v551 = vld [vmem:[#allocation3 + $0x2f0] sm:$0xff]
        %v552 = vld [vmem:[#allocation3 + $0x2f8] sm:$0xff]
        %v553 = vld [vmem:[#allocation3 + $0x300] sm:$0xff]
        %v554 = vld [vmem:[#allocation3 + $0x308] sm:$0xff]
        %v555 = vld [vmem:[#allocation3 + $0x310] sm:$0xff]
        %v556 = vld [vmem:[#allocation3 + $0x318] sm:$0xff]
        %v557 = vld [vmem:[#allocation3 + $0x320] sm:$0xff]
        %v558 = vld [vmem:[#allocation3 + $0x328] sm:$0xff]
        %v559 = vld [vmem:[#allocation3 + $0x330] sm:$0xff]
        %v560 = vld [vmem:[#allocation3 + $0x338] sm:$0xff]
        %v561 = vld [vmem:[#allocation3 + $0x340] sm:$0xff]
        %v562 = vld [vmem:[#allocation3 + $0x348] sm:$0xff]
        %v563 = vld [vmem:[#allocation3 + $0x350] sm:$0xff]
        %v564 = vld [vmem:[#allocation3 + $0x358] sm:$0xff]
        %v565 = vld [vmem:[#allocation3 + $0x360] sm:$0xff]
        %v566 = vld [vmem:[#allocation3 + $0x368] sm:$0xff]
        %v567 = vld [vmem:[#allocation3 + $0x370] sm:$0xff]
        %v568 = vld [vmem:[#allocation3 + $0x378] sm:$0xff]
        %v569 = vld [vmem:[#allocation3 + $0x380] sm:$0xff]
        %v570 = vld [vmem:[#allocation3 + $0x388] sm:$0xff]
        %v571 = vld [vmem:[#allocation3 + $0x390] sm:$0xff]
        %v572 = vld [vmem:[#allocation3 + $0x398] sm:$0xff]
        %v573 = vld [vmem:[#allocation3 + $0x3a0] sm:$0xff]
        %v574 = vld [vmem:[#allocation3 + $0x3a8] sm:$0xff]
        %v575 = vld [vmem:[#allocation3 + $0x3b0] sm:$0xff]
        %v576 = vld [vmem:[#allocation3 + $0x3b8] sm:$0xff]
        %v577 = vld [vmem:[#allocation3 + $0x3c0] sm:$0xff]
        %v578 = vld [vmem:[#allocation3 + $0x3c8] sm:$0xff]
        %v579 = vld [vmem:[#allocation3 + $0x3d0] sm:$0xff]
        %v580 = vld [vmem:[#allocation3 + $0x3d8] sm:$0xff]
        %v581 = vld [vmem:[#allocation3 + $0x3e0] sm:$0xff]
        %v582 = vld [vmem:[#allocation3 + $0x3e8] sm:$0xff]
        %v583 = vld [vmem:[#allocation3 + $0x3f0] sm:$0xff]
        %v584 = vld [vmem:[#allocation3 + $0x3f8] sm:$0xff]
        %v585 = vld [vmem:[%s436] sm:$0xfe]
        %v586 = vld [vmem:[%s436 + $0x8] sm:$0xfe]
        %v587 = vld [vmem:[%s436 + $0x10] sm:$0xfe]
        %v588 = vld [vmem:[%s436 + $0x18] sm:$0xfe]
        %v589 = vld [vmem:[%s436 + $0x40] sm:$0x7]
        %v590 = vld [vmem:[%s436 + $0x48] sm:$0x7]
        %v591 = vld [vmem:[%s436 + $0x50] sm:$0x7]
        %v592 = vld [vmem:[%s436 + $0x58] sm:$0x7]
        %v593 = vpack.c.bf16 %v441, %v585
        %v594 = vpack.c.bf16 %v442, %v586
        %v595 = vpack.c.bf16 %v443, %v587
        %v596 = vpack.c.bf16 %v444, %v588
        %v597 = vpack.c.bf16 %v589, %v589
        %v598 = vpack.c.bf16 %v590, %v590
        %v599 = vpack.c.bf16 %v591, %v591
        %v600 = vpack.c.bf16 %v592, %v592
        %s601 = scalar_lea.vmem [#allocation3], 1024
        %v602 = vld [vmem:[%s601] sm:$0xff]
        %v603 = vld [vmem:[%s601 + $0x8] sm:$0xff]
        %v604 = vld [vmem:[%s601 + $0x10] sm:$0xff]
        %v605 = vld [vmem:[%s601 + $0x18] sm:$0xff]
        %v606 = vld [vmem:[%s601 + $0x20] sm:$0xff]
        %v607 = vld [vmem:[%s601 + $0x28] sm:$0xff]
        %v608 = vld [vmem:[%s601 + $0x30] sm:$0xff]
        %v609 = vld [vmem:[%s601 + $0x38] sm:$0xff]
        %v610 = vld [vmem:[%s601 + $0x40] sm:$0xff]
        %v611 = vld [vmem:[%s601 + $0x48] sm:$0xff]
        %v612 = vld [vmem:[%s601 + $0x50] sm:$0xff]
        %v613 = vld [vmem:[%s601 + $0x58] sm:$0xff]
        %v614 = vld [vmem:[%s601 + $0x60] sm:$0xff]
        %v615 = vld [vmem:[%s601 + $0x68] sm:$0xff]
        %v616 = vld [vmem:[%s601 + $0x70] sm:$0xff]
        %v617 = vld [vmem:[%s601 + $0x78] sm:$0xff]
        %v618 = vld [vmem:[%s601 + $0x80] sm:$0xff]
        %v619 = vld [vmem:[%s601 + $0x88] sm:$0xff]
        %v620 = vld [vmem:[%s601 + $0x90] sm:$0xff]
        %v621 = vld [vmem:[%s601 + $0x98] sm:$0xff]
        %v622 = vld [vmem:[%s601 + $0xa0] sm:$0xff]
        %v623 = vld [vmem:[%s601 + $0xa8] sm:$0xff]
        %v624 = vld [vmem:[%s601 + $0xb0] sm:$0xff]
        %v625 = vld [vmem:[%s601 + $0xb8] sm:$0xff]
        %v626 = vld [vmem:[%s601 + $0xc0] sm:$0xff]
        %v627 = vld [vmem:[%s601 + $0xc8] sm:$0xff]
        %v628 = vld [vmem:[%s601 + $0xd0] sm:$0xff]
        %v629 = vld [vmem:[%s601 + $0xd8] sm:$0xff]
        %v630 = vld [vmem:[%s601 + $0xe0] sm:$0xff]
        %v631 = vld [vmem:[%s601 + $0xe8] sm:$0xff]
        %v632 = vld [vmem:[%s601 + $0xf0] sm:$0xff]
        %v633 = vld [vmem:[%s601 + $0xf8] sm:$0xff]
        %v634 = vld [vmem:[%s601 + $0x100] sm:$0xff]
        %v635 = vld [vmem:[%s601 + $0x108] sm:$0xff]
        %v636 = vld [vmem:[%s601 + $0x110] sm:$0xff]
        %v637 = vld [vmem:[%s601 + $0x118] sm:$0xff]
        %v638 = vld [vmem:[%s601 + $0x120] sm:$0xff]
        %v639 = vld [vmem:[%s601 + $0x128] sm:$0xff]
        %v640 = vld [vmem:[%s601 + $0x130] sm:$0xff]
        %v641 = vld [vmem:[%s601 + $0x138] sm:$0xff]
        %v642 = vld [vmem:[%s601 + $0x140] sm:$0xff]
        %v643 = vld [vmem:[%s601 + $0x148] sm:$0xff]
        %v644 = vld [vmem:[%s601 + $0x150] sm:$0xff]
        %v645 = vld [vmem:[%s601 + $0x158] sm:$0xff]
        %v646 = vld [vmem:[%s601 + $0x160] sm:$0xff]
        %v647 = vld [vmem:[%s601 + $0x168] sm:$0xff]
        %v648 = vld [vmem:[%s601 + $0x170] sm:$0xff]
        %v649 = vld [vmem:[%s601 + $0x178] sm:$0xff]
        %v650 = vld [vmem:[%s601 + $0x180] sm:$0xff]
        %v651 = vld [vmem:[%s601 + $0x188] sm:$0xff]
        %v652 = vld [vmem:[%s601 + $0x190] sm:$0xff]
        %v653 = vld [vmem:[%s601 + $0x198] sm:$0xff]
        %v654 = vld [vmem:[%s601 + $0x1a0] sm:$0xff]
        %v655 = vld [vmem:[%s601 + $0x1a8] sm:$0xff]
        %v656 = vld [vmem:[%s601 + $0x1b0] sm:$0xff]
        %v657 = vld [vmem:[%s601 + $0x1b8] sm:$0xff]
        %v658 = vld [vmem:[%s601 + $0x1c0] sm:$0xff]
        %v659 = vld [vmem:[%s601 + $0x1c8] sm:$0xff]
        %v660 = vld [vmem:[%s601 + $0x1d0] sm:$0xff]
        %v661 = vld [vmem:[%s601 + $0x1d8] sm:$0xff]
        %v662 = vld [vmem:[%s601 + $0x1e0] sm:$0xff]
        %v663 = vld [vmem:[%s601 + $0x1e8] sm:$0xff]
        %v664 = vld [vmem:[%s601 + $0x1f0] sm:$0xff]
        %v665 = vld [vmem:[%s601 + $0x1f8] sm:$0xff]
        %v666 = vld [vmem:[%s601 + $0x200] sm:$0xff]
        %v667 = vld [vmem:[%s601 + $0x208] sm:$0xff]
        %v668 = vld [vmem:[%s601 + $0x210] sm:$0xff]
        %v669 = vld [vmem:[%s601 + $0x218] sm:$0xff]
        %v670 = vld [vmem:[%s601 + $0x220] sm:$0xff]
        %v671 = vld [vmem:[%s601 + $0x228] sm:$0xff]
        %v672 = vld [vmem:[%s601 + $0x230] sm:$0xff]
        %v673 = vld [vmem:[%s601 + $0x238] sm:$0xff]
        %v674 = vld [vmem:[%s601 + $0x240] sm:$0xff]
        %v675 = vld [vmem:[%s601 + $0x248] sm:$0xff]
        %v676 = vld [vmem:[%s601 + $0x250] sm:$0xff]
        %v677 = vld [vmem:[%s601 + $0x258] sm:$0xff]
        %v678 = vld [vmem:[%s601 + $0x260] sm:$0xff]
        %v679 = vld [vmem:[%s601 + $0x268] sm:$0xff]
        %v680 = vld [vmem:[%s601 + $0x270] sm:$0xff]
        %v681 = vld [vmem:[%s601 + $0x278] sm:$0xff]
        %v682 = vld [vmem:[%s601 + $0x280] sm:$0xff]
        %v683 = vld [vmem:[%s601 + $0x288] sm:$0xff]
        %v684 = vld [vmem:[%s601 + $0x290] sm:$0xff]
        %v685 = vld [vmem:[%s601 + $0x298] sm:$0xff]
        %v686 = vld [vmem:[%s601 + $0x2a0] sm:$0xff]
        %v687 = vld [vmem:[%s601 + $0x2a8] sm:$0xff]
        %v688 = vld [vmem:[%s601 + $0x2b0] sm:$0xff]
        %v689 = vld [vmem:[%s601 + $0x2b8] sm:$0xff]
        %v690 = vld [vmem:[%s601 + $0x2c0] sm:$0xff]
        %v691 = vld [vmem:[%s601 + $0x2c8] sm:$0xff]
        %v692 = vld [vmem:[%s601 + $0x2d0] sm:$0xff]
        %v693 = vld [vmem:[%s601 + $0x2d8] sm:$0xff]
        %v694 = vld [vmem:[%s601 + $0x2e0] sm:$0xff]
        %v695 = vld [vmem:[%s601 + $0x2e8] sm:$0xff]
        %v696 = vld [vmem:[%s601 + $0x2f0] sm:$0xff]
        %v697 = vld [vmem:[%s601 + $0x2f8] sm:$0xff]
        %v698 = vld [vmem:[%s601 + $0x300] sm:$0xff]
        %v699 = vld [vmem:[%s601 + $0x308] sm:$0xff]
        %v700 = vld [vmem:[%s601 + $0x310] sm:$0xff]
        %v701 = vld [vmem:[%s601 + $0x318] sm:$0xff]
        %v702 = vld [vmem:[%s601 + $0x320] sm:$0xff]
        %v703 = vld [vmem:[%s601 + $0x328] sm:$0xff]
        %v704 = vld [vmem:[%s601 + $0x330] sm:$0xff]
        %v705 = vld [vmem:[%s601 + $0x338] sm:$0xff]
        %v706 = vld [vmem:[%s601 + $0x340] sm:$0xff]
        %v707 = vld [vmem:[%s601 + $0x348] sm:$0xff]
        %v708 = vld [vmem:[%s601 + $0x350] sm:$0xff]
        %v709 = vld [vmem:[%s601 + $0x358] sm:$0xff]
        %v710 = vld [vmem:[%s601 + $0x360] sm:$0xff]
        %v711 = vld [vmem:[%s601 + $0x368] sm:$0xff]
        %v712 = vld [vmem:[%s601 + $0x370] sm:$0xff]
        %v713 = vld [vmem:[%s601 + $0x378] sm:$0xff]
        %v714 = vld [vmem:[%s601 + $0x380] sm:$0xff]
        %v715 = vld [vmem:[%s601 + $0x388] sm:$0xff]
        %v716 = vld [vmem:[%s601 + $0x390] sm:$0xff]
        %v717 = vld [vmem:[%s601 + $0x398] sm:$0xff]
        %v718 = vld [vmem:[%s601 + $0x3a0] sm:$0xff]
        %v719 = vld [vmem:[%s601 + $0x3a8] sm:$0xff]
        %v720 = vld [vmem:[%s601 + $0x3b0] sm:$0xff]
        %v721 = vld [vmem:[%s601 + $0x3b8] sm:$0xff]
        %v722 = vld [vmem:[%s601 + $0x3c0] sm:$0xff]
        %v723 = vld [vmem:[%s601 + $0x3c8] sm:$0xff]
        %v724 = vld [vmem:[%s601 + $0x3d0] sm:$0xff]
        %v725 = vld [vmem:[%s601 + $0x3d8] sm:$0xff]
        %v726 = vld [vmem:[%s601 + $0x3e0] sm:$0xff]
        %v727 = vld [vmem:[%s601 + $0x3e8] sm:$0xff]
        %v728 = vld [vmem:[%s601 + $0x3f0] sm:$0xff]
        %v729 = vld [vmem:[%s601 + $0x3f8] sm:$0xff]
        %vm730 = vsmask.f32 7424
        %v732 = vshrl.u32 %v593, 16
        %v734 = vshll.u32 %v593, 16
        %v736 = vrot.slane %v734, 1
        %v737 = vor.u32 %v732, %v736
        %v739 = vshll.u32 %v597, 16
        %v741 = vrot.slane %v739, 1
        %v742 = vsel %vm730, %v737, %v741
        %v744 = vshrl.u32 %v594, 16
        %v746 = vshll.u32 %v594, 16
        %v748 = vrot.slane %v746, 1
        %v749 = vor.u32 %v744, %v748
        %v751 = vshll.u32 %v598, 16
        %v753 = vrot.slane %v751, 1
        %v754 = vsel %vm730, %v749, %v753
        %v756 = vshrl.u32 %v595, 16
        %v758 = vshll.u32 %v595, 16
        %v760 = vrot.slane %v758, 1
        %v761 = vor.u32 %v756, %v760
        %v763 = vshll.u32 %v599, 16
        %v765 = vrot.slane %v763, 1
        %v766 = vsel %vm730, %v761, %v765
        %v768 = vshrl.u32 %v596, 16
        %v770 = vshll.u32 %v596, 16
        %v772 = vrot.slane %v770, 1
        %v773 = vor.u32 %v768, %v772
        %v775 = vshll.u32 %v600, 16
        %v777 = vrot.slane %v775, 1
        %v778 = vsel %vm730, %v773, %v777
        %v779 = vshrl.u32 %v597, 16
        %v781 = vor.u32 %v779, %v741
        %v782 = vshrl.u32 %v598, 16
        %v784 = vor.u32 %v782, %v753
        %v785 = vshrl.u32 %v599, 16
        %v787 = vor.u32 %v785, %v765
        %v788 = vshrl.u32 %v600, 16
        %v790 = vor.u32 %v788, %v777
        %v927 = vunpack.c.l.b16 %v602
        %v928 = vunpack.c.h.b16 %v602
        %v929 = vunpack.c.l.b16 %v603
        %v930 = vunpack.c.h.b16 %v603
        %v931 = vunpack.c.l.b16 %v604
        %v932 = vunpack.c.h.b16 %v604
        %v933 = vunpack.c.l.b16 %v605
        %v934 = vunpack.c.h.b16 %v605
        %v935 = vunpack.c.l.b16 %v606
        %v936 = vunpack.c.h.b16 %v606
        %v937 = vunpack.c.l.b16 %v607
        %v938 = vunpack.c.h.b16 %v607
        %v939 = vunpack.c.l.b16 %v608
        %v940 = vunpack.c.h.b16 %v608
        %v941 = vunpack.c.l.b16 %v609
        %v942 = vunpack.c.h.b16 %v609
        %v943 = vunpack.c.l.b16 %v610
        %v944 = vunpack.c.h.b16 %v610
        %v945 = vunpack.c.l.b16 %v611
        %v946 = vunpack.c.h.b16 %v611
        %v947 = vunpack.c.l.b16 %v612
        %v948 = vunpack.c.h.b16 %v612
        %v949 = vunpack.c.l.b16 %v613
        %v950 = vunpack.c.h.b16 %v613
        %v951 = vunpack.c.l.b16 %v614
        %v952 = vunpack.c.h.b16 %v614
        %v953 = vunpack.c.l.b16 %v615
        %v954 = vunpack.c.h.b16 %v615
        %v955 = vunpack.c.l.b16 %v616
        %v956 = vunpack.c.h.b16 %v616
        %v957 = vunpack.c.l.b16 %v617
        %v958 = vunpack.c.h.b16 %v617
        %v959 = vunpack.c.l.b16 %v618
        %v960 = vunpack.c.h.b16 %v618
        %v961 = vunpack.c.l.b16 %v619
        %v962 = vunpack.c.h.b16 %v619
        %v963 = vunpack.c.l.b16 %v620
        %v964 = vunpack.c.h.b16 %v620
        %v965 = vunpack.c.l.b16 %v621
        %v966 = vunpack.c.h.b16 %v621
        %v967 = vunpack.c.l.b16 %v622
        %v968 = vunpack.c.h.b16 %v622
        %v969 = vunpack.c.l.b16 %v623
        %v970 = vunpack.c.h.b16 %v623
        %v971 = vunpack.c.l.b16 %v624
        %v972 = vunpack.c.h.b16 %v624
        %v973 = vunpack.c.l.b16 %v625
        %v974 = vunpack.c.h.b16 %v625
        %v975 = vunpack.c.l.b16 %v626
        %v976 = vunpack.c.h.b16 %v626
        %v977 = vunpack.c.l.b16 %v627
        %v978 = vunpack.c.h.b16 %v627
        %v979 = vunpack.c.l.b16 %v628
        %v980 = vunpack.c.h.b16 %v628
        %v981 = vunpack.c.l.b16 %v629
        %v982 = vunpack.c.h.b16 %v629
        %v983 = vunpack.c.l.b16 %v630
        %v984 = vunpack.c.h.b16 %v630
        %v985 = vunpack.c.l.b16 %v631
        %v986 = vunpack.c.h.b16 %v631
        %v987 = vunpack.c.l.b16 %v632
        %v988 = vunpack.c.h.b16 %v632
        %v989 = vunpack.c.l.b16 %v633
        %v990 = vunpack.c.h.b16 %v633
        %v991 = vunpack.c.l.b16 %v634
        %v992 = vunpack.c.h.b16 %v634
        %v993 = vunpack.c.l.b16 %v635
        %v994 = vunpack.c.h.b16 %v635
        %v995 = vunpack.c.l.b16 %v636
        %v996 = vunpack.c.h.b16 %v636
        %v997 = vunpack.c.l.b16 %v637
        %v998 = vunpack.c.h.b16 %v637
        %v999 = vunpack.c.l.b16 %v638
        %v1000 = vunpack.c.h.b16 %v638
        %v1001 = vunpack.c.l.b16 %v639
        %v1002 = vunpack.c.h.b16 %v639
        %v1003 = vunpack.c.l.b16 %v640
        %v1004 = vunpack.c.h.b16 %v640
        %v1005 = vunpack.c.l.b16 %v641
        %v1006 = vunpack.c.h.b16 %v641
        %v1007 = vunpack.c.l.b16 %v642
        %v1008 = vunpack.c.h.b16 %v642
        %v1009 = vunpack.c.l.b16 %v643
        %v1010 = vunpack.c.h.b16 %v643
        %v1011 = vunpack.c.l.b16 %v644
        %v1012 = vunpack.c.h.b16 %v644
        %v1013 = vunpack.c.l.b16 %v645
        %v1014 = vunpack.c.h.b16 %v645
        %v1015 = vunpack.c.l.b16 %v646
        %v1016 = vunpack.c.h.b16 %v646
        %v1017 = vunpack.c.l.b16 %v647
        %v1018 = vunpack.c.h.b16 %v647
        %v1019 = vunpack.c.l.b16 %v648
        %v1020 = vunpack.c.h.b16 %v648
        %v1021 = vunpack.c.l.b16 %v649
        %v1022 = vunpack.c.h.b16 %v649
        %v1023 = vunpack.c.l.b16 %v650
        %v1024 = vunpack.c.h.b16 %v650
        %v1025 = vunpack.c.l.b16 %v651
        %v1026 = vunpack.c.h.b16 %v651
        %v1027 = vunpack.c.l.b16 %v652
        %v1028 = vunpack.c.h.b16 %v652
        %v1029 = vunpack.c.l.b16 %v653
        %v1030 = vunpack.c.h.b16 %v653
        %v1031 = vunpack.c.l.b16 %v654
        %v1032 = vunpack.c.h.b16 %v654
        %v1033 = vunpack.c.l.b16 %v655
        %v1034 = vunpack.c.h.b16 %v655
        %v1035 = vunpack.c.l.b16 %v656
        %v1036 = vunpack.c.h.b16 %v656
        %v1037 = vunpack.c.l.b16 %v657
        %v1038 = vunpack.c.h.b16 %v657
        %v1039 = vunpack.c.l.b16 %v658
        %v1040 = vunpack.c.h.b16 %v658
        %v1041 = vunpack.c.l.b16 %v659
        %v1042 = vunpack.c.h.b16 %v659
        %v1043 = vunpack.c.l.b16 %v660
        %v1044 = vunpack.c.h.b16 %v660
        %v1045 = vunpack.c.l.b16 %v661
        %v1046 = vunpack.c.h.b16 %v661
        %v1047 = vunpack.c.l.b16 %v662
        %v1048 = vunpack.c.h.b16 %v662
        %v1049 = vunpack.c.l.b16 %v663
        %v1050 = vunpack.c.h.b16 %v663
        %v1051 = vunpack.c.l.b16 %v664
        %v1052 = vunpack.c.h.b16 %v664
        %v1053 = vunpack.c.l.b16 %v665
        %v1054 = vunpack.c.h.b16 %v665
        %v1055 = vunpack.c.l.b16 %v666
        %v1056 = vunpack.c.h.b16 %v666
        %v1057 = vunpack.c.l.b16 %v667
        %v1058 = vunpack.c.h.b16 %v667
        %v1059 = vunpack.c.l.b16 %v668
        %v1060 = vunpack.c.h.b16 %v668
        %v1061 = vunpack.c.l.b16 %v669
        %v1062 = vunpack.c.h.b16 %v669
        %v1063 = vunpack.c.l.b16 %v670
        %v1064 = vunpack.c.h.b16 %v670
        %v1065 = vunpack.c.l.b16 %v671
        %v1066 = vunpack.c.h.b16 %v671
        %v1067 = vunpack.c.l.b16 %v672
        %v1068 = vunpack.c.h.b16 %v672
        %v1069 = vunpack.c.l.b16 %v673
        %v1070 = vunpack.c.h.b16 %v673
        %v1071 = vunpack.c.l.b16 %v674
        %v1072 = vunpack.c.h.b16 %v674
        %v1073 = vunpack.c.l.b16 %v675
        %v1074 = vunpack.c.h.b16 %v675
        %v1075 = vunpack.c.l.b16 %v676
        %v1076 = vunpack.c.h.b16 %v676
        %v1077 = vunpack.c.l.b16 %v677
        %v1078 = vunpack.c.h.b16 %v677
        %v1079 = vunpack.c.l.b16 %v678
        %v1080 = vunpack.c.h.b16 %v678
        %v1081 = vunpack.c.l.b16 %v679
        %v1082 = vunpack.c.h.b16 %v679
        %v1083 = vunpack.c.l.b16 %v680
        %v1084 = vunpack.c.h.b16 %v680
        %v1085 = vunpack.c.l.b16 %v681
        %v1086 = vunpack.c.h.b16 %v681
        %v1087 = vunpack.c.l.b16 %v682
        %v1088 = vunpack.c.h.b16 %v682
        %v1089 = vunpack.c.l.b16 %v683
        %v1090 = vunpack.c.h.b16 %v683
        %v1091 = vunpack.c.l.b16 %v684
        %v1092 = vunpack.c.h.b16 %v684
        %v1093 = vunpack.c.l.b16 %v685
        %v1094 = vunpack.c.h.b16 %v685
        %v1095 = vunpack.c.l.b16 %v686
        %v1096 = vunpack.c.h.b16 %v686
        %v1097 = vunpack.c.l.b16 %v687
        %v1098 = vunpack.c.h.b16 %v687
        %v1099 = vunpack.c.l.b16 %v688
        %v1100 = vunpack.c.h.b16 %v688
        %v1101 = vunpack.c.l.b16 %v689
        %v1102 = vunpack.c.h.b16 %v689
        %v1103 = vunpack.c.l.b16 %v690
        %v1104 = vunpack.c.h.b16 %v690
        %v1105 = vunpack.c.l.b16 %v691
        %v1106 = vunpack.c.h.b16 %v691
        %v1107 = vunpack.c.l.b16 %v692
        %v1108 = vunpack.c.h.b16 %v692
        %v1109 = vunpack.c.l.b16 %v693
        %v1110 = vunpack.c.h.b16 %v693
        %v1111 = vunpack.c.l.b16 %v694
        %v1112 = vunpack.c.h.b16 %v694
        %v1113 = vunpack.c.l.b16 %v695
        %v1114 = vunpack.c.h.b16 %v695
        %v1115 = vunpack.c.l.b16 %v696
        %v1116 = vunpack.c.h.b16 %v696
        %v1117 = vunpack.c.l.b16 %v697
        %v1118 = vunpack.c.h.b16 %v697
        %v1119 = vunpack.c.l.b16 %v698
        %v1120 = vunpack.c.h.b16 %v698
        %v1121 = vunpack.c.l.b16 %v699
        %v1122 = vunpack.c.h.b16 %v699
        %v1123 = vunpack.c.l.b16 %v700
        %v1124 = vunpack.c.h.b16 %v700
        %v1125 = vunpack.c.l.b16 %v701
        %v1126 = vunpack.c.h.b16 %v701
        %v1127 = vunpack.c.l.b16 %v702
        %v1128 = vunpack.c.h.b16 %v702
        %v1129 = vunpack.c.l.b16 %v703
        %v1130 = vunpack.c.h.b16 %v703
        %v1131 = vunpack.c.l.b16 %v704
        %v1132 = vunpack.c.h.b16 %v704
        %v1133 = vunpack.c.l.b16 %v705
        %v1134 = vunpack.c.h.b16 %v705
        %v1135 = vunpack.c.l.b16 %v706
        %v1136 = vunpack.c.h.b16 %v706
        %v1137 = vunpack.c.l.b16 %v707
        %v1138 = vunpack.c.h.b16 %v707
        %v1139 = vunpack.c.l.b16 %v708
        %v1140 = vunpack.c.h.b16 %v708
        %v1141 = vunpack.c.l.b16 %v709
        %v1142 = vunpack.c.h.b16 %v709
        %v1143 = vunpack.c.l.b16 %v710
        %v1144 = vunpack.c.h.b16 %v710
        %v1145 = vunpack.c.l.b16 %v711
        %v1146 = vunpack.c.h.b16 %v711
        %v1147 = vunpack.c.l.b16 %v712
        %v1148 = vunpack.c.h.b16 %v712
        %v1149 = vunpack.c.l.b16 %v713
        %v1150 = vunpack.c.h.b16 %v713
        %v1151 = vunpack.c.l.b16 %v714
        %v1152 = vunpack.c.h.b16 %v714
        %v1153 = vunpack.c.l.b16 %v715
        %v1154 = vunpack.c.h.b16 %v715
        %v1155 = vunpack.c.l.b16 %v716
        %v1156 = vunpack.c.h.b16 %v716
        %v1157 = vunpack.c.l.b16 %v717
        %v1158 = vunpack.c.h.b16 %v717
        %v1159 = vunpack.c.l.b16 %v718
        %v1160 = vunpack.c.h.b16 %v718
        %v1161 = vunpack.c.l.b16 %v719
        %v1162 = vunpack.c.h.b16 %v719
        %v1163 = vunpack.c.l.b16 %v720
        %v1164 = vunpack.c.h.b16 %v720
        %v1165 = vunpack.c.l.b16 %v721
        %v1166 = vunpack.c.h.b16 %v721
        %v1167 = vunpack.c.l.b16 %v722
        %v1168 = vunpack.c.h.b16 %v722
        %v1169 = vunpack.c.l.b16 %v723
        %v1170 = vunpack.c.h.b16 %v723
        %v1171 = vunpack.c.l.b16 %v724
        %v1172 = vunpack.c.h.b16 %v724
        %v1173 = vunpack.c.l.b16 %v725
        %v1174 = vunpack.c.h.b16 %v725
        %v1175 = vunpack.c.l.b16 %v726
        %v1176 = vunpack.c.h.b16 %v726
        %v1177 = vunpack.c.l.b16 %v727
        %v1178 = vunpack.c.h.b16 %v727
        %v1179 = vunpack.c.l.b16 %v728
        %v1180 = vunpack.c.h.b16 %v728
        %v1181 = vunpack.c.l.b16 %v729
        %v1182 = vunpack.c.h.b16 %v729
        %v1183 = vpack.c.b16 %v931, %v927
        %v1184 = vpack.c.b16 %v932, %v928
        %v1185 = vpack.c.b16 %v933, %v929
        %v1186 = vpack.c.b16 %v934, %v930
        %v1187 = vpack.c.b16 %v939, %v935
        %v1188 = vpack.c.b16 %v940, %v936
        %v1189 = vpack.c.b16 %v941, %v937
        %v1190 = vpack.c.b16 %v942, %v938
        %v1191 = vpack.c.b16 %v947, %v943
        %v1192 = vpack.c.b16 %v948, %v944
        %v1193 = vpack.c.b16 %v949, %v945
        %v1194 = vpack.c.b16 %v950, %v946
        %v1195 = vpack.c.b16 %v955, %v951
        %v1196 = vpack.c.b16 %v956, %v952
        %v1197 = vpack.c.b16 %v957, %v953
        %v1198 = vpack.c.b16 %v958, %v954
        %v1199 = vpack.c.b16 %v963, %v959
        %v1200 = vpack.c.b16 %v964, %v960
        %v1201 = vpack.c.b16 %v965, %v961
        %v1202 = vpack.c.b16 %v966, %v962
        %v1203 = vpack.c.b16 %v971, %v967
        %v1204 = vpack.c.b16 %v972, %v968
        %v1205 = vpack.c.b16 %v973, %v969
        %v1206 = vpack.c.b16 %v974, %v970
        %v1207 = vpack.c.b16 %v979, %v975
        %v1208 = vpack.c.b16 %v980, %v976
        %v1209 = vpack.c.b16 %v981, %v977
        %v1210 = vpack.c.b16 %v982, %v978
        %v1211 = vpack.c.b16 %v987, %v983
        %v1212 = vpack.c.b16 %v988, %v984
        %v1213 = vpack.c.b16 %v989, %v985
        %v1214 = vpack.c.b16 %v990, %v986
        %v1215 = vpack.c.b16 %v995, %v991
        %v1216 = vpack.c.b16 %v996, %v992
        %v1217 = vpack.c.b16 %v997, %v993
        %v1218 = vpack.c.b16 %v998, %v994
        %v1219 = vpack.c.b16 %v1003, %v999
        %v1220 = vpack.c.b16 %v1004, %v1000
        %v1221 = vpack.c.b16 %v1005, %v1001
        %v1222 = vpack.c.b16 %v1006, %v1002
        %v1223 = vpack.c.b16 %v1011, %v1007
        %v1224 = vpack.c.b16 %v1012, %v1008
        %v1225 = vpack.c.b16 %v1013, %v1009
        %v1226 = vpack.c.b16 %v1014, %v1010
        %v1227 = vpack.c.b16 %v1019, %v1015
        %v1228 = vpack.c.b16 %v1020, %v1016
        %v1229 = vpack.c.b16 %v1021, %v1017
        %v1230 = vpack.c.b16 %v1022, %v1018
        %v1231 = vpack.c.b16 %v1027, %v1023
        %v1232 = vpack.c.b16 %v1028, %v1024
        %v1233 = vpack.c.b16 %v1029, %v1025
        %v1234 = vpack.c.b16 %v1030, %v1026
        %v1235 = vpack.c.b16 %v1035, %v1031
        %v1236 = vpack.c.b16 %v1036, %v1032
        %v1237 = vpack.c.b16 %v1037, %v1033
        %v1238 = vpack.c.b16 %v1038, %v1034
        %v1239 = vpack.c.b16 %v1043, %v1039
        %v1240 = vpack.c.b16 %v1044, %v1040
        %v1241 = vpack.c.b16 %v1045, %v1041
        %v1242 = vpack.c.b16 %v1046, %v1042
        %v1243 = vpack.c.b16 %v1051, %v1047
        %v1244 = vpack.c.b16 %v1052, %v1048
        %v1245 = vpack.c.b16 %v1053, %v1049
        %v1246 = vpack.c.b16 %v1054, %v1050
        %v1247 = vpack.c.b16 %v1059, %v1055
        %v1248 = vpack.c.b16 %v1060, %v1056
        %v1249 = vpack.c.b16 %v1061, %v1057
        %v1250 = vpack.c.b16 %v1062, %v1058
        %v1251 = vpack.c.b16 %v1067, %v1063
        %v1252 = vpack.c.b16 %v1068, %v1064
        %v1253 = vpack.c.b16 %v1069, %v1065
        %v1254 = vpack.c.b16 %v1070, %v1066
        %v1255 = vpack.c.b16 %v1075, %v1071
        %v1256 = vpack.c.b16 %v1076, %v1072
        %v1257 = vpack.c.b16 %v1077, %v1073
        %v1258 = vpack.c.b16 %v1078, %v1074
        %v1259 = vpack.c.b16 %v1083, %v1079
        %v1260 = vpack.c.b16 %v1084, %v1080
        %v1261 = vpack.c.b16 %v1085, %v1081
        %v1262 = vpack.c.b16 %v1086, %v1082
        %v1263 = vpack.c.b16 %v1091, %v1087
        %v1264 = vpack.c.b16 %v1092, %v1088
        %v1265 = vpack.c.b16 %v1093, %v1089
        %v1266 = vpack.c.b16 %v1094, %v1090
        %v1267 = vpack.c.b16 %v1099, %v1095
        %v1268 = vpack.c.b16 %v1100, %v1096
        %v1269 = vpack.c.b16 %v1101, %v1097
        %v1270 = vpack.c.b16 %v1102, %v1098
        %v1271 = vpack.c.b16 %v1107, %v1103
        %v1272 = vpack.c.b16 %v1108, %v1104
        %v1273 = vpack.c.b16 %v1109, %v1105
        %v1274 = vpack.c.b16 %v1110, %v1106
        %v1275 = vpack.c.b16 %v1115, %v1111
        %v1276 = vpack.c.b16 %v1116, %v1112
        %v1277 = vpack.c.b16 %v1117, %v1113
        %v1278 = vpack.c.b16 %v1118, %v1114
        %v1279 = vpack.c.b16 %v1123, %v1119
        %v1280 = vpack.c.b16 %v1124, %v1120
        %v1281 = vpack.c.b16 %v1125, %v1121
        %v1282 = vpack.c.b16 %v1126, %v1122
        %v1283 = vpack.c.b16 %v1131, %v1127
        %v1284 = vpack.c.b16 %v1132, %v1128
        %v1285 = vpack.c.b16 %v1133, %v1129
        %v1286 = vpack.c.b16 %v1134, %v1130
        %v1287 = vpack.c.b16 %v1139, %v1135
        %v1288 = vpack.c.b16 %v1140, %v1136
        %v1289 = vpack.c.b16 %v1141, %v1137
        %v1290 = vpack.c.b16 %v1142, %v1138
        %v1291 = vpack.c.b16 %v1147, %v1143
        %v1292 = vpack.c.b16 %v1148, %v1144
        %v1293 = vpack.c.b16 %v1149, %v1145
        %v1294 = vpack.c.b16 %v1150, %v1146
        %v1295 = vpack.c.b16 %v1155, %v1151
        %v1296 = vpack.c.b16 %v1156, %v1152
        %v1297 = vpack.c.b16 %v1157, %v1153
        %v1298 = vpack.c.b16 %v1158, %v1154
        %v1299 = vpack.c.b16 %v1163, %v1159
        %v1300 = vpack.c.b16 %v1164, %v1160
        %v1301 = vpack.c.b16 %v1165, %v1161
        %v1302 = vpack.c.b16 %v1166, %v1162
        %v1303 = vpack.c.b16 %v1171, %v1167
        %v1304 = vpack.c.b16 %v1172, %v1168
        %v1305 = vpack.c.b16 %v1173, %v1169
        %v1306 = vpack.c.b16 %v1174, %v1170
        %v1307 = vpack.c.b16 %v1179, %v1175
        %v1308 = vpack.c.b16 %v1180, %v1176
        %v1309 = vpack.c.b16 %v1181, %v1177
        %v1310 = vpack.c.b16 %v1182, %v1178
        %1439 = vmatpush.bf16.msra.mxu0 %v1211
        %1440 = vmatpush.bf16.msra.mxu0 %v1207
        %1441 = vmatpush.bf16.msra.mxu0 %v1203
        %1442 = vmatpush.bf16.msra.mxu0 %v1199
        %1443 = vmatpush.bf16.msra.mxu0 %v1195
        %1444 = vmatpush.bf16.msra.mxu0 %v1191
        %1445 = vmatpush.bf16.msra.mxu0 %v1187
        %1446 = vmatpush.bf16.msra.mxu0 %v1183
        %1447 = vmatmul.bf16.gmra.mxu0 %v742
        %v1448 = vpop.f32.mrf.mxu0
        %v1449 = vadd.f32 0.0, %v1448
        %v1450 = vpop.f32.mrf.mxu0
        %v1451 = vadd.f32 0.0, %v1450
        %1452 = vmatmul.bf16.gmra.mxu0 %v781
        %v1453 = vpop.f32.mrf.mxu0
        %v1454 = vadd.f32 0.0, %v1453
        %v1455 = vpop.f32.mrf.mxu0
        %1456 = vdwg.mxu0
        %1457 = vmatpush.bf16.msra.mxu0 %v1243
        %1458 = vmatpush.bf16.msra.mxu0 %v1239
        %1459 = vmatpush.bf16.msra.mxu0 %v1235
        %1460 = vmatpush.bf16.msra.mxu0 %v1231
        %1461 = vmatpush.bf16.msra.mxu0 %v1227
        %1462 = vmatpush.bf16.msra.mxu0 %v1223
        %1463 = vmatpush.bf16.msra.mxu0 %v1219
        %1464 = vmatpush.bf16.msra.mxu0 %v1215
        %1465 = vmatmul.bf16.gmra.mxu0 %v754
        %v1466 = vpop.f32.mrf.mxu0
        %v1467 = vadd.f32 %v1449, %v1466
        %v1468 = vpop.f32.mrf.mxu0
        %v1469 = vadd.f32 %v1451, %v1468
        %1470 = vmatmul.bf16.gmra.mxu0 %v784
        %v1471 = vpop.f32.mrf.mxu0
        %v1472 = vadd.f32 %v1454, %v1471
        %v1473 = vpop.f32.mrf.mxu0
        %1474 = vdwg.mxu0
        %1475 = vmatpush.bf16.msra.mxu0 %v1275
        %1476 = vmatpush.bf16.msra.mxu0 %v1271
        %1477 = vmatpush.bf16.msra.mxu0 %v1267
        %1478 = vmatpush.bf16.msra.mxu0 %v1263
        %1479 = vmatpush.bf16.msra.mxu0 %v1259
        %1480 = vmatpush.bf16.msra.mxu0 %v1255
        %1481 = vmatpush.bf16.msra.mxu0 %v1251
        %1482 = vmatpush.bf16.msra.mxu0 %v1247
        %1483 = vmatmul.bf16.gmra.mxu0 %v766
        %v1484 = vpop.f32.mrf.mxu0
        %v1485 = vadd.f32 %v1467, %v1484
        %v1486 = vpop.f32.mrf.mxu0
        %v1487 = vadd.f32 %v1469, %v1486
        %1488 = vmatmul.bf16.gmra.mxu0 %v787
        %v1489 = vpop.f32.mrf.mxu0
        %v1490 = vadd.f32 %v1472, %v1489
        %v1491 = vpop.f32.mrf.mxu0
        %1492 = vdwg.mxu0
        %1493 = vmatpush.bf16.msra.mxu0 %v1307
        %1494 = vmatpush.bf16.msra.mxu0 %v1303
        %1495 = vmatpush.bf16.msra.mxu0 %v1299
        %1496 = vmatpush.bf16.msra.mxu0 %v1295
        %1497 = vmatpush.bf16.msra.mxu0 %v1291
        %1498 = vmatpush.bf16.msra.mxu0 %v1287
        %1499 = vmatpush.bf16.msra.mxu0 %v1283
        %1500 = vmatpush.bf16.msra.mxu0 %v1279
        %1501 = vmatmul.bf16.gmra.mxu0 %v778
        %v1502 = vpop.f32.mrf.mxu0
        %v1503 = vadd.f32 %v1485, %v1502
        %v1504 = vpop.f32.mrf.mxu0
        %v1505 = vadd.f32 %v1487, %v1504
        %1506 = vmatmul.bf16.gmra.mxu0 %v790
        %v1507 = vpop.f32.mrf.mxu0
        %v1508 = vadd.f32 %v1490, %v1507
        %v1509 = vpop.f32.mrf.mxu0
        %1510 = vdwg.mxu0
        %1511 = vmatpush.bf16.msra.mxu0 %v1212
        %1512 = vmatpush.bf16.msra.mxu0 %v1208
        %1513 = vmatpush.bf16.msra.mxu0 %v1204
        %1514 = vmatpush.bf16.msra.mxu0 %v1200
        %1515 = vmatpush.bf16.msra.mxu0 %v1196
        %1516 = vmatpush.bf16.msra.mxu0 %v1192
        %1517 = vmatpush.bf16.msra.mxu0 %v1188
        %1518 = vmatpush.bf16.msra.mxu0 %v1184
        %1519 = vmatmul.bf16.gmra.mxu0 %v742
        %v1520 = vpop.f32.mrf.mxu0
        %v1521 = vadd.f32 0.0, %v1520
        %v1522 = vpop.f32.mrf.mxu0
        %v1523 = vadd.f32 0.0, %v1522
        %1524 = vmatmul.bf16.gmra.mxu0 %v781
        %v1525 = vpop.f32.mrf.mxu0
        %v1526 = vadd.f32 0.0, %v1525
        %v1527 = vpop.f32.mrf.mxu0
        %1528 = vdwg.mxu0
        %1529 = vmatpush.bf16.msra.mxu0 %v1244
        %1530 = vmatpush.bf16.msra.mxu0 %v1240
        %1531 = vmatpush.bf16.msra.mxu0 %v1236
        %1532 = vmatpush.bf16.msra.mxu0 %v1232
        %1533 = vmatpush.bf16.msra.mxu0 %v1228
        %1534 = vmatpush.bf16.msra.mxu0 %v1224
        %1535 = vmatpush.bf16.msra.mxu0 %v1220
        %1536 = vmatpush.bf16.msra.mxu0 %v1216
        %1537 = vmatmul.bf16.gmra.mxu0 %v754
        %v1538 = vpop.f32.mrf.mxu0
        %v1539 = vadd.f32 %v1521, %v1538
        %v1540 = vpop.f32.mrf.mxu0
        %v1541 = vadd.f32 %v1523, %v1540
        %1542 = vmatmul.bf16.gmra.mxu0 %v784
        %v1543 = vpop.f32.mrf.mxu0
        %v1544 = vadd.f32 %v1526, %v1543
        %v1545 = vpop.f32.mrf.mxu0
        %1546 = vdwg.mxu0
        %1547 = vmatpush.bf16.msra.mxu0 %v1276
        %1548 = vmatpush.bf16.msra.mxu0 %v1272
        %1549 = vmatpush.bf16.msra.mxu0 %v1268
        %1550 = vmatpush.bf16.msra.mxu0 %v1264
        %1551 = vmatpush.bf16.msra.mxu0 %v1260
        %1552 = vmatpush.bf16.msra.mxu0 %v1256
        %1553 = vmatpush.bf16.msra.mxu0 %v1252
        %1554 = vmatpush.bf16.msra.mxu0 %v1248
        %1555 = vmatmul.bf16.gmra.mxu0 %v766
        %v1556 = vpop.f32.mrf.mxu0
        %v1557 = vadd.f32 %v1539, %v1556
        %v1558 = vpop.f32.mrf.mxu0
        %v1559 = vadd.f32 %v1541, %v1558
        %1560 = vmatmul.bf16.gmra.mxu0 %v787
        %v1561 = vpop.f32.mrf.mxu0
        %v1562 = vadd.f32 %v1544, %v1561
        %v1563 = vpop.f32.mrf.mxu0
        %1564 = vdwg.mxu0
        %1565 = vmatpush.bf16.msra.mxu0 %v1308
        %1566 = vmatpush.bf16.msra.mxu0 %v1304
        %1567 = vmatpush.bf16.msra.mxu0 %v1300
        %1568 = vmatpush.bf16.msra.mxu0 %v1296
        %1569 = vmatpush.bf16.msra.mxu0 %v1292
        %1570 = vmatpush.bf16.msra.mxu0 %v1288
        %1571 = vmatpush.bf16.msra.mxu0 %v1284
        %1572 = vmatpush.bf16.msra.mxu0 %v1280
        %1573 = vmatmul.bf16.gmra.mxu0 %v778
        %v1574 = vpop.f32.mrf.mxu0
        %v1575 = vadd.f32 %v1557, %v1574
        %v1576 = vpop.f32.mrf.mxu0
        %v1577 = vadd.f32 %v1559, %v1576
        %1578 = vmatmul.bf16.gmra.mxu0 %v790
        %v1579 = vpop.f32.mrf.mxu0
        %v1580 = vadd.f32 %v1562, %v1579
        %v1581 = vpop.f32.mrf.mxu0
        %1582 = vdwg.mxu0
        %1583 = vmatpush.bf16.msra.mxu0 %v1213
        %1584 = vmatpush.bf16.msra.mxu0 %v1209
        %1585 = vmatpush.bf16.msra.mxu0 %v1205
        %1586 = vmatpush.bf16.msra.mxu0 %v1201
        %1587 = vmatpush.bf16.msra.mxu0 %v1197
        %1588 = vmatpush.bf16.msra.mxu0 %v1193
        %1589 = vmatpush.bf16.msra.mxu0 %v1189
        %1590 = vmatpush.bf16.msra.mxu0 %v1185
        %1591 = vmatmul.bf16.gmra.mxu0 %v742
        %v1592 = vpop.f32.mrf.mxu0
        %v1593 = vadd.f32 0.0, %v1592
        %v1594 = vpop.f32.mrf.mxu0
        %v1595 = vadd.f32 0.0, %v1594
        %1596 = vmatmul.bf16.gmra.mxu0 %v781
        %v1597 = vpop.f32.mrf.mxu0
        %v1598 = vadd.f32 0.0, %v1597
        %v1599 = vpop.f32.mrf.mxu0
        %1600 = vdwg.mxu0
        %1601 = vmatpush.bf16.msra.mxu0 %v1245
        %1602 = vmatpush.bf16.msra.mxu0 %v1241
        %1603 = vmatpush.bf16.msra.mxu0 %v1237
        %1604 = vmatpush.bf16.msra.mxu0 %v1233
        %1605 = vmatpush.bf16.msra.mxu0 %v1229
        %1606 = vmatpush.bf16.msra.mxu0 %v1225
        %1607 = vmatpush.bf16.msra.mxu0 %v1221
        %1608 = vmatpush.bf16.msra.mxu0 %v1217
        %1609 = vmatmul.bf16.gmra.mxu0 %v754
        %v1610 = vpop.f32.mrf.mxu0
        %v1611 = vadd.f32 %v1593, %v1610
        %v1612 = vpop.f32.mrf.mxu0
        %v1613 = vadd.f32 %v1595, %v1612
        %1614 = vmatmul.bf16.gmra.mxu0 %v784
        %v1615 = vpop.f32.mrf.mxu0
        %v1616 = vadd.f32 %v1598, %v1615
        %v1617 = vpop.f32.mrf.mxu0
        %1618 = vdwg.mxu0
        %1619 = vmatpush.bf16.msra.mxu0 %v1277
        %1620 = vmatpush.bf16.msra.mxu0 %v1273
        %1621 = vmatpush.bf16.msra.mxu0 %v1269
        %1622 = vmatpush.bf16.msra.mxu0 %v1265
        %1623 = vmatpush.bf16.msra.mxu0 %v1261
        %1624 = vmatpush.bf16.msra.mxu0 %v1257
        %1625 = vmatpush.bf16.msra.mxu0 %v1253
        %1626 = vmatpush.bf16.msra.mxu0 %v1249
        %1627 = vmatmul.bf16.gmra.mxu0 %v766
        %v1628 = vpop.f32.mrf.mxu0
        %v1629 = vadd.f32 %v1611, %v1628
        %v1630 = vpop.f32.mrf.mxu0
        %v1631 = vadd.f32 %v1613, %v1630
        %1632 = vmatmul.bf16.gmra.mxu0 %v787
        %v1633 = vpop.f32.mrf.mxu0
        %v1634 = vadd.f32 %v1616, %v1633
        %v1635 = vpop.f32.mrf.mxu0
        %1636 = vdwg.mxu0
        %1637 = vmatpush.bf16.msra.mxu0 %v1309
        %1638 = vmatpush.bf16.msra.mxu0 %v1305
        %1639 = vmatpush.bf16.msra.mxu0 %v1301
        %1640 = vmatpush.bf16.msra.mxu0 %v1297
        %1641 = vmatpush.bf16.msra.mxu0 %v1293
        %1642 = vmatpush.bf16.msra.mxu0 %v1289
        %1643 = vmatpush.bf16.msra.mxu0 %v1285
        %1644 = vmatpush.bf16.msra.mxu0 %v1281
        %1645 = vmatmul.bf16.gmra.mxu0 %v778
        %v1646 = vpop.f32.mrf.mxu0
        %v1647 = vadd.f32 %v1629, %v1646
        %v1648 = vpop.f32.mrf.mxu0
        %v1649 = vadd.f32 %v1631, %v1648
        %1650 = vmatmul.bf16.gmra.mxu0 %v790
        %v1651 = vpop.f32.mrf.mxu0
        %v1652 = vadd.f32 %v1634, %v1651
        %v1653 = vpop.f32.mrf.mxu0
        %1654 = vdwg.mxu0
        %1655 = vmatpush.bf16.msra.mxu0 %v1214
        %1656 = vmatpush.bf16.msra.mxu0 %v1210
        %1657 = vmatpush.bf16.msra.mxu0 %v1206
        %1658 = vmatpush.bf16.msra.mxu0 %v1202
        %1659 = vmatpush.bf16.msra.mxu0 %v1198
        %1660 = vmatpush.bf16.msra.mxu0 %v1194
        %1661 = vmatpush.bf16.msra.mxu0 %v1190
        %1662 = vmatpush.bf16.msra.mxu0 %v1186
        %1663 = vmatmul.bf16.gmra.mxu0 %v742
        %v1664 = vpop.f32.mrf.mxu0
        %v1665 = vadd.f32 0.0, %v1664
        %v1666 = vpop.f32.mrf.mxu0
        %v1667 = vadd.f32 0.0, %v1666
        %1668 = vmatmul.bf16.gmra.mxu0 %v781
        %v1669 = vpop.f32.mrf.mxu0
        %v1670 = vadd.f32 0.0, %v1669
        %v1671 = vpop.f32.mrf.mxu0
        %1672 = vdwg.mxu0
        %1673 = vmatpush.bf16.msra.mxu0 %v1246
        %1674 = vmatpush.bf16.msra.mxu0 %v1242
        %1675 = vmatpush.bf16.msra.mxu0 %v1238
        %1676 = vmatpush.bf16.msra.mxu0 %v1234
        %1677 = vmatpush.bf16.msra.mxu0 %v1230
        %1678 = vmatpush.bf16.msra.mxu0 %v1226
        %1679 = vmatpush.bf16.msra.mxu0 %v1222
        %1680 = vmatpush.bf16.msra.mxu0 %v1218
        %1681 = vmatmul.bf16.gmra.mxu0 %v754
        %v1682 = vpop.f32.mrf.mxu0
        %v1683 = vadd.f32 %v1665, %v1682
        %v1684 = vpop.f32.mrf.mxu0
        %v1685 = vadd.f32 %v1667, %v1684
        %1686 = vmatmul.bf16.gmra.mxu0 %v784
        %v1687 = vpop.f32.mrf.mxu0
        %v1688 = vadd.f32 %v1670, %v1687
        %v1689 = vpop.f32.mrf.mxu0
        %1690 = vdwg.mxu0
        %1691 = vmatpush.bf16.msra.mxu0 %v1278
        %1692 = vmatpush.bf16.msra.mxu0 %v1274
        %1693 = vmatpush.bf16.msra.mxu0 %v1270
        %1694 = vmatpush.bf16.msra.mxu0 %v1266
        %1695 = vmatpush.bf16.msra.mxu0 %v1262
        %1696 = vmatpush.bf16.msra.mxu0 %v1258
        %1697 = vmatpush.bf16.msra.mxu0 %v1254
        %1698 = vmatpush.bf16.msra.mxu0 %v1250
        %1699 = vmatmul.bf16.gmra.mxu0 %v766
        %v1700 = vpop.f32.mrf.mxu0
        %v1701 = vadd.f32 %v1683, %v1700
        %v1702 = vpop.f32.mrf.mxu0
        %v1703 = vadd.f32 %v1685, %v1702
        %1704 = vmatmul.bf16.gmra.mxu0 %v787
        %v1705 = vpop.f32.mrf.mxu0
        %v1706 = vadd.f32 %v1688, %v1705
        %v1707 = vpop.f32.mrf.mxu0
        %1708 = vdwg.mxu0
        %1709 = vmatpush.bf16.msra.mxu0 %v1310
        %1710 = vmatpush.bf16.msra.mxu0 %v1306
        %1711 = vmatpush.bf16.msra.mxu0 %v1302
        %1712 = vmatpush.bf16.msra.mxu0 %v1298
        %1713 = vmatpush.bf16.msra.mxu0 %v1294
        %1714 = vmatpush.bf16.msra.mxu0 %v1290
        %1715 = vmatpush.bf16.msra.mxu0 %v1286
        %1716 = vmatpush.bf16.msra.mxu0 %v1282
        %1717 = vmatmul.bf16.gmra.mxu0 %v778
        %v1718 = vpop.f32.mrf.mxu0
        %v1719 = vadd.f32 %v1701, %v1718
        %v1720 = vpop.f32.mrf.mxu0
        %v1721 = vadd.f32 %v1703, %v1720
        %1722 = vmatmul.bf16.gmra.mxu0 %v790
        %v1723 = vpop.f32.mrf.mxu0
        %v1724 = vadd.f32 %v1706, %v1723
        %v1725 = vpop.f32.mrf.mxu0
        %1726 = vdwg.mxu0
        %v1855 = vunpack.c.l.b16 %v457
        %v1856 = vunpack.c.h.b16 %v457
        %v1857 = vunpack.c.l.b16 %v458
        %v1858 = vunpack.c.h.b16 %v458
        %v1859 = vunpack.c.l.b16 %v459
        %v1860 = vunpack.c.h.b16 %v459
        %v1861 = vunpack.c.l.b16 %v460
        %v1862 = vunpack.c.h.b16 %v460
        %v1863 = vunpack.c.l.b16 %v461
        %v1864 = vunpack.c.h.b16 %v461
        %v1865 = vunpack.c.l.b16 %v462
        %v1866 = vunpack.c.h.b16 %v462
        %v1867 = vunpack.c.l.b16 %v463
        %v1868 = vunpack.c.h.b16 %v463
        %v1869 = vunpack.c.l.b16 %v464
        %v1870 = vunpack.c.h.b16 %v464
        %v1871 = vunpack.c.l.b16 %v465
        %v1872 = vunpack.c.h.b16 %v465
        %v1873 = vunpack.c.l.b16 %v466
        %v1874 = vunpack.c.h.b16 %v466
        %v1875 = vunpack.c.l.b16 %v467
        %v1876 = vunpack.c.h.b16 %v467
        %v1877 = vunpack.c.l.b16 %v468
        %v1878 = vunpack.c.h.b16 %v468
        %v1879 = vunpack.c.l.b16 %v469
        %v1880 = vunpack.c.h.b16 %v469
        %v1881 = vunpack.c.l.b16 %v470
        %v1882 = vunpack.c.h.b16 %v470
        %v1883 = vunpack.c.l.b16 %v471
        %v1884 = vunpack.c.h.b16 %v471
        %v1885 = vunpack.c.l.b16 %v472
        %v1886 = vunpack.c.h.b16 %v472
        %v1887 = vunpack.c.l.b16 %v473
        %v1888 = vunpack.c.h.b16 %v473
        %v1889 = vunpack.c.l.b16 %v474
        %v1890 = vunpack.c.h.b16 %v474
        %v1891 = vunpack.c.l.b16 %v475
        %v1892 = vunpack.c.h.b16 %v475
        %v1893 = vunpack.c.l.b16 %v476
        %v1894 = vunpack.c.h.b16 %v476
        %v1895 = vunpack.c.l.b16 %v477
        %v1896 = vunpack.c.h.b16 %v477
        %v1897 = vunpack.c.l.b16 %v478
        %v1898 = vunpack.c.h.b16 %v478
        %v1899 = vunpack.c.l.b16 %v479
        %v1900 = vunpack.c.h.b16 %v479
        %v1901 = vunpack.c.l.b16 %v480
        %v1902 = vunpack.c.h.b16 %v480
        %v1903 = vunpack.c.l.b16 %v481
        %v1904 = vunpack.c.h.b16 %v481
        %v1905 = vunpack.c.l.b16 %v482
        %v1906 = vunpack.c.h.b16 %v482
        %v1907 = vunpack.c.l.b16 %v483
        %v1908 = vunpack.c.h.b16 %v483
        %v1909 = vunpack.c.l.b16 %v484
        %v1910 = vunpack.c.h.b16 %v484
        %v1911 = vunpack.c.l.b16 %v485
        %v1912 = vunpack.c.h.b16 %v485
        %v1913 = vunpack.c.l.b16 %v486
        %v1914 = vunpack.c.h.b16 %v486
        %v1915 = vunpack.c.l.b16 %v487
        %v1916 = vunpack.c.h.b16 %v487
        %v1917 = vunpack.c.l.b16 %v488
        %v1918 = vunpack.c.h.b16 %v488
        %v1919 = vunpack.c.l.b16 %v489
        %v1920 = vunpack.c.h.b16 %v489
        %v1921 = vunpack.c.l.b16 %v490
        %v1922 = vunpack.c.h.b16 %v490
        %v1923 = vunpack.c.l.b16 %v491
        %v1924 = vunpack.c.h.b16 %v491
        %v1925 = vunpack.c.l.b16 %v492
        %v1926 = vunpack.c.h.b16 %v492
        %v1927 = vunpack.c.l.b16 %v493
        %v1928 = vunpack.c.h.b16 %v493
        %v1929 = vunpack.c.l.b16 %v494
        %v1930 = vunpack.c.h.b16 %v494
        %v1931 = vunpack.c.l.b16 %v495
        %v1932 = vunpack.c.h.b16 %v495
        %v1933 = vunpack.c.l.b16 %v496
        %v1934 = vunpack.c.h.b16 %v496
        %v1935 = vunpack.c.l.b16 %v497
        %v1936 = vunpack.c.h.b16 %v497
        %v1937 = vunpack.c.l.b16 %v498
        %v1938 = vunpack.c.h.b16 %v498
        %v1939 = vunpack.c.l.b16 %v499
        %v1940 = vunpack.c.h.b16 %v499
        %v1941 = vunpack.c.l.b16 %v500
        %v1942 = vunpack.c.h.b16 %v500
        %v1943 = vunpack.c.l.b16 %v501
        %v1944 = vunpack.c.h.b16 %v501
        %v1945 = vunpack.c.l.b16 %v502
        %v1946 = vunpack.c.h.b16 %v502
        %v1947 = vunpack.c.l.b16 %v503
        %v1948 = vunpack.c.h.b16 %v503
        %v1949 = vunpack.c.l.b16 %v504
        %v1950 = vunpack.c.h.b16 %v504
        %v1951 = vunpack.c.l.b16 %v505
        %v1952 = vunpack.c.h.b16 %v505
        %v1953 = vunpack.c.l.b16 %v506
        %v1954 = vunpack.c.h.b16 %v506
        %v1955 = vunpack.c.l.b16 %v507
        %v1956 = vunpack.c.h.b16 %v507
        %v1957 = vunpack.c.l.b16 %v508
        %v1958 = vunpack.c.h.b16 %v508
        %v1959 = vunpack.c.l.b16 %v509
        %v1960 = vunpack.c.h.b16 %v509
        %v1961 = vunpack.c.l.b16 %v510
        %v1962 = vunpack.c.h.b16 %v510
        %v1963 = vunpack.c.l.b16 %v511
        %v1964 = vunpack.c.h.b16 %v511
        %v1965 = vunpack.c.l.b16 %v512
        %v1966 = vunpack.c.h.b16 %v512
        %v1967 = vunpack.c.l.b16 %v513
        %v1968 = vunpack.c.h.b16 %v513
        %v1969 = vunpack.c.l.b16 %v514
        %v1970 = vunpack.c.h.b16 %v514
        %v1971 = vunpack.c.l.b16 %v515
        %v1972 = vunpack.c.h.b16 %v515
        %v1973 = vunpack.c.l.b16 %v516
        %v1974 = vunpack.c.h.b16 %v516
        %v1975 = vunpack.c.l.b16 %v517
        %v1976 = vunpack.c.h.b16 %v517
        %v1977 = vunpack.c.l.b16 %v518
        %v1978 = vunpack.c.h.b16 %v518
        %v1979 = vunpack.c.l.b16 %v519
        %v1980 = vunpack.c.h.b16 %v519
        %v1981 = vunpack.c.l.b16 %v520
        %v1982 = vunpack.c.h.b16 %v520
        %v1983 = vunpack.c.l.b16 %v521
        %v1984 = vunpack.c.h.b16 %v521
        %v1985 = vunpack.c.l.b16 %v522
        %v1986 = vunpack.c.h.b16 %v522
        %v1987 = vunpack.c.l.b16 %v523
        %v1988 = vunpack.c.h.b16 %v523
        %v1989 = vunpack.c.l.b16 %v524
        %v1990 = vunpack.c.h.b16 %v524
        %v1991 = vunpack.c.l.b16 %v525
        %v1992 = vunpack.c.h.b16 %v525
        %v1993 = vunpack.c.l.b16 %v526
        %v1994 = vunpack.c.h.b16 %v526
        %v1995 = vunpack.c.l.b16 %v527
        %v1996 = vunpack.c.h.b16 %v527
        %v1997 = vunpack.c.l.b16 %v528
        %v1998 = vunpack.c.h.b16 %v528
        %v1999 = vunpack.c.l.b16 %v529
        %v2000 = vunpack.c.h.b16 %v529
        %v2001 = vunpack.c.l.b16 %v530
        %v2002 = vunpack.c.h.b16 %v530
        %v2003 = vunpack.c.l.b16 %v531
        %v2004 = vunpack.c.h.b16 %v531
        %v2005 = vunpack.c.l.b16 %v532
        %v2006 = vunpack.c.h.b16 %v532
        %v2007 = vunpack.c.l.b16 %v533
        %v2008 = vunpack.c.h.b16 %v533
        %v2009 = vunpack.c.l.b16 %v534
        %v2010 = vunpack.c.h.b16 %v534
        %v2011 = vunpack.c.l.b16 %v535
        %v2012 = vunpack.c.h.b16 %v535
        %v2013 = vunpack.c.l.b16 %v536
        %v2014 = vunpack.c.h.b16 %v536
        %v2015 = vunpack.c.l.b16 %v537
        %v2016 = vunpack.c.h.b16 %v537
        %v2017 = vunpack.c.l.b16 %v538
        %v2018 = vunpack.c.h.b16 %v538
        %v2019 = vunpack.c.l.b16 %v539
        %v2020 = vunpack.c.h.b16 %v539
        %v2021 = vunpack.c.l.b16 %v540
        %v2022 = vunpack.c.h.b16 %v540
        %v2023 = vunpack.c.l.b16 %v541
        %v2024 = vunpack.c.h.b16 %v541
        %v2025 = vunpack.c.l.b16 %v542
        %v2026 = vunpack.c.h.b16 %v542
        %v2027 = vunpack.c.l.b16 %v543
        %v2028 = vunpack.c.h.b16 %v543
        %v2029 = vunpack.c.l.b16 %v544
        %v2030 = vunpack.c.h.b16 %v544
        %v2031 = vunpack.c.l.b16 %v545
        %v2032 = vunpack.c.h.b16 %v545
        %v2033 = vunpack.c.l.b16 %v546
        %v2034 = vunpack.c.h.b16 %v546
        %v2035 = vunpack.c.l.b16 %v547
        %v2036 = vunpack.c.h.b16 %v547
        %v2037 = vunpack.c.l.b16 %v548
        %v2038 = vunpack.c.h.b16 %v548
        %v2039 = vunpack.c.l.b16 %v549
        %v2040 = vunpack.c.h.b16 %v549
        %v2041 = vunpack.c.l.b16 %v550
        %v2042 = vunpack.c.h.b16 %v550
        %v2043 = vunpack.c.l.b16 %v551
        %v2044 = vunpack.c.h.b16 %v551
        %v2045 = vunpack.c.l.b16 %v552
        %v2046 = vunpack.c.h.b16 %v552
        %v2047 = vunpack.c.l.b16 %v553
        %v2048 = vunpack.c.h.b16 %v553
        %v2049 = vunpack.c.l.b16 %v554
        %v2050 = vunpack.c.h.b16 %v554
        %v2051 = vunpack.c.l.b16 %v555
        %v2052 = vunpack.c.h.b16 %v555
        %v2053 = vunpack.c.l.b16 %v556
        %v2054 = vunpack.c.h.b16 %v556
        %v2055 = vunpack.c.l.b16 %v557
        %v2056 = vunpack.c.h.b16 %v557
        %v2057 = vunpack.c.l.b16 %v558
        %v2058 = vunpack.c.h.b16 %v558
        %v2059 = vunpack.c.l.b16 %v559
        %v2060 = vunpack.c.h.b16 %v559
        %v2061 = vunpack.c.l.b16 %v560
        %v2062 = vunpack.c.h.b16 %v560
        %v2063 = vunpack.c.l.b16 %v561
        %v2064 = vunpack.c.h.b16 %v561
        %v2065 = vunpack.c.l.b16 %v562
        %v2066 = vunpack.c.h.b16 %v562
        %v2067 = vunpack.c.l.b16 %v563
        %v2068 = vunpack.c.h.b16 %v563
        %v2069 = vunpack.c.l.b16 %v564
        %v2070 = vunpack.c.h.b16 %v564
        %v2071 = vunpack.c.l.b16 %v565
        %v2072 = vunpack.c.h.b16 %v565
        %v2073 = vunpack.c.l.b16 %v566
        %v2074 = vunpack.c.h.b16 %v566
        %v2075 = vunpack.c.l.b16 %v567
        %v2076 = vunpack.c.h.b16 %v567
        %v2077 = vunpack.c.l.b16 %v568
        %v2078 = vunpack.c.h.b16 %v568
        %v2079 = vunpack.c.l.b16 %v569
        %v2080 = vunpack.c.h.b16 %v569
        %v2081 = vunpack.c.l.b16 %v570
        %v2082 = vunpack.c.h.b16 %v570
        %v2083 = vunpack.c.l.b16 %v571
        %v2084 = vunpack.c.h.b16 %v571
        %v2085 = vunpack.c.l.b16 %v572
        %v2086 = vunpack.c.h.b16 %v572
        %v2087 = vunpack.c.l.b16 %v573
        %v2088 = vunpack.c.h.b16 %v573
        %v2089 = vunpack.c.l.b16 %v574
        %v2090 = vunpack.c.h.b16 %v574
        %v2091 = vunpack.c.l.b16 %v575
        %v2092 = vunpack.c.h.b16 %v575
        %v2093 = vunpack.c.l.b16 %v576
        %v2094 = vunpack.c.h.b16 %v576
        %v2095 = vunpack.c.l.b16 %v577
        %v2096 = vunpack.c.h.b16 %v577
        %v2097 = vunpack.c.l.b16 %v578
        %v2098 = vunpack.c.h.b16 %v578
        %v2099 = vunpack.c.l.b16 %v579
        %v2100 = vunpack.c.h.b16 %v579
        %v2101 = vunpack.c.l.b16 %v580
        %v2102 = vunpack.c.h.b16 %v580
        %v2103 = vunpack.c.l.b16 %v581
        %v2104 = vunpack.c.h.b16 %v581
        %v2105 = vunpack.c.l.b16 %v582
        %v2106 = vunpack.c.h.b16 %v582
        %v2107 = vunpack.c.l.b16 %v583
        %v2108 = vunpack.c.h.b16 %v583
        %v2109 = vunpack.c.l.b16 %v584
        %v2110 = vunpack.c.h.b16 %v584
        %v2111 = vpack.c.b16 %v1859, %v1855
        %v2112 = vpack.c.b16 %v1860, %v1856
        %v2113 = vpack.c.b16 %v1861, %v1857
        %v2114 = vpack.c.b16 %v1862, %v1858
        %v2115 = vpack.c.b16 %v1867, %v1863
        %v2116 = vpack.c.b16 %v1868, %v1864
        %v2117 = vpack.c.b16 %v1869, %v1865
        %v2118 = vpack.c.b16 %v1870, %v1866
        %v2119 = vpack.c.b16 %v1875, %v1871
        %v2120 = vpack.c.b16 %v1876, %v1872
        %v2121 = vpack.c.b16 %v1877, %v1873
        %v2122 = vpack.c.b16 %v1878, %v1874
        %v2123 = vpack.c.b16 %v1883, %v1879
        %v2124 = vpack.c.b16 %v1884, %v1880
        %v2125 = vpack.c.b16 %v1885, %v1881
        %v2126 = vpack.c.b16 %v1886, %v1882
        %v2127 = vpack.c.b16 %v1891, %v1887
        %v2128 = vpack.c.b16 %v1892, %v1888
        %v2129 = vpack.c.b16 %v1893, %v1889
        %v2130 = vpack.c.b16 %v1894, %v1890
        %v2131 = vpack.c.b16 %v1899, %v1895
        %v2132 = vpack.c.b16 %v1900, %v1896
        %v2133 = vpack.c.b16 %v1901, %v1897
        %v2134 = vpack.c.b16 %v1902, %v1898
        %v2135 = vpack.c.b16 %v1907, %v1903
        %v2136 = vpack.c.b16 %v1908, %v1904
        %v2137 = vpack.c.b16 %v1909, %v1905
        %v2138 = vpack.c.b16 %v1910, %v1906
        %v2139 = vpack.c.b16 %v1915, %v1911
        %v2140 = vpack.c.b16 %v1916, %v1912
        %v2141 = vpack.c.b16 %v1917, %v1913
        %v2142 = vpack.c.b16 %v1918, %v1914
        %v2143 = vpack.c.b16 %v1923, %v1919
        %v2144 = vpack.c.b16 %v1924, %v1920
        %v2145 = vpack.c.b16 %v1925, %v1921
        %v2146 = vpack.c.b16 %v1926, %v1922
        %v2147 = vpack.c.b16 %v1931, %v1927
        %v2148 = vpack.c.b16 %v1932, %v1928
        %v2149 = vpack.c.b16 %v1933, %v1929
        %v2150 = vpack.c.b16 %v1934, %v1930
        %v2151 = vpack.c.b16 %v1939, %v1935
        %v2152 = vpack.c.b16 %v1940, %v1936
        %v2153 = vpack.c.b16 %v1941, %v1937
        %v2154 = vpack.c.b16 %v1942, %v1938
        %v2155 = vpack.c.b16 %v1947, %v1943
        %v2156 = vpack.c.b16 %v1948, %v1944
        %v2157 = vpack.c.b16 %v1949, %v1945
        %v2158 = vpack.c.b16 %v1950, %v1946
        %v2159 = vpack.c.b16 %v1955, %v1951
        %v2160 = vpack.c.b16 %v1956, %v1952
        %v2161 = vpack.c.b16 %v1957, %v1953
        %v2162 = vpack.c.b16 %v1958, %v1954
        %v2163 = vpack.c.b16 %v1963, %v1959
        %v2164 = vpack.c.b16 %v1964, %v1960
        %v2165 = vpack.c.b16 %v1965, %v1961
        %v2166 = vpack.c.b16 %v1966, %v1962
        %v2167 = vpack.c.b16 %v1971, %v1967
        %v2168 = vpack.c.b16 %v1972, %v1968
        %v2169 = vpack.c.b16 %v1973, %v1969
        %v2170 = vpack.c.b16 %v1974, %v1970
        %v2171 = vpack.c.b16 %v1979, %v1975
        %v2172 = vpack.c.b16 %v1980, %v1976
        %v2173 = vpack.c.b16 %v1981, %v1977
        %v2174 = vpack.c.b16 %v1982, %v1978
        %v2175 = vpack.c.b16 %v1987, %v1983
        %v2176 = vpack.c.b16 %v1988, %v1984
        %v2177 = vpack.c.b16 %v1989, %v1985
        %v2178 = vpack.c.b16 %v1990, %v1986
        %v2179 = vpack.c.b16 %v1995, %v1991
        %v2180 = vpack.c.b16 %v1996, %v1992
        %v2181 = vpack.c.b16 %v1997, %v1993
        %v2182 = vpack.c.b16 %v1998, %v1994
        %v2183 = vpack.c.b16 %v2003, %v1999
        %v2184 = vpack.c.b16 %v2004, %v2000
        %v2185 = vpack.c.b16 %v2005, %v2001
        %v2186 = vpack.c.b16 %v2006, %v2002
        %v2187 = vpack.c.b16 %v2011, %v2007
        %v2188 = vpack.c.b16 %v2012, %v2008
        %v2189 = vpack.c.b16 %v2013, %v2009
        %v2190 = vpack.c.b16 %v2014, %v2010
        %v2191 = vpack.c.b16 %v2019, %v2015
        %v2192 = vpack.c.b16 %v2020, %v2016
        %v2193 = vpack.c.b16 %v2021, %v2017
        %v2194 = vpack.c.b16 %v2022, %v2018
        %v2195 = vpack.c.b16 %v2027, %v2023
        %v2196 = vpack.c.b16 %v2028, %v2024
        %v2197 = vpack.c.b16 %v2029, %v2025
        %v2198 = vpack.c.b16 %v2030, %v2026
        %v2199 = vpack.c.b16 %v2035, %v2031
        %v2200 = vpack.c.b16 %v2036, %v2032
        %v2201 = vpack.c.b16 %v2037, %v2033
        %v2202 = vpack.c.b16 %v2038, %v2034
        %v2203 = vpack.c.b16 %v2043, %v2039
        %v2204 = vpack.c.b16 %v2044, %v2040
        %v2205 = vpack.c.b16 %v2045, %v2041
        %v2206 = vpack.c.b16 %v2046, %v2042
        %v2207 = vpack.c.b16 %v2051, %v2047
        %v2208 = vpack.c.b16 %v2052, %v2048
        %v2209 = vpack.c.b16 %v2053, %v2049
        %v2210 = vpack.c.b16 %v2054, %v2050
        %v2211 = vpack.c.b16 %v2059, %v2055
        %v2212 = vpack.c.b16 %v2060, %v2056
        %v2213 = vpack.c.b16 %v2061, %v2057
        %v2214 = vpack.c.b16 %v2062, %v2058
        %v2215 = vpack.c.b16 %v2067, %v2063
        %v2216 = vpack.c.b16 %v2068, %v2064
        %v2217 = vpack.c.b16 %v2069, %v2065
        %v2218 = vpack.c.b16 %v2070, %v2066
        %v2219 = vpack.c.b16 %v2075, %v2071
        %v2220 = vpack.c.b16 %v2076, %v2072
        %v2221 = vpack.c.b16 %v2077, %v2073
        %v2222 = vpack.c.b16 %v2078, %v2074
        %v2223 = vpack.c.b16 %v2083, %v2079
        %v2224 = vpack.c.b16 %v2084, %v2080
        %v2225 = vpack.c.b16 %v2085, %v2081
        %v2226 = vpack.c.b16 %v2086, %v2082
        %v2227 = vpack.c.b16 %v2091, %v2087
        %v2228 = vpack.c.b16 %v2092, %v2088
        %v2229 = vpack.c.b16 %v2093, %v2089
        %v2230 = vpack.c.b16 %v2094, %v2090
        %v2231 = vpack.c.b16 %v2099, %v2095
        %v2232 = vpack.c.b16 %v2100, %v2096
        %v2233 = vpack.c.b16 %v2101, %v2097
        %v2234 = vpack.c.b16 %v2102, %v2098
        %v2235 = vpack.c.b16 %v2107, %v2103
        %v2236 = vpack.c.b16 %v2108, %v2104
        %v2237 = vpack.c.b16 %v2109, %v2105
        %v2238 = vpack.c.b16 %v2110, %v2106
        %2367 = vmatpush.bf16.msra.mxu0 %v2139
        %2368 = vmatpush.bf16.msra.mxu0 %v2135
        %2369 = vmatpush.bf16.msra.mxu0 %v2131
        %2370 = vmatpush.bf16.msra.mxu0 %v2127
        %2371 = vmatpush.bf16.msra.mxu0 %v2123
        %2372 = vmatpush.bf16.msra.mxu0 %v2119
        %2373 = vmatpush.bf16.msra.mxu0 %v2115
        %2374 = vmatpush.bf16.msra.mxu0 %v2111
        %2375 = vmatmul.bf16.gmra.mxu0 %v449
        %v2376 = vpop.f32.mrf.mxu0
        %v2377 = vadd.f32 %v1503, %v2376
        %v2378 = vpop.f32.mrf.mxu0
        %v2379 = vadd.f32 %v1505, %v2378
        %2380 = vmatmul.bf16.gmra.mxu0 %v453
        %v2381 = vpop.f32.mrf.mxu0
        %v2382 = vadd.f32 %v1508, %v2381
        %v2383 = vpop.f32.mrf.mxu0
        %2384 = vdwg.mxu0
        %2385 = vmatpush.bf16.msra.mxu0 %v2171
        %2386 = vmatpush.bf16.msra.mxu0 %v2167
        %2387 = vmatpush.bf16.msra.mxu0 %v2163
        %2388 = vmatpush.bf16.msra.mxu0 %v2159
        %2389 = vmatpush.bf16.msra.mxu0 %v2155
        %2390 = vmatpush.bf16.msra.mxu0 %v2151
        %2391 = vmatpush.bf16.msra.mxu0 %v2147
        %2392 = vmatpush.bf16.msra.mxu0 %v2143
        %2393 = vmatmul.bf16.gmra.mxu0 %v450
        %v2394 = vpop.f32.mrf.mxu0
        %v2395 = vadd.f32 %v2377, %v2394
        %v2396 = vpop.f32.mrf.mxu0
        %v2397 = vadd.f32 %v2379, %v2396
        %2398 = vmatmul.bf16.gmra.mxu0 %v454
        %v2399 = vpop.f32.mrf.mxu0
        %v2400 = vadd.f32 %v2382, %v2399
        %v2401 = vpop.f32.mrf.mxu0
        %2402 = vdwg.mxu0
        %2403 = vmatpush.bf16.msra.mxu0 %v2203
        %2404 = vmatpush.bf16.msra.mxu0 %v2199
        %2405 = vmatpush.bf16.msra.mxu0 %v2195
        %2406 = vmatpush.bf16.msra.mxu0 %v2191
        %2407 = vmatpush.bf16.msra.mxu0 %v2187
        %2408 = vmatpush.bf16.msra.mxu0 %v2183
        %2409 = vmatpush.bf16.msra.mxu0 %v2179
        %2410 = vmatpush.bf16.msra.mxu0 %v2175
        %2411 = vmatmul.bf16.gmra.mxu0 %v451
        %v2412 = vpop.f32.mrf.mxu0
        %v2413 = vadd.f32 %v2395, %v2412
        %v2414 = vpop.f32.mrf.mxu0
        %v2415 = vadd.f32 %v2397, %v2414
        %2416 = vmatmul.bf16.gmra.mxu0 %v455
        %v2417 = vpop.f32.mrf.mxu0
        %v2418 = vadd.f32 %v2400, %v2417
        %v2419 = vpop.f32.mrf.mxu0
        %2420 = vdwg.mxu0
        %2421 = vmatpush.bf16.msra.mxu0 %v2235
        %2422 = vmatpush.bf16.msra.mxu0 %v2231
        %2423 = vmatpush.bf16.msra.mxu0 %v2227
        %2424 = vmatpush.bf16.msra.mxu0 %v2223
        %2425 = vmatpush.bf16.msra.mxu0 %v2219
        %2426 = vmatpush.bf16.msra.mxu0 %v2215
        %2427 = vmatpush.bf16.msra.mxu0 %v2211
        %2428 = vmatpush.bf16.msra.mxu0 %v2207
        %2429 = vmatmul.bf16.gmra.mxu0 %v452
        %v2430 = vpop.f32.mrf.mxu0
        %v2431 = vadd.f32 %v2413, %v2430
        %v2432 = vpop.f32.mrf.mxu0
        %v2433 = vadd.f32 %v2415, %v2432
        %2434 = vmatmul.bf16.gmra.mxu0 %v456
        %v2435 = vpop.f32.mrf.mxu0
        %v2436 = vadd.f32 %v2418, %v2435
        %v2437 = vpop.f32.mrf.mxu0
        %2438 = vdwg.mxu0
        %2439 = vmatpush.bf16.msra.mxu0 %v2140
        %2440 = vmatpush.bf16.msra.mxu0 %v2136
        %2441 = vmatpush.bf16.msra.mxu0 %v2132
        %2442 = vmatpush.bf16.msra.mxu0 %v2128
        %2443 = vmatpush.bf16.msra.mxu0 %v2124
        %2444 = vmatpush.bf16.msra.mxu0 %v2120
        %2445 = vmatpush.bf16.msra.mxu0 %v2116
        %2446 = vmatpush.bf16.msra.mxu0 %v2112
        %2447 = vmatmul.bf16.gmra.mxu0 %v449
        %v2448 = vpop.f32.mrf.mxu0
        %v2449 = vadd.f32 %v1575, %v2448
        %v2450 = vpop.f32.mrf.mxu0
        %v2451 = vadd.f32 %v1577, %v2450
        %2452 = vmatmul.bf16.gmra.mxu0 %v453
        %v2453 = vpop.f32.mrf.mxu0
        %v2454 = vadd.f32 %v1580, %v2453
        %v2455 = vpop.f32.mrf.mxu0
        %2456 = vdwg.mxu0
        %2457 = vmatpush.bf16.msra.mxu0 %v2172
        %2458 = vmatpush.bf16.msra.mxu0 %v2168
        %2459 = vmatpush.bf16.msra.mxu0 %v2164
        %2460 = vmatpush.bf16.msra.mxu0 %v2160
        %2461 = vmatpush.bf16.msra.mxu0 %v2156
        %2462 = vmatpush.bf16.msra.mxu0 %v2152
        %2463 = vmatpush.bf16.msra.mxu0 %v2148
        %2464 = vmatpush.bf16.msra.mxu0 %v2144
        %2465 = vmatmul.bf16.gmra.mxu0 %v450
        %v2466 = vpop.f32.mrf.mxu0
        %v2467 = vadd.f32 %v2449, %v2466
        %v2468 = vpop.f32.mrf.mxu0
        %v2469 = vadd.f32 %v2451, %v2468
        %2470 = vmatmul.bf16.gmra.mxu0 %v454
        %v2471 = vpop.f32.mrf.mxu0
        %v2472 = vadd.f32 %v2454, %v2471
        %v2473 = vpop.f32.mrf.mxu0
        %2474 = vdwg.mxu0
        %2475 = vmatpush.bf16.msra.mxu0 %v2204
        %2476 = vmatpush.bf16.msra.mxu0 %v2200
        %2477 = vmatpush.bf16.msra.mxu0 %v2196
        %2478 = vmatpush.bf16.msra.mxu0 %v2192
        %2479 = vmatpush.bf16.msra.mxu0 %v2188
        %2480 = vmatpush.bf16.msra.mxu0 %v2184
        %2481 = vmatpush.bf16.msra.mxu0 %v2180
        %2482 = vmatpush.bf16.msra.mxu0 %v2176
        %2483 = vmatmul.bf16.gmra.mxu0 %v451
        %v2484 = vpop.f32.mrf.mxu0
        %v2485 = vadd.f32 %v2467, %v2484
        %v2486 = vpop.f32.mrf.mxu0
        %v2487 = vadd.f32 %v2469, %v2486
        %2488 = vmatmul.bf16.gmra.mxu0 %v455
        %v2489 = vpop.f32.mrf.mxu0
        %v2490 = vadd.f32 %v2472, %v2489
        %v2491 = vpop.f32.mrf.mxu0
        %2492 = vdwg.mxu0
        %2493 = vmatpush.bf16.msra.mxu0 %v2236
        %2494 = vmatpush.bf16.msra.mxu0 %v2232
        %2495 = vmatpush.bf16.msra.mxu0 %v2228
        %2496 = vmatpush.bf16.msra.mxu0 %v2224
        %2497 = vmatpush.bf16.msra.mxu0 %v2220
        %2498 = vmatpush.bf16.msra.mxu0 %v2216
        %2499 = vmatpush.bf16.msra.mxu0 %v2212
        %2500 = vmatpush.bf16.msra.mxu0 %v2208
        %2501 = vmatmul.bf16.gmra.mxu0 %v452
        %v2502 = vpop.f32.mrf.mxu0
        %v2503 = vadd.f32 %v2485, %v2502
        %v2504 = vpop.f32.mrf.mxu0
        %v2505 = vadd.f32 %v2487, %v2504
        %2506 = vmatmul.bf16.gmra.mxu0 %v456
        %v2507 = vpop.f32.mrf.mxu0
        %v2508 = vadd.f32 %v2490, %v2507
        %v2509 = vpop.f32.mrf.mxu0
        %2510 = vdwg.mxu0
        %2511 = vmatpush.bf16.msra.mxu0 %v2141
        %2512 = vmatpush.bf16.msra.mxu0 %v2137
        %2513 = vmatpush.bf16.msra.mxu0 %v2133
        %2514 = vmatpush.bf16.msra.mxu0 %v2129
        %2515 = vmatpush.bf16.msra.mxu0 %v2125
        %2516 = vmatpush.bf16.msra.mxu0 %v2121
        %2517 = vmatpush.bf16.msra.mxu0 %v2117
        %2518 = vmatpush.bf16.msra.mxu0 %v2113
        %2519 = vmatmul.bf16.gmra.mxu0 %v449
        %v2520 = vpop.f32.mrf.mxu0
        %v2521 = vadd.f32 %v1647, %v2520
        %v2522 = vpop.f32.mrf.mxu0
        %v2523 = vadd.f32 %v1649, %v2522
        %2524 = vmatmul.bf16.gmra.mxu0 %v453
        %v2525 = vpop.f32.mrf.mxu0
        %v2526 = vadd.f32 %v1652, %v2525
        %v2527 = vpop.f32.mrf.mxu0
        %2528 = vdwg.mxu0
        %2529 = vmatpush.bf16.msra.mxu0 %v2173
        %2530 = vmatpush.bf16.msra.mxu0 %v2169
        %2531 = vmatpush.bf16.msra.mxu0 %v2165
        %2532 = vmatpush.bf16.msra.mxu0 %v2161
        %2533 = vmatpush.bf16.msra.mxu0 %v2157
        %2534 = vmatpush.bf16.msra.mxu0 %v2153
        %2535 = vmatpush.bf16.msra.mxu0 %v2149
        %2536 = vmatpush.bf16.msra.mxu0 %v2145
        %2537 = vmatmul.bf16.gmra.mxu0 %v450
        %v2538 = vpop.f32.mrf.mxu0
        %v2539 = vadd.f32 %v2521, %v2538
        %v2540 = vpop.f32.mrf.mxu0
        %v2541 = vadd.f32 %v2523, %v2540
        %2542 = vmatmul.bf16.gmra.mxu0 %v454
        %v2543 = vpop.f32.mrf.mxu0
        %v2544 = vadd.f32 %v2526, %v2543
        %v2545 = vpop.f32.mrf.mxu0
        %2546 = vdwg.mxu0
        %2547 = vmatpush.bf16.msra.mxu0 %v2205
        %2548 = vmatpush.bf16.msra.mxu0 %v2201
        %2549 = vmatpush.bf16.msra.mxu0 %v2197
        %2550 = vmatpush.bf16.msra.mxu0 %v2193
        %2551 = vmatpush.bf16.msra.mxu0 %v2189
        %2552 = vmatpush.bf16.msra.mxu0 %v2185
        %2553 = vmatpush.bf16.msra.mxu0 %v2181
        %2554 = vmatpush.bf16.msra.mxu0 %v2177
        %2555 = vmatmul.bf16.gmra.mxu0 %v451
        %v2556 = vpop.f32.mrf.mxu0
        %v2557 = vadd.f32 %v2539, %v2556
        %v2558 = vpop.f32.mrf.mxu0
        %v2559 = vadd.f32 %v2541, %v2558
        %2560 = vmatmul.bf16.gmra.mxu0 %v455
        %v2561 = vpop.f32.mrf.mxu0
        %v2562 = vadd.f32 %v2544, %v2561
        %v2563 = vpop.f32.mrf.mxu0
        %2564 = vdwg.mxu0
        %2565 = vmatpush.bf16.msra.mxu0 %v2237
        %2566 = vmatpush.bf16.msra.mxu0 %v2233
        %2567 = vmatpush.bf16.msra.mxu0 %v2229
        %2568 = vmatpush.bf16.msra.mxu0 %v2225
        %2569 = vmatpush.bf16.msra.mxu0 %v2221
        %2570 = vmatpush.bf16.msra.mxu0 %v2217
        %2571 = vmatpush.bf16.msra.mxu0 %v2213
        %2572 = vmatpush.bf16.msra.mxu0 %v2209
        %2573 = vmatmul.bf16.gmra.mxu0 %v452
        %v2574 = vpop.f32.mrf.mxu0
        %v2575 = vadd.f32 %v2557, %v2574
        %v2576 = vpop.f32.mrf.mxu0
        %v2577 = vadd.f32 %v2559, %v2576
        %2578 = vmatmul.bf16.gmra.mxu0 %v456
        %v2579 = vpop.f32.mrf.mxu0
        %v2580 = vadd.f32 %v2562, %v2579
        %v2581 = vpop.f32.mrf.mxu0
        %2582 = vdwg.mxu0
        %2583 = vmatpush.bf16.msra.mxu0 %v2142
        %2584 = vmatpush.bf16.msra.mxu0 %v2138
        %2585 = vmatpush.bf16.msra.mxu0 %v2134
        %2586 = vmatpush.bf16.msra.mxu0 %v2130
        %2587 = vmatpush.bf16.msra.mxu0 %v2126
        %2588 = vmatpush.bf16.msra.mxu0 %v2122
        %2589 = vmatpush.bf16.msra.mxu0 %v2118
        %2590 = vmatpush.bf16.msra.mxu0 %v2114
        %2591 = vmatmul.bf16.gmra.mxu0 %v449
        %v2592 = vpop.f32.mrf.mxu0
        %v2593 = vadd.f32 %v1719, %v2592
        %v2594 = vpop.f32.mrf.mxu0
        %v2595 = vadd.f32 %v1721, %v2594
        %2596 = vmatmul.bf16.gmra.mxu0 %v453
        %v2597 = vpop.f32.mrf.mxu0
        %v2598 = vadd.f32 %v1724, %v2597
        %v2599 = vpop.f32.mrf.mxu0
        %2600 = vdwg.mxu0
        %2601 = vmatpush.bf16.msra.mxu0 %v2174
        %2602 = vmatpush.bf16.msra.mxu0 %v2170
        %2603 = vmatpush.bf16.msra.mxu0 %v2166
        %2604 = vmatpush.bf16.msra.mxu0 %v2162
        %2605 = vmatpush.bf16.msra.mxu0 %v2158
        %2606 = vmatpush.bf16.msra.mxu0 %v2154
        %2607 = vmatpush.bf16.msra.mxu0 %v2150
        %2608 = vmatpush.bf16.msra.mxu0 %v2146
        %2609 = vmatmul.bf16.gmra.mxu0 %v450
        %v2610 = vpop.f32.mrf.mxu0
        %v2611 = vadd.f32 %v2593, %v2610
        %v2612 = vpop.f32.mrf.mxu0
        %v2613 = vadd.f32 %v2595, %v2612
        %2614 = vmatmul.bf16.gmra.mxu0 %v454
        %v2615 = vpop.f32.mrf.mxu0
        %v2616 = vadd.f32 %v2598, %v2615
        %v2617 = vpop.f32.mrf.mxu0
        %2618 = vdwg.mxu0
        %2619 = vmatpush.bf16.msra.mxu0 %v2206
        %2620 = vmatpush.bf16.msra.mxu0 %v2202
        %2621 = vmatpush.bf16.msra.mxu0 %v2198
        %2622 = vmatpush.bf16.msra.mxu0 %v2194
        %2623 = vmatpush.bf16.msra.mxu0 %v2190
        %2624 = vmatpush.bf16.msra.mxu0 %v2186
        %2625 = vmatpush.bf16.msra.mxu0 %v2182
        %2626 = vmatpush.bf16.msra.mxu0 %v2178
        %2627 = vmatmul.bf16.gmra.mxu0 %v451
        %v2628 = vpop.f32.mrf.mxu0
        %v2629 = vadd.f32 %v2611, %v2628
        %v2630 = vpop.f32.mrf.mxu0
        %v2631 = vadd.f32 %v2613, %v2630
        %2632 = vmatmul.bf16.gmra.mxu0 %v455
        %v2633 = vpop.f32.mrf.mxu0
        %v2634 = vadd.f32 %v2616, %v2633
        %v2635 = vpop.f32.mrf.mxu0
        %2636 = vdwg.mxu0
        %2637 = vmatpush.bf16.msra.mxu0 %v2238
        %2638 = vmatpush.bf16.msra.mxu0 %v2234
        %2639 = vmatpush.bf16.msra.mxu0 %v2230
        %2640 = vmatpush.bf16.msra.mxu0 %v2226
        %2641 = vmatpush.bf16.msra.mxu0 %v2222
        %2642 = vmatpush.bf16.msra.mxu0 %v2218
        %2643 = vmatpush.bf16.msra.mxu0 %v2214
        %2644 = vmatpush.bf16.msra.mxu0 %v2210
        %2645 = vmatmul.bf16.gmra.mxu0 %v452
        %v2646 = vpop.f32.mrf.mxu0
        %v2647 = vadd.f32 %v2629, %v2646
        %v2648 = vpop.f32.mrf.mxu0
        %v2649 = vadd.f32 %v2631, %v2648
        %2650 = vmatmul.bf16.gmra.mxu0 %v456
        %v2651 = vpop.f32.mrf.mxu0
        %v2652 = vadd.f32 %v2634, %v2651
        %v2653 = vpop.f32.mrf.mxu0
        %2654 = vdwg.mxu0
        %v2655 = vld [vmem:[%s436] sm:$0xfc]
        %v2656 = vld [vmem:[%s436 + $0x8] sm:$0xfc]
        %v2657 = vld [vmem:[%s436 + $0x10] sm:$0xfc]
        %v2658 = vld [vmem:[%s436 + $0x18] sm:$0xfc]
        %v2659 = vld [vmem:[%s436 + $0x40] sm:$0xf]
        %v2660 = vld [vmem:[%s436 + $0x48] sm:$0xf]
        %v2661 = vld [vmem:[%s436 + $0x50] sm:$0xf]
        %v2662 = vld [vmem:[%s436 + $0x58] sm:$0xf]
        %v2663 = vpack.c.bf16 %v441, %v2655
        %v2664 = vpack.c.bf16 %v442, %v2656
        %v2665 = vpack.c.bf16 %v443, %v2657
        %v2666 = vpack.c.bf16 %v444, %v2658
        %v2667 = vpack.c.bf16 %v2659, %v2659
        %v2668 = vpack.c.bf16 %v2660, %v2660
        %v2669 = vpack.c.bf16 %v2661, %v2661
        %v2670 = vpack.c.bf16 %v2662, %v2662
        %s2671 = scalar_lea.vmem [#allocation3], 2048
        %v2672 = vld [vmem:[%s2671] sm:$0xff]
        %v2673 = vld [vmem:[%s2671 + $0x8] sm:$0xff]
        %v2674 = vld [vmem:[%s2671 + $0x10] sm:$0xff]
        %v2675 = vld [vmem:[%s2671 + $0x18] sm:$0xff]
        %v2676 = vld [vmem:[%s2671 + $0x20] sm:$0xff]
        %v2677 = vld [vmem:[%s2671 + $0x28] sm:$0xff]
        %v2678 = vld [vmem:[%s2671 + $0x30] sm:$0xff]
        %v2679 = vld [vmem:[%s2671 + $0x38] sm:$0xff]
        %v2680 = vld [vmem:[%s2671 + $0x40] sm:$0xff]
        %v2681 = vld [vmem:[%s2671 + $0x48] sm:$0xff]
        %v2682 = vld [vmem:[%s2671 + $0x50] sm:$0xff]
        %v2683 = vld [vmem:[%s2671 + $0x58] sm:$0xff]
        %v2684 = vld [vmem:[%s2671 + $0x60] sm:$0xff]
        %v2685 = vld [vmem:[%s2671 + $0x68] sm:$0xff]
        %v2686 = vld [vmem:[%s2671 + $0x70] sm:$0xff]
        %v2687 = vld [vmem:[%s2671 + $0x78] sm:$0xff]
        %v2688 = vld [vmem:[%s2671 + $0x80] sm:$0xff]
        %v2689 = vld [vmem:[%s2671 + $0x88] sm:$0xff]
        %v2690 = vld [vmem:[%s2671 + $0x90] sm:$0xff]
        %v2691 = vld [vmem:[%s2671 + $0x98] sm:$0xff]
        %v2692 = vld [vmem:[%s2671 + $0xa0] sm:$0xff]
        %v2693 = vld [vmem:[%s2671 + $0xa8] sm:$0xff]
        %v2694 = vld [vmem:[%s2671 + $0xb0] sm:$0xff]
        %v2695 = vld [vmem:[%s2671 + $0xb8] sm:$0xff]
        %v2696 = vld [vmem:[%s2671 + $0xc0] sm:$0xff]
        %v2697 = vld [vmem:[%s2671 + $0xc8] sm:$0xff]
        %v2698 = vld [vmem:[%s2671 + $0xd0] sm:$0xff]
        %v2699 = vld [vmem:[%s2671 + $0xd8] sm:$0xff]
        %v2700 = vld [vmem:[%s2671 + $0xe0] sm:$0xff]
        %v2701 = vld [vmem:[%s2671 + $0xe8] sm:$0xff]
        %v2702 = vld [vmem:[%s2671 + $0xf0] sm:$0xff]
        %v2703 = vld [vmem:[%s2671 + $0xf8] sm:$0xff]
        %v2704 = vld [vmem:[%s2671 + $0x100] sm:$0xff]
        %v2705 = vld [vmem:[%s2671 + $0x108] sm:$0xff]
        %v2706 = vld [vmem:[%s2671 + $0x110] sm:$0xff]
        %v2707 = vld [vmem:[%s2671 + $0x118] sm:$0xff]
        %v2708 = vld [vmem:[%s2671 + $0x120] sm:$0xff]
        %v2709 = vld [vmem:[%s2671 + $0x128] sm:$0xff]
        %v2710 = vld [vmem:[%s2671 + $0x130] sm:$0xff]
        %v2711 = vld [vmem:[%s2671 + $0x138] sm:$0xff]
        %v2712 = vld [vmem:[%s2671 + $0x140] sm:$0xff]
        %v2713 = vld [vmem:[%s2671 + $0x148] sm:$0xff]
        %v2714 = vld [vmem:[%s2671 + $0x150] sm:$0xff]
        %v2715 = vld [vmem:[%s2671 + $0x158] sm:$0xff]
        %v2716 = vld [vmem:[%s2671 + $0x160] sm:$0xff]
        %v2717 = vld [vmem:[%s2671 + $0x168] sm:$0xff]
        %v2718 = vld [vmem:[%s2671 + $0x170] sm:$0xff]
        %v2719 = vld [vmem:[%s2671 + $0x178] sm:$0xff]
        %v2720 = vld [vmem:[%s2671 + $0x180] sm:$0xff]
        %v2721 = vld [vmem:[%s2671 + $0x188] sm:$0xff]
        %v2722 = vld [vmem:[%s2671 + $0x190] sm:$0xff]
        %v2723 = vld [vmem:[%s2671 + $0x198] sm:$0xff]
        %v2724 = vld [vmem:[%s2671 + $0x1a0] sm:$0xff]
        %v2725 = vld [vmem:[%s2671 + $0x1a8] sm:$0xff]
        %v2726 = vld [vmem:[%s2671 + $0x1b0] sm:$0xff]
        %v2727 = vld [vmem:[%s2671 + $0x1b8] sm:$0xff]
        %v2728 = vld [vmem:[%s2671 + $0x1c0] sm:$0xff]
        %v2729 = vld [vmem:[%s2671 + $0x1c8] sm:$0xff]
        %v2730 = vld [vmem:[%s2671 + $0x1d0] sm:$0xff]
        %v2731 = vld [vmem:[%s2671 + $0x1d8] sm:$0xff]
        %v2732 = vld [vmem:[%s2671 + $0x1e0] sm:$0xff]
        %v2733 = vld [vmem:[%s2671 + $0x1e8] sm:$0xff]
        %v2734 = vld [vmem:[%s2671 + $0x1f0] sm:$0xff]
        %v2735 = vld [vmem:[%s2671 + $0x1f8] sm:$0xff]
        %v2736 = vld [vmem:[%s2671 + $0x200] sm:$0xff]
        %v2737 = vld [vmem:[%s2671 + $0x208] sm:$0xff]
        %v2738 = vld [vmem:[%s2671 + $0x210] sm:$0xff]
        %v2739 = vld [vmem:[%s2671 + $0x218] sm:$0xff]
        %v2740 = vld [vmem:[%s2671 + $0x220] sm:$0xff]
        %v2741 = vld [vmem:[%s2671 + $0x228] sm:$0xff]
        %v2742 = vld [vmem:[%s2671 + $0x230] sm:$0xff]
        %v2743 = vld [vmem:[%s2671 + $0x238] sm:$0xff]
        %v2744 = vld [vmem:[%s2671 + $0x240] sm:$0xff]
        %v2745 = vld [vmem:[%s2671 + $0x248] sm:$0xff]
        %v2746 = vld [vmem:[%s2671 + $0x250] sm:$0xff]
        %v2747 = vld [vmem:[%s2671 + $0x258] sm:$0xff]
        %v2748 = vld [vmem:[%s2671 + $0x260] sm:$0xff]
        %v2749 = vld [vmem:[%s2671 + $0x268] sm:$0xff]
        %v2750 = vld [vmem:[%s2671 + $0x270] sm:$0xff]
        %v2751 = vld [vmem:[%s2671 + $0x278] sm:$0xff]
        %v2752 = vld [vmem:[%s2671 + $0x280] sm:$0xff]
        %v2753 = vld [vmem:[%s2671 + $0x288] sm:$0xff]
        %v2754 = vld [vmem:[%s2671 + $0x290] sm:$0xff]
        %v2755 = vld [vmem:[%s2671 + $0x298] sm:$0xff]
        %v2756 = vld [vmem:[%s2671 + $0x2a0] sm:$0xff]
        %v2757 = vld [vmem:[%s2671 + $0x2a8] sm:$0xff]
        %v2758 = vld [vmem:[%s2671 + $0x2b0] sm:$0xff]
        %v2759 = vld [vmem:[%s2671 + $0x2b8] sm:$0xff]
        %v2760 = vld [vmem:[%s2671 + $0x2c0] sm:$0xff]
        %v2761 = vld [vmem:[%s2671 + $0x2c8] sm:$0xff]
        %v2762 = vld [vmem:[%s2671 + $0x2d0] sm:$0xff]
        %v2763 = vld [vmem:[%s2671 + $0x2d8] sm:$0xff]
        %v2764 = vld [vmem:[%s2671 + $0x2e0] sm:$0xff]
        %v2765 = vld [vmem:[%s2671 + $0x2e8] sm:$0xff]
        %v2766 = vld [vmem:[%s2671 + $0x2f0] sm:$0xff]
        %v2767 = vld [vmem:[%s2671 + $0x2f8] sm:$0xff]
        %v2768 = vld [vmem:[%s2671 + $0x300] sm:$0xff]
        %v2769 = vld [vmem:[%s2671 + $0x308] sm:$0xff]
        %v2770 = vld [vmem:[%s2671 + $0x310] sm:$0xff]
        %v2771 = vld [vmem:[%s2671 + $0x318] sm:$0xff]
        %v2772 = vld [vmem:[%s2671 + $0x320] sm:$0xff]
        %v2773 = vld [vmem:[%s2671 + $0x328] sm:$0xff]
        %v2774 = vld [vmem:[%s2671 + $0x330] sm:$0xff]
        %v2775 = vld [vmem:[%s2671 + $0x338] sm:$0xff]
        %v2776 = vld [vmem:[%s2671 + $0x340] sm:$0xff]
        %v2777 = vld [vmem:[%s2671 + $0x348] sm:$0xff]
        %v2778 = vld [vmem:[%s2671 + $0x350] sm:$0xff]
        %v2779 = vld [vmem:[%s2671 + $0x358] sm:$0xff]
        %v2780 = vld [vmem:[%s2671 + $0x360] sm:$0xff]
        %v2781 = vld [vmem:[%s2671 + $0x368] sm:$0xff]
        %v2782 = vld [vmem:[%s2671 + $0x370] sm:$0xff]
        %v2783 = vld [vmem:[%s2671 + $0x378] sm:$0xff]
        %v2784 = vld [vmem:[%s2671 + $0x380] sm:$0xff]
        %v2785 = vld [vmem:[%s2671 + $0x388] sm:$0xff]
        %v2786 = vld [vmem:[%s2671 + $0x390] sm:$0xff]
        %v2787 = vld [vmem:[%s2671 + $0x398] sm:$0xff]
        %v2788 = vld [vmem:[%s2671 + $0x3a0] sm:$0xff]
        %v2789 = vld [vmem:[%s2671 + $0x3a8] sm:$0xff]
        %v2790 = vld [vmem:[%s2671 + $0x3b0] sm:$0xff]
        %v2791 = vld [vmem:[%s2671 + $0x3b8] sm:$0xff]
        %v2792 = vld [vmem:[%s2671 + $0x3c0] sm:$0xff]
        %v2793 = vld [vmem:[%s2671 + $0x3c8] sm:$0xff]
        %v2794 = vld [vmem:[%s2671 + $0x3d0] sm:$0xff]
        %v2795 = vld [vmem:[%s2671 + $0x3d8] sm:$0xff]
        %v2796 = vld [vmem:[%s2671 + $0x3e0] sm:$0xff]
        %v2797 = vld [vmem:[%s2671 + $0x3e8] sm:$0xff]
        %v2798 = vld [vmem:[%s2671 + $0x3f0] sm:$0xff]
        %v2799 = vld [vmem:[%s2671 + $0x3f8] sm:$0xff]
        %vm2808 = vcmask 1046528
        %v2809 = vrot.slane %v2663, 1
        %v2810 = vrot.slane %v2667, 1
        %v2811 = vsel %vm2808, %v2809, %v2810
        %v2812 = vrot.slane %v2664, 1
        %v2813 = vrot.slane %v2668, 1
        %v2814 = vsel %vm2808, %v2812, %v2813
        %v2815 = vrot.slane %v2665, 1
        %v2816 = vrot.slane %v2669, 1
        %v2817 = vsel %vm2808, %v2815, %v2816
        %v2818 = vrot.slane %v2666, 1
        %v2819 = vrot.slane %v2670, 1
        %v2820 = vsel %vm2808, %v2818, %v2819
        %v2957 = vunpack.c.l.b16 %v2672
        %v2958 = vunpack.c.h.b16 %v2672
        %v2959 = vunpack.c.l.b16 %v2673
        %v2960 = vunpack.c.h.b16 %v2673
        %v2961 = vunpack.c.l.b16 %v2674
        %v2962 = vunpack.c.h.b16 %v2674
        %v2963 = vunpack.c.l.b16 %v2675
        %v2964 = vunpack.c.h.b16 %v2675
        %v2965 = vunpack.c.l.b16 %v2676
        %v2966 = vunpack.c.h.b16 %v2676
        %v2967 = vunpack.c.l.b16 %v2677
        %v2968 = vunpack.c.h.b16 %v2677
        %v2969 = vunpack.c.l.b16 %v2678
        %v2970 = vunpack.c.h.b16 %v2678
        %v2971 = vunpack.c.l.b16 %v2679
        %v2972 = vunpack.c.h.b16 %v2679
        %v2973 = vunpack.c.l.b16 %v2680
        %v2974 = vunpack.c.h.b16 %v2680
        %v2975 = vunpack.c.l.b16 %v2681
        %v2976 = vunpack.c.h.b16 %v2681
        %v2977 = vunpack.c.l.b16 %v2682
        %v2978 = vunpack.c.h.b16 %v2682
        %v2979 = vunpack.c.l.b16 %v2683
        %v2980 = vunpack.c.h.b16 %v2683
        %v2981 = vunpack.c.l.b16 %v2684
        %v2982 = vunpack.c.h.b16 %v2684
        %v2983 = vunpack.c.l.b16 %v2685
        %v2984 = vunpack.c.h.b16 %v2685
        %v2985 = vunpack.c.l.b16 %v2686
        %v2986 = vunpack.c.h.b16 %v2686
        %v2987 = vunpack.c.l.b16 %v2687
        %v2988 = vunpack.c.h.b16 %v2687
        %v2989 = vunpack.c.l.b16 %v2688
        %v2990 = vunpack.c.h.b16 %v2688
        %v2991 = vunpack.c.l.b16 %v2689
        %v2992 = vunpack.c.h.b16 %v2689
        %v2993 = vunpack.c.l.b16 %v2690
        %v2994 = vunpack.c.h.b16 %v2690
        %v2995 = vunpack.c.l.b16 %v2691
        %v2996 = vunpack.c.h.b16 %v2691
        %v2997 = vunpack.c.l.b16 %v2692
        %v2998 = vunpack.c.h.b16 %v2692
        %v2999 = vunpack.c.l.b16 %v2693
        %v3000 = vunpack.c.h.b16 %v2693
        %v3001 = vunpack.c.l.b16 %v2694
        %v3002 = vunpack.c.h.b16 %v2694
        %v3003 = vunpack.c.l.b16 %v2695
        %v3004 = vunpack.c.h.b16 %v2695
        %v3005 = vunpack.c.l.b16 %v2696
        %v3006 = vunpack.c.h.b16 %v2696
        %v3007 = vunpack.c.l.b16 %v2697
        %v3008 = vunpack.c.h.b16 %v2697
        %v3009 = vunpack.c.l.b16 %v2698
        %v3010 = vunpack.c.h.b16 %v2698
        %v3011 = vunpack.c.l.b16 %v2699
        %v3012 = vunpack.c.h.b16 %v2699
        %v3013 = vunpack.c.l.b16 %v2700
        %v3014 = vunpack.c.h.b16 %v2700
        %v3015 = vunpack.c.l.b16 %v2701
        %v3016 = vunpack.c.h.b16 %v2701
        %v3017 = vunpack.c.l.b16 %v2702
        %v3018 = vunpack.c.h.b16 %v2702
        %v3019 = vunpack.c.l.b16 %v2703
        %v3020 = vunpack.c.h.b16 %v2703
        %v3021 = vunpack.c.l.b16 %v2704
        %v3022 = vunpack.c.h.b16 %v2704
        %v3023 = vunpack.c.l.b16 %v2705
        %v3024 = vunpack.c.h.b16 %v2705
        %v3025 = vunpack.c.l.b16 %v2706
        %v3026 = vunpack.c.h.b16 %v2706
        %v3027 = vunpack.c.l.b16 %v2707
        %v3028 = vunpack.c.h.b16 %v2707
        %v3029 = vunpack.c.l.b16 %v2708
        %v3030 = vunpack.c.h.b16 %v2708
        %v3031 = vunpack.c.l.b16 %v2709
        %v3032 = vunpack.c.h.b16 %v2709
        %v3033 = vunpack.c.l.b16 %v2710
        %v3034 = vunpack.c.h.b16 %v2710
        %v3035 = vunpack.c.l.b16 %v2711
        %v3036 = vunpack.c.h.b16 %v2711
        %v3037 = vunpack.c.l.b16 %v2712
        %v3038 = vunpack.c.h.b16 %v2712
        %v3039 = vunpack.c.l.b16 %v2713
        %v3040 = vunpack.c.h.b16 %v2713
        %v3041 = vunpack.c.l.b16 %v2714
        %v3042 = vunpack.c.h.b16 %v2714
        %v3043 = vunpack.c.l.b16 %v2715
        %v3044 = vunpack.c.h.b16 %v2715
        %v3045 = vunpack.c.l.b16 %v2716
        %v3046 = vunpack.c.h.b16 %v2716
        %v3047 = vunpack.c.l.b16 %v2717
        %v3048 = vunpack.c.h.b16 %v2717
        %v3049 = vunpack.c.l.b16 %v2718
        %v3050 = vunpack.c.h.b16 %v2718
        %v3051 = vunpack.c.l.b16 %v2719
        %v3052 = vunpack.c.h.b16 %v2719
        %v3053 = vunpack.c.l.b16 %v2720
        %v3054 = vunpack.c.h.b16 %v2720
        %v3055 = vunpack.c.l.b16 %v2721
        %v3056 = vunpack.c.h.b16 %v2721
        %v3057 = vunpack.c.l.b16 %v2722
        %v3058 = vunpack.c.h.b16 %v2722
        %v3059 = vunpack.c.l.b16 %v2723
        %v3060 = vunpack.c.h.b16 %v2723
        %v3061 = vunpack.c.l.b16 %v2724
        %v3062 = vunpack.c.h.b16 %v2724
        %v3063 = vunpack.c.l.b16 %v2725
        %v3064 = vunpack.c.h.b16 %v2725
        %v3065 = vunpack.c.l.b16 %v2726
        %v3066 = vunpack.c.h.b16 %v2726
        %v3067 = vunpack.c.l.b16 %v2727
        %v3068 = vunpack.c.h.b16 %v2727
        %v3069 = vunpack.c.l.b16 %v2728
        %v3070 = vunpack.c.h.b16 %v2728
        %v3071 = vunpack.c.l.b16 %v2729
        %v3072 = vunpack.c.h.b16 %v2729
        %v3073 = vunpack.c.l.b16 %v2730
        %v3074 = vunpack.c.h.b16 %v2730
        %v3075 = vunpack.c.l.b16 %v2731
        %v3076 = vunpack.c.h.b16 %v2731
        %v3077 = vunpack.c.l.b16 %v2732
        %v3078 = vunpack.c.h.b16 %v2732
        %v3079 = vunpack.c.l.b16 %v2733
        %v3080 = vunpack.c.h.b16 %v2733
        %v3081 = vunpack.c.l.b16 %v2734
        %v3082 = vunpack.c.h.b16 %v2734
        %v3083 = vunpack.c.l.b16 %v2735
        %v3084 = vunpack.c.h.b16 %v2735
        %v3085 = vunpack.c.l.b16 %v2736
        %v3086 = vunpack.c.h.b16 %v2736
        %v3087 = vunpack.c.l.b16 %v2737
        %v3088 = vunpack.c.h.b16 %v2737
        %v3089 = vunpack.c.l.b16 %v2738
        %v3090 = vunpack.c.h.b16 %v2738
        %v3091 = vunpack.c.l.b16 %v2739
        %v3092 = vunpack.c.h.b16 %v2739
        %v3093 = vunpack.c.l.b16 %v2740
        %v3094 = vunpack.c.h.b16 %v2740
        %v3095 = vunpack.c.l.b16 %v2741
        %v3096 = vunpack.c.h.b16 %v2741
        %v3097 = vunpack.c.l.b16 %v2742
        %v3098 = vunpack.c.h.b16 %v2742
        %v3099 = vunpack.c.l.b16 %v2743
        %v3100 = vunpack.c.h.b16 %v2743
        %v3101 = vunpack.c.l.b16 %v2744
        %v3102 = vunpack.c.h.b16 %v2744
        %v3103 = vunpack.c.l.b16 %v2745
        %v3104 = vunpack.c.h.b16 %v2745
        %v3105 = vunpack.c.l.b16 %v2746
        %v3106 = vunpack.c.h.b16 %v2746
        %v3107 = vunpack.c.l.b16 %v2747
        %v3108 = vunpack.c.h.b16 %v2747
        %v3109 = vunpack.c.l.b16 %v2748
        %v3110 = vunpack.c.h.b16 %v2748
        %v3111 = vunpack.c.l.b16 %v2749
        %v3112 = vunpack.c.h.b16 %v2749
        %v3113 = vunpack.c.l.b16 %v2750
        %v3114 = vunpack.c.h.b16 %v2750
        %v3115 = vunpack.c.l.b16 %v2751
        %v3116 = vunpack.c.h.b16 %v2751
        %v3117 = vunpack.c.l.b16 %v2752
        %v3118 = vunpack.c.h.b16 %v2752
        %v3119 = vunpack.c.l.b16 %v2753
        %v3120 = vunpack.c.h.b16 %v2753
        %v3121 = vunpack.c.l.b16 %v2754
        %v3122 = vunpack.c.h.b16 %v2754
        %v3123 = vunpack.c.l.b16 %v2755
        %v3124 = vunpack.c.h.b16 %v2755
        %v3125 = vunpack.c.l.b16 %v2756
        %v3126 = vunpack.c.h.b16 %v2756
        %v3127 = vunpack.c.l.b16 %v2757
        %v3128 = vunpack.c.h.b16 %v2757
        %v3129 = vunpack.c.l.b16 %v2758
        %v3130 = vunpack.c.h.b16 %v2758
        %v3131 = vunpack.c.l.b16 %v2759
        %v3132 = vunpack.c.h.b16 %v2759
        %v3133 = vunpack.c.l.b16 %v2760
        %v3134 = vunpack.c.h.b16 %v2760
        %v3135 = vunpack.c.l.b16 %v2761
        %v3136 = vunpack.c.h.b16 %v2761
        %v3137 = vunpack.c.l.b16 %v2762
        %v3138 = vunpack.c.h.b16 %v2762
        %v3139 = vunpack.c.l.b16 %v2763
        %v3140 = vunpack.c.h.b16 %v2763
        %v3141 = vunpack.c.l.b16 %v2764
        %v3142 = vunpack.c.h.b16 %v2764
        %v3143 = vunpack.c.l.b16 %v2765
        %v3144 = vunpack.c.h.b16 %v2765
        %v3145 = vunpack.c.l.b16 %v2766
        %v3146 = vunpack.c.h.b16 %v2766
        %v3147 = vunpack.c.l.b16 %v2767
        %v3148 = vunpack.c.h.b16 %v2767
        %v3149 = vunpack.c.l.b16 %v2768
        %v3150 = vunpack.c.h.b16 %v2768
        %v3151 = vunpack.c.l.b16 %v2769
        %v3152 = vunpack.c.h.b16 %v2769
        %v3153 = vunpack.c.l.b16 %v2770
        %v3154 = vunpack.c.h.b16 %v2770
        %v3155 = vunpack.c.l.b16 %v2771
        %v3156 = vunpack.c.h.b16 %v2771
        %v3157 = vunpack.c.l.b16 %v2772
        %v3158 = vunpack.c.h.b16 %v2772
        %v3159 = vunpack.c.l.b16 %v2773
        %v3160 = vunpack.c.h.b16 %v2773
        %v3161 = vunpack.c.l.b16 %v2774
        %v3162 = vunpack.c.h.b16 %v2774
        %v3163 = vunpack.c.l.b16 %v2775
        %v3164 = vunpack.c.h.b16 %v2775
        %v3165 = vunpack.c.l.b16 %v2776
        %v3166 = vunpack.c.h.b16 %v2776
        %v3167 = vunpack.c.l.b16 %v2777
        %v3168 = vunpack.c.h.b16 %v2777
        %v3169 = vunpack.c.l.b16 %v2778
        %v3170 = vunpack.c.h.b16 %v2778
        %v3171 = vunpack.c.l.b16 %v2779
        %v3172 = vunpack.c.h.b16 %v2779
        %v3173 = vunpack.c.l.b16 %v2780
        %v3174 = vunpack.c.h.b16 %v2780
        %v3175 = vunpack.c.l.b16 %v2781
        %v3176 = vunpack.c.h.b16 %v2781
        %v3177 = vunpack.c.l.b16 %v2782
        %v3178 = vunpack.c.h.b16 %v2782
        %v3179 = vunpack.c.l.b16 %v2783
        %v3180 = vunpack.c.h.b16 %v2783
        %v3181 = vunpack.c.l.b16 %v2784
        %v3182 = vunpack.c.h.b16 %v2784
        %v3183 = vunpack.c.l.b16 %v2785
        %v3184 = vunpack.c.h.b16 %v2785
        %v3185 = vunpack.c.l.b16 %v2786
        %v3186 = vunpack.c.h.b16 %v2786
        %v3187 = vunpack.c.l.b16 %v2787
        %v3188 = vunpack.c.h.b16 %v2787
        %v3189 = vunpack.c.l.b16 %v2788
        %v3190 = vunpack.c.h.b16 %v2788
        %v3191 = vunpack.c.l.b16 %v2789
        %v3192 = vunpack.c.h.b16 %v2789
        %v3193 = vunpack.c.l.b16 %v2790
        %v3194 = vunpack.c.h.b16 %v2790
        %v3195 = vunpack.c.l.b16 %v2791
        %v3196 = vunpack.c.h.b16 %v2791
        %v3197 = vunpack.c.l.b16 %v2792
        %v3198 = vunpack.c.h.b16 %v2792
        %v3199 = vunpack.c.l.b16 %v2793
        %v3200 = vunpack.c.h.b16 %v2793
        %v3201 = vunpack.c.l.b16 %v2794
        %v3202 = vunpack.c.h.b16 %v2794
        %v3203 = vunpack.c.l.b16 %v2795
        %v3204 = vunpack.c.h.b16 %v2795
        %v3205 = vunpack.c.l.b16 %v2796
        %v3206 = vunpack.c.h.b16 %v2796
        %v3207 = vunpack.c.l.b16 %v2797
        %v3208 = vunpack.c.h.b16 %v2797
        %v3209 = vunpack.c.l.b16 %v2798
        %v3210 = vunpack.c.h.b16 %v2798
        %v3211 = vunpack.c.l.b16 %v2799
        %v3212 = vunpack.c.h.b16 %v2799
        %v3213 = vpack.c.b16 %v2961, %v2957
        %v3214 = vpack.c.b16 %v2962, %v2958
        %v3215 = vpack.c.b16 %v2963, %v2959
        %v3216 = vpack.c.b16 %v2964, %v2960
        %v3217 = vpack.c.b16 %v2969, %v2965
        %v3218 = vpack.c.b16 %v2970, %v2966
        %v3219 = vpack.c.b16 %v2971, %v2967
        %v3220 = vpack.c.b16 %v2972, %v2968
        %v3221 = vpack.c.b16 %v2977, %v2973
        %v3222 = vpack.c.b16 %v2978, %v2974
        %v3223 = vpack.c.b16 %v2979, %v2975
        %v3224 = vpack.c.b16 %v2980, %v2976
        %v3225 = vpack.c.b16 %v2985, %v2981
        %v3226 = vpack.c.b16 %v2986, %v2982
        %v3227 = vpack.c.b16 %v2987, %v2983
        %v3228 = vpack.c.b16 %v2988, %v2984
        %v3229 = vpack.c.b16 %v2993, %v2989
        %v3230 = vpack.c.b16 %v2994, %v2990
        %v3231 = vpack.c.b16 %v2995, %v2991
        %v3232 = vpack.c.b16 %v2996, %v2992
        %v3233 = vpack.c.b16 %v3001, %v2997
        %v3234 = vpack.c.b16 %v3002, %v2998
        %v3235 = vpack.c.b16 %v3003, %v2999
        %v3236 = vpack.c.b16 %v3004, %v3000
        %v3237 = vpack.c.b16 %v3009, %v3005
        %v3238 = vpack.c.b16 %v3010, %v3006
        %v3239 = vpack.c.b16 %v3011, %v3007
        %v3240 = vpack.c.b16 %v3012, %v3008
        %v3241 = vpack.c.b16 %v3017, %v3013
        %v3242 = vpack.c.b16 %v3018, %v3014
        %v3243 = vpack.c.b16 %v3019, %v3015
        %v3244 = vpack.c.b16 %v3020, %v3016
        %v3245 = vpack.c.b16 %v3025, %v3021
        %v3246 = vpack.c.b16 %v3026, %v3022
        %v3247 = vpack.c.b16 %v3027, %v3023
        %v3248 = vpack.c.b16 %v3028, %v3024
        %v3249 = vpack.c.b16 %v3033, %v3029
        %v3250 = vpack.c.b16 %v3034, %v3030
        %v3251 = vpack.c.b16 %v3035, %v3031
        %v3252 = vpack.c.b16 %v3036, %v3032
        %v3253 = vpack.c.b16 %v3041, %v3037
        %v3254 = vpack.c.b16 %v3042, %v3038
        %v3255 = vpack.c.b16 %v3043, %v3039
        %v3256 = vpack.c.b16 %v3044, %v3040
        %v3257 = vpack.c.b16 %v3049, %v3045
        %v3258 = vpack.c.b16 %v3050, %v3046
        %v3259 = vpack.c.b16 %v3051, %v3047
        %v3260 = vpack.c.b16 %v3052, %v3048
        %v3261 = vpack.c.b16 %v3057, %v3053
        %v3262 = vpack.c.b16 %v3058, %v3054
        %v3263 = vpack.c.b16 %v3059, %v3055
        %v3264 = vpack.c.b16 %v3060, %v3056
        %v3265 = vpack.c.b16 %v3065, %v3061
        %v3266 = vpack.c.b16 %v3066, %v3062
        %v3267 = vpack.c.b16 %v3067, %v3063
        %v3268 = vpack.c.b16 %v3068, %v3064
        %v3269 = vpack.c.b16 %v3073, %v3069
        %v3270 = vpack.c.b16 %v3074, %v3070
        %v3271 = vpack.c.b16 %v3075, %v3071
        %v3272 = vpack.c.b16 %v3076, %v3072
        %v3273 = vpack.c.b16 %v3081, %v3077
        %v3274 = vpack.c.b16 %v3082, %v3078
        %v3275 = vpack.c.b16 %v3083, %v3079
        %v3276 = vpack.c.b16 %v3084, %v3080
        %v3277 = vpack.c.b16 %v3089, %v3085
        %v3278 = vpack.c.b16 %v3090, %v3086
        %v3279 = vpack.c.b16 %v3091, %v3087
        %v3280 = vpack.c.b16 %v3092, %v3088
        %v3281 = vpack.c.b16 %v3097, %v3093
        %v3282 = vpack.c.b16 %v3098, %v3094
        %v3283 = vpack.c.b16 %v3099, %v3095
        %v3284 = vpack.c.b16 %v3100, %v3096
        %v3285 = vpack.c.b16 %v3105, %v3101
        %v3286 = vpack.c.b16 %v3106, %v3102
        %v3287 = vpack.c.b16 %v3107, %v3103
        %v3288 = vpack.c.b16 %v3108, %v3104
        %v3289 = vpack.c.b16 %v3113, %v3109
        %v3290 = vpack.c.b16 %v3114, %v3110
        %v3291 = vpack.c.b16 %v3115, %v3111
        %v3292 = vpack.c.b16 %v3116, %v3112
        %v3293 = vpack.c.b16 %v3121, %v3117
        %v3294 = vpack.c.b16 %v3122, %v3118
        %v3295 = vpack.c.b16 %v3123, %v3119
        %v3296 = vpack.c.b16 %v3124, %v3120
        %v3297 = vpack.c.b16 %v3129, %v3125
        %v3298 = vpack.c.b16 %v3130, %v3126
        %v3299 = vpack.c.b16 %v3131, %v3127
        %v3300 = vpack.c.b16 %v3132, %v3128
        %v3301 = vpack.c.b16 %v3137, %v3133
        %v3302 = vpack.c.b16 %v3138, %v3134
        %v3303 = vpack.c.b16 %v3139, %v3135
        %v3304 = vpack.c.b16 %v3140, %v3136
        %v3305 = vpack.c.b16 %v3145, %v3141
        %v3306 = vpack.c.b16 %v3146, %v3142
        %v3307 = vpack.c.b16 %v3147, %v3143
        %v3308 = vpack.c.b16 %v3148, %v3144
        %v3309 = vpack.c.b16 %v3153, %v3149
        %v3310 = vpack.c.b16 %v3154, %v3150
        %v3311 = vpack.c.b16 %v3155, %v3151
        %v3312 = vpack.c.b16 %v3156, %v3152
        %v3313 = vpack.c.b16 %v3161, %v3157
        %v3314 = vpack.c.b16 %v3162, %v3158
        %v3315 = vpack.c.b16 %v3163, %v3159
        %v3316 = vpack.c.b16 %v3164, %v3160
        %v3317 = vpack.c.b16 %v3169, %v3165
        %v3318 = vpack.c.b16 %v3170, %v3166
        %v3319 = vpack.c.b16 %v3171, %v3167
        %v3320 = vpack.c.b16 %v3172, %v3168
        %v3321 = vpack.c.b16 %v3177, %v3173
        %v3322 = vpack.c.b16 %v3178, %v3174
        %v3323 = vpack.c.b16 %v3179, %v3175
        %v3324 = vpack.c.b16 %v3180, %v3176
        %v3325 = vpack.c.b16 %v3185, %v3181
        %v3326 = vpack.c.b16 %v3186, %v3182
        %v3327 = vpack.c.b16 %v3187, %v3183
        %v3328 = vpack.c.b16 %v3188, %v3184
        %v3329 = vpack.c.b16 %v3193, %v3189
        %v3330 = vpack.c.b16 %v3194, %v3190
        %v3331 = vpack.c.b16 %v3195, %v3191
        %v3332 = vpack.c.b16 %v3196, %v3192
        %v3333 = vpack.c.b16 %v3201, %v3197
        %v3334 = vpack.c.b16 %v3202, %v3198
        %v3335 = vpack.c.b16 %v3203, %v3199
        %v3336 = vpack.c.b16 %v3204, %v3200
        %v3337 = vpack.c.b16 %v3209, %v3205
        %v3338 = vpack.c.b16 %v3210, %v3206
        %v3339 = vpack.c.b16 %v3211, %v3207
        %v3340 = vpack.c.b16 %v3212, %v3208
        %3469 = vmatpush.bf16.msra.mxu0 %v3241
        %3470 = vmatpush.bf16.msra.mxu0 %v3237
        %3471 = vmatpush.bf16.msra.mxu0 %v3233
        %3472 = vmatpush.bf16.msra.mxu0 %v3229
        %3473 = vmatpush.bf16.msra.mxu0 %v3225
        %3474 = vmatpush.bf16.msra.mxu0 %v3221
        %3475 = vmatpush.bf16.msra.mxu0 %v3217
        %3476 = vmatpush.bf16.msra.mxu0 %v3213
        %3477 = vmatmul.bf16.gmra.mxu0 %v2811
        %v3478 = vpop.f32.mrf.mxu0
        %v3479 = vadd.f32 0.0, %v3478
        %v3480 = vpop.f32.mrf.mxu0
        %v3481 = vadd.f32 0.0, %v3480
        %3482 = vmatmul.bf16.gmra.mxu0 %v2810
        %v3483 = vpop.f32.mrf.mxu0
        %v3484 = vadd.f32 0.0, %v3483
        %v3485 = vpop.f32.mrf.mxu0
        %3486 = vdwg.mxu0
        %3487 = vmatpush.bf16.msra.mxu0 %v3273
        %3488 = vmatpush.bf16.msra.mxu0 %v3269
        %3489 = vmatpush.bf16.msra.mxu0 %v3265
        %3490 = vmatpush.bf16.msra.mxu0 %v3261
        %3491 = vmatpush.bf16.msra.mxu0 %v3257
        %3492 = vmatpush.bf16.msra.mxu0 %v3253
        %3493 = vmatpush.bf16.msra.mxu0 %v3249
        %3494 = vmatpush.bf16.msra.mxu0 %v3245
        %3495 = vmatmul.bf16.gmra.mxu0 %v2814
        %v3496 = vpop.f32.mrf.mxu0
        %v3497 = vadd.f32 %v3479, %v3496
        %v3498 = vpop.f32.mrf.mxu0
        %v3499 = vadd.f32 %v3481, %v3498
        %3500 = vmatmul.bf16.gmra.mxu0 %v2813
        %v3501 = vpop.f32.mrf.mxu0
        %v3502 = vadd.f32 %v3484, %v3501
        %v3503 = vpop.f32.mrf.mxu0
        %3504 = vdwg.mxu0
        %3505 = vmatpush.bf16.msra.mxu0 %v3305
        %3506 = vmatpush.bf16.msra.mxu0 %v3301
        %3507 = vmatpush.bf16.msra.mxu0 %v3297
        %3508 = vmatpush.bf16.msra.mxu0 %v3293
        %3509 = vmatpush.bf16.msra.mxu0 %v3289
        %3510 = vmatpush.bf16.msra.mxu0 %v3285
        %3511 = vmatpush.bf16.msra.mxu0 %v3281
        %3512 = vmatpush.bf16.msra.mxu0 %v3277
        %3513 = vmatmul.bf16.gmra.mxu0 %v2817
        %v3514 = vpop.f32.mrf.mxu0
        %v3515 = vadd.f32 %v3497, %v3514
        %v3516 = vpop.f32.mrf.mxu0
        %v3517 = vadd.f32 %v3499, %v3516
        %3518 = vmatmul.bf16.gmra.mxu0 %v2816
        %v3519 = vpop.f32.mrf.mxu0
        %v3520 = vadd.f32 %v3502, %v3519
        %v3521 = vpop.f32.mrf.mxu0
        %3522 = vdwg.mxu0
        %3523 = vmatpush.bf16.msra.mxu0 %v3337
        %3524 = vmatpush.bf16.msra.mxu0 %v3333
        %3525 = vmatpush.bf16.msra.mxu0 %v3329
        %3526 = vmatpush.bf16.msra.mxu0 %v3325
        %3527 = vmatpush.bf16.msra.mxu0 %v3321
        %3528 = vmatpush.bf16.msra.mxu0 %v3317
        %3529 = vmatpush.bf16.msra.mxu0 %v3313
        %3530 = vmatpush.bf16.msra.mxu0 %v3309
        %3531 = vmatmul.bf16.gmra.mxu0 %v2820
        %v3532 = vpop.f32.mrf.mxu0
        %v3533 = vadd.f32 %v3515, %v3532
        %v3534 = vpop.f32.mrf.mxu0
        %v3535 = vadd.f32 %v3517, %v3534
        %3536 = vmatmul.bf16.gmra.mxu0 %v2819
        %v3537 = vpop.f32.mrf.mxu0
        %v3538 = vadd.f32 %v3520, %v3537
        %v3539 = vpop.f32.mrf.mxu0
        %3540 = vdwg.mxu0
        %3541 = vmatpush.bf16.msra.mxu0 %v3242
        %3542 = vmatpush.bf16.msra.mxu0 %v3238
        %3543 = vmatpush.bf16.msra.mxu0 %v3234
        %3544 = vmatpush.bf16.msra.mxu0 %v3230
        %3545 = vmatpush.bf16.msra.mxu0 %v3226
        %3546 = vmatpush.bf16.msra.mxu0 %v3222
        %3547 = vmatpush.bf16.msra.mxu0 %v3218
        %3548 = vmatpush.bf16.msra.mxu0 %v3214
        %3549 = vmatmul.bf16.gmra.mxu0 %v2811
        %v3550 = vpop.f32.mrf.mxu0
        %v3551 = vadd.f32 0.0, %v3550
        %v3552 = vpop.f32.mrf.mxu0
        %v3553 = vadd.f32 0.0, %v3552
        %3554 = vmatmul.bf16.gmra.mxu0 %v2810
        %v3555 = vpop.f32.mrf.mxu0
        %v3556 = vadd.f32 0.0, %v3555
        %v3557 = vpop.f32.mrf.mxu0
        %3558 = vdwg.mxu0
        %3559 = vmatpush.bf16.msra.mxu0 %v3274
        %3560 = vmatpush.bf16.msra.mxu0 %v3270
        %3561 = vmatpush.bf16.msra.mxu0 %v3266
        %3562 = vmatpush.bf16.msra.mxu0 %v3262
        %3563 = vmatpush.bf16.msra.mxu0 %v3258
        %3564 = vmatpush.bf16.msra.mxu0 %v3254
        %3565 = vmatpush.bf16.msra.mxu0 %v3250
        %3566 = vmatpush.bf16.msra.mxu0 %v3246
        %3567 = vmatmul.bf16.gmra.mxu0 %v2814
        %v3568 = vpop.f32.mrf.mxu0
        %v3569 = vadd.f32 %v3551, %v3568
        %v3570 = vpop.f32.mrf.mxu0
        %v3571 = vadd.f32 %v3553, %v3570
        %3572 = vmatmul.bf16.gmra.mxu0 %v2813
        %v3573 = vpop.f32.mrf.mxu0
        %v3574 = vadd.f32 %v3556, %v3573
        %v3575 = vpop.f32.mrf.mxu0
        %3576 = vdwg.mxu0
        %3577 = vmatpush.bf16.msra.mxu0 %v3306
        %3578 = vmatpush.bf16.msra.mxu0 %v3302
        %3579 = vmatpush.bf16.msra.mxu0 %v3298
        %3580 = vmatpush.bf16.msra.mxu0 %v3294
        %3581 = vmatpush.bf16.msra.mxu0 %v3290
        %3582 = vmatpush.bf16.msra.mxu0 %v3286
        %3583 = vmatpush.bf16.msra.mxu0 %v3282
        %3584 = vmatpush.bf16.msra.mxu0 %v3278
        %3585 = vmatmul.bf16.gmra.mxu0 %v2817
        %v3586 = vpop.f32.mrf.mxu0
        %v3587 = vadd.f32 %v3569, %v3586
        %v3588 = vpop.f32.mrf.mxu0
        %v3589 = vadd.f32 %v3571, %v3588
        %3590 = vmatmul.bf16.gmra.mxu0 %v2816
        %v3591 = vpop.f32.mrf.mxu0
        %v3592 = vadd.f32 %v3574, %v3591
        %v3593 = vpop.f32.mrf.mxu0
        %3594 = vdwg.mxu0
        %3595 = vmatpush.bf16.msra.mxu0 %v3338
        %3596 = vmatpush.bf16.msra.mxu0 %v3334
        %3597 = vmatpush.bf16.msra.mxu0 %v3330
        %3598 = vmatpush.bf16.msra.mxu0 %v3326
        %3599 = vmatpush.bf16.msra.mxu0 %v3322
        %3600 = vmatpush.bf16.msra.mxu0 %v3318
        %3601 = vmatpush.bf16.msra.mxu0 %v3314
        %3602 = vmatpush.bf16.msra.mxu0 %v3310
        %3603 = vmatmul.bf16.gmra.mxu0 %v2820
        %v3604 = vpop.f32.mrf.mxu0
        %v3605 = vadd.f32 %v3587, %v3604
        %v3606 = vpop.f32.mrf.mxu0
        %v3607 = vadd.f32 %v3589, %v3606
        %3608 = vmatmul.bf16.gmra.mxu0 %v2819
        %v3609 = vpop.f32.mrf.mxu0
        %v3610 = vadd.f32 %v3592, %v3609
        %v3611 = vpop.f32.mrf.mxu0
        %3612 = vdwg.mxu0
        %3613 = vmatpush.bf16.msra.mxu0 %v3243
        %3614 = vmatpush.bf16.msra.mxu0 %v3239
        %3615 = vmatpush.bf16.msra.mxu0 %v3235
        %3616 = vmatpush.bf16.msra.mxu0 %v3231
        %3617 = vmatpush.bf16.msra.mxu0 %v3227
        %3618 = vmatpush.bf16.msra.mxu0 %v3223
        %3619 = vmatpush.bf16.msra.mxu0 %v3219
        %3620 = vmatpush.bf16.msra.mxu0 %v3215
        %3621 = vmatmul.bf16.gmra.mxu0 %v2811
        %v3622 = vpop.f32.mrf.mxu0
        %v3623 = vadd.f32 0.0, %v3622
        %v3624 = vpop.f32.mrf.mxu0
        %v3625 = vadd.f32 0.0, %v3624
        %3626 = vmatmul.bf16.gmra.mxu0 %v2810
        %v3627 = vpop.f32.mrf.mxu0
        %v3628 = vadd.f32 0.0, %v3627
        %v3629 = vpop.f32.mrf.mxu0
        %3630 = vdwg.mxu0
        %3631 = vmatpush.bf16.msra.mxu0 %v3275
        %3632 = vmatpush.bf16.msra.mxu0 %v3271
        %3633 = vmatpush.bf16.msra.mxu0 %v3267
        %3634 = vmatpush.bf16.msra.mxu0 %v3263
        %3635 = vmatpush.bf16.msra.mxu0 %v3259
        %3636 = vmatpush.bf16.msra.mxu0 %v3255
        %3637 = vmatpush.bf16.msra.mxu0 %v3251
        %3638 = vmatpush.bf16.msra.mxu0 %v3247
        %3639 = vmatmul.bf16.gmra.mxu0 %v2814
        %v3640 = vpop.f32.mrf.mxu0
        %v3641 = vadd.f32 %v3623, %v3640
        %v3642 = vpop.f32.mrf.mxu0
        %v3643 = vadd.f32 %v3625, %v3642
        %3644 = vmatmul.bf16.gmra.mxu0 %v2813
        %v3645 = vpop.f32.mrf.mxu0
        %v3646 = vadd.f32 %v3628, %v3645
        %v3647 = vpop.f32.mrf.mxu0
        %3648 = vdwg.mxu0
        %3649 = vmatpush.bf16.msra.mxu0 %v3307
        %3650 = vmatpush.bf16.msra.mxu0 %v3303
        %3651 = vmatpush.bf16.msra.mxu0 %v3299
        %3652 = vmatpush.bf16.msra.mxu0 %v3295
        %3653 = vmatpush.bf16.msra.mxu0 %v3291
        %3654 = vmatpush.bf16.msra.mxu0 %v3287
        %3655 = vmatpush.bf16.msra.mxu0 %v3283
        %3656 = vmatpush.bf16.msra.mxu0 %v3279
        %3657 = vmatmul.bf16.gmra.mxu0 %v2817
        %v3658 = vpop.f32.mrf.mxu0
        %v3659 = vadd.f32 %v3641, %v3658
        %v3660 = vpop.f32.mrf.mxu0
        %v3661 = vadd.f32 %v3643, %v3660
        %3662 = vmatmul.bf16.gmra.mxu0 %v2816
        %v3663 = vpop.f32.mrf.mxu0
        %v3664 = vadd.f32 %v3646, %v3663
        %v3665 = vpop.f32.mrf.mxu0
        %3666 = vdwg.mxu0
        %3667 = vmatpush.bf16.msra.mxu0 %v3339
        %3668 = vmatpush.bf16.msra.mxu0 %v3335
        %3669 = vmatpush.bf16.msra.mxu0 %v3331
        %3670 = vmatpush.bf16.msra.mxu0 %v3327
        %3671 = vmatpush.bf16.msra.mxu0 %v3323
        %3672 = vmatpush.bf16.msra.mxu0 %v3319
        %3673 = vmatpush.bf16.msra.mxu0 %v3315
        %3674 = vmatpush.bf16.msra.mxu0 %v3311
        %3675 = vmatmul.bf16.gmra.mxu0 %v2820
        %v3676 = vpop.f32.mrf.mxu0
        %v3677 = vadd.f32 %v3659, %v3676
        %v3678 = vpop.f32.mrf.mxu0
        %v3679 = vadd.f32 %v3661, %v3678
        %3680 = vmatmul.bf16.gmra.mxu0 %v2819
        %v3681 = vpop.f32.mrf.mxu0
        %v3682 = vadd.f32 %v3664, %v3681
        %v3683 = vpop.f32.mrf.mxu0
        %3684 = vdwg.mxu0
        %3685 = vmatpush.bf16.msra.mxu0 %v3244
        %3686 = vmatpush.bf16.msra.mxu0 %v3240
        %3687 = vmatpush.bf16.msra.mxu0 %v3236
        %3688 = vmatpush.bf16.msra.mxu0 %v3232
        %3689 = vmatpush.bf16.msra.mxu0 %v3228
        %3690 = vmatpush.bf16.msra.mxu0 %v3224
        %3691 = vmatpush.bf16.msra.mxu0 %v3220
        %3692 = vmatpush.bf16.msra.mxu0 %v3216
        %3693 = vmatmul.bf16.gmra.mxu0 %v2811
        %v3694 = vpop.f32.mrf.mxu0
        %v3695 = vadd.f32 0.0, %v3694
        %v3696 = vpop.f32.mrf.mxu0
        %v3697 = vadd.f32 0.0, %v3696
        %3698 = vmatmul.bf16.gmra.mxu0 %v2810
        %v3699 = vpop.f32.mrf.mxu0
        %v3700 = vadd.f32 0.0, %v3699
        %v3701 = vpop.f32.mrf.mxu0
        %3702 = vdwg.mxu0
        %3703 = vmatpush.bf16.msra.mxu0 %v3276
        %3704 = vmatpush.bf16.msra.mxu0 %v3272
        %3705 = vmatpush.bf16.msra.mxu0 %v3268
        %3706 = vmatpush.bf16.msra.mxu0 %v3264
        %3707 = vmatpush.bf16.msra.mxu0 %v3260
        %3708 = vmatpush.bf16.msra.mxu0 %v3256
        %3709 = vmatpush.bf16.msra.mxu0 %v3252
        %3710 = vmatpush.bf16.msra.mxu0 %v3248
        %3711 = vmatmul.bf16.gmra.mxu0 %v2814
        %v3712 = vpop.f32.mrf.mxu0
        %v3713 = vadd.f32 %v3695, %v3712
        %v3714 = vpop.f32.mrf.mxu0
        %v3715 = vadd.f32 %v3697, %v3714
        %3716 = vmatmul.bf16.gmra.mxu0 %v2813
        %v3717 = vpop.f32.mrf.mxu0
        %v3718 = vadd.f32 %v3700, %v3717
        %v3719 = vpop.f32.mrf.mxu0
        %3720 = vdwg.mxu0
        %3721 = vmatpush.bf16.msra.mxu0 %v3308
        %3722 = vmatpush.bf16.msra.mxu0 %v3304
        %3723 = vmatpush.bf16.msra.mxu0 %v3300
        %3724 = vmatpush.bf16.msra.mxu0 %v3296
        %3725 = vmatpush.bf16.msra.mxu0 %v3292
        %3726 = vmatpush.bf16.msra.mxu0 %v3288
        %3727 = vmatpush.bf16.msra.mxu0 %v3284
        %3728 = vmatpush.bf16.msra.mxu0 %v3280
        %3729 = vmatmul.bf16.gmra.mxu0 %v2817
        %v3730 = vpop.f32.mrf.mxu0
        %v3731 = vadd.f32 %v3713, %v3730
        %v3732 = vpop.f32.mrf.mxu0
        %v3733 = vadd.f32 %v3715, %v3732
        %3734 = vmatmul.bf16.gmra.mxu0 %v2816
        %v3735 = vpop.f32.mrf.mxu0
        %v3736 = vadd.f32 %v3718, %v3735
        %v3737 = vpop.f32.mrf.mxu0
        %3738 = vdwg.mxu0
        %3739 = vmatpush.bf16.msra.mxu0 %v3340
        %3740 = vmatpush.bf16.msra.mxu0 %v3336
        %3741 = vmatpush.bf16.msra.mxu0 %v3332
        %3742 = vmatpush.bf16.msra.mxu0 %v3328
        %3743 = vmatpush.bf16.msra.mxu0 %v3324
        %3744 = vmatpush.bf16.msra.mxu0 %v3320
        %3745 = vmatpush.bf16.msra.mxu0 %v3316
        %3746 = vmatpush.bf16.msra.mxu0 %v3312
        %3747 = vmatmul.bf16.gmra.mxu0 %v2820
        %v3748 = vpop.f32.mrf.mxu0
        %v3749 = vadd.f32 %v3731, %v3748
        %v3750 = vpop.f32.mrf.mxu0
        %v3751 = vadd.f32 %v3733, %v3750
        %3752 = vmatmul.bf16.gmra.mxu0 %v2819
        %v3753 = vpop.f32.mrf.mxu0
        %v3754 = vadd.f32 %v3736, %v3753
        %v3755 = vpop.f32.mrf.mxu0
        %3756 = vdwg.mxu0
        %v3757 = vadd.f32 %v2431, %v3533
        %v3758 = vadd.f32 %v2503, %v3605
        %v3759 = vadd.f32 %v2575, %v3677
        %v3760 = vadd.f32 %v2647, %v3749
        %v3761 = vadd.f32 %v2433, %v3535
        %v3762 = vadd.f32 %v2505, %v3607
        %v3763 = vadd.f32 %v2577, %v3679
        %v3764 = vadd.f32 %v2649, %v3751
        %v3765 = vadd.f32 %v2436, %v3538
        %v3766 = vadd.f32 %v2508, %v3610
        %v3767 = vadd.f32 %v2580, %v3682
        %v3768 = vadd.f32 %v2652, %v3754
        %v3769 = vld [vmem:[#allocation6] sm:$0xf]
        %v3771 = vperm.slane %v3769, 0
        %v3772 = vperm.slane %v3769, 1
        %v3773 = vperm.slane %v3769, 2
        %v3774 = vperm.slane %v3769, 3
        %v3779 = vadd.f32 %v3757, %v3771
        %v3780 = vadd.f32 %v3758, %v3772
        %v3781 = vadd.f32 %v3759, %v3773
        %v3782 = vadd.f32 %v3760, %v3774
        %v3783 = vadd.f32 %v3761, %v3771
        %v3784 = vadd.f32 %v3762, %v3772
        %v3785 = vadd.f32 %v3763, %v3773
        %v3786 = vadd.f32 %v3764, %v3774
        %v3787 = vadd.f32 %v3765, %v3771
        %v3788 = vadd.f32 %v3766, %v3772
        %v3789 = vadd.f32 %v3767, %v3773
        %v3790 = vadd.f32 %v3768, %v3774
        %v3791 = vmax.f32 %v3779, 0.0
        %v3792 = vmax.f32 %v3780, 0.0
        %v3793 = vmax.f32 %v3781, 0.0
        %v3794 = vmax.f32 %v3782, 0.0
        %v3795 = vmax.f32 %v3783, 0.0
        %v3796 = vmax.f32 %v3784, 0.0
        %v3797 = vmax.f32 %v3785, 0.0
        %v3798 = vmax.f32 %v3786, 0.0
        %v3799 = vmax.f32 %v3787, 0.0
        %v3800 = vmax.f32 %v3788, 0.0
        %v3801 = vmax.f32 %v3789, 0.0
        %v3802 = vmax.f32 %v3790, 0.0
        %v3803 = vlaneseq
        %v3804 = vshrl.u32 %v3803, 7
        %v3805 = vadd.s32 %v3804, 8
        %v3806 = vadd.s32 %v3804, 16
        %vm3807 = vcmp.ge.s32.totalorder %v3804, 1
        %vm3808 = vcmp.ge.s32.totalorder %v3805, 1
        %vm3809 = vcmp.ge.s32.totalorder %v3806, 1
        %vm3810 = vcmp.lt.s32.totalorder %v3804, 17
        %vm3811 = vcmp.lt.s32.totalorder %v3805, 17
        %vm3812 = vcmp.lt.s32.totalorder %v3806, 17
        %vm3813 = vmand %vm3807, %vm3810
        %vm3814 = vmand %vm3808, %vm3811
        %vm3815 = vmand %vm3809, %vm3812
        %v3816 = vsel %vm3813, 1, 0
        %v3817 = vsel %vm3814, 1, 0
        %v3818 = vsel %vm3815, 1, 0
        %vm3819 = vcmp.eq.s32.totalorder %v3816, 1
        %vm3820 = vcmp.eq.s32.totalorder %v3817, 1
        %vm3821 = vcmp.eq.s32.totalorder %v3818, 1
        %v3822 = vsel %vm3819, %v3791, 0.0
        %v3823 = vsel %vm3819, %v3792, 0.0
        %v3824 = vsel %vm3819, %v3793, 0.0
        %v3825 = vsel %vm3819, %v3794, 0.0
        %v3826 = vsel %vm3820, %v3795, 0.0
        %v3827 = vsel %vm3820, %v3796, 0.0
        %v3828 = vsel %vm3820, %v3797, 0.0
        %v3829 = vsel %vm3820, %v3798, 0.0
        %v3830 = vsel %vm3821, %v3799, 0.0
        %v3831 = vsel %vm3821, %v3800, 0.0
        %v3832 = vsel %vm3821, %v3801, 0.0
        %v3833 = vsel %vm3821, %v3802, 0.0
        %3834 = vst [vmem:[#allocation2] sm:$0xff] %v3822
        %3835 = vst [vmem:[#allocation2 + $0x8] sm:$0xff] %v3823
        %3836 = vst [vmem:[#allocation2 + $0x10] sm:$0xff] %v3824
        %3837 = vst [vmem:[#allocation2 + $0x18] sm:$0xff] %v3825
        %3838 = vst [vmem:[#allocation2 + $0x20] sm:$0xff] %v3826
        %3839 = vst [vmem:[#allocation2 + $0x28] sm:$0xff] %v3827
        %3840 = vst [vmem:[#allocation2 + $0x30] sm:$0xff] %v3828
        %3841 = vst [vmem:[#allocation2 + $0x38] sm:$0xff] %v3829
        %3842 = vst [vmem:[#allocation2 + $0x40] sm:$0x3] %v3830
        %3843 = vst [vmem:[#allocation2 + $0x48] sm:$0x3] %v3831
        %3844 = vst [vmem:[#allocation2 + $0x50] sm:$0x3] %v3832
        %3845 = vst [vmem:[#allocation2 + $0x58] sm:$0x3] %v3833
        %v3846 = vld [vmem:[#allocation2] sm:$0xff]
        %v3847 = vld [vmem:[#allocation2 + $0x8] sm:$0xff]
        %v3848 = vld [vmem:[#allocation2 + $0x10] sm:$0xff]
        %v3849 = vld [vmem:[#allocation2 + $0x18] sm:$0xff]
        %v3850 = vld [vmem:[#allocation2 + $0x20] sm:$0xff]
        %v3851 = vld [vmem:[#allocation2 + $0x28] sm:$0xff]
        %v3852 = vld [vmem:[#allocation2 + $0x30] sm:$0xff]
        %v3853 = vld [vmem:[#allocation2 + $0x38] sm:$0xff]
        %v3854 = vpack.c.bf16 %v3850, %v3846
        %v3855 = vpack.c.bf16 %v3851, %v3847
        %v3856 = vpack.c.bf16 %v3852, %v3848
        %v3857 = vpack.c.bf16 %v3853, %v3849
        %v3858 = vld [vmem:[#allocation8] sm:$0xff]
        %v3859 = vld [vmem:[#allocation8 + $0x8] sm:$0xff]
        %v3860 = vld [vmem:[#allocation8 + $0x10] sm:$0xff]
        %v3861 = vld [vmem:[#allocation8 + $0x18] sm:$0xff]
        %v3862 = vld [vmem:[#allocation8 + $0x20] sm:$0xff]
        %v3863 = vld [vmem:[#allocation8 + $0x28] sm:$0xff]
        %v3864 = vld [vmem:[#allocation8 + $0x30] sm:$0xff]
        %v3865 = vld [vmem:[#allocation8 + $0x38] sm:$0xff]
        %v3866 = vld [vmem:[#allocation8 + $0x40] sm:$0xff]
        %v3867 = vld [vmem:[#allocation8 + $0x48] sm:$0xff]
        %v3868 = vld [vmem:[#allocation8 + $0x50] sm:$0xff]
        %v3869 = vld [vmem:[#allocation8 + $0x58] sm:$0xff]
        %v3870 = vld [vmem:[#allocation8 + $0x60] sm:$0xff]
        %v3871 = vld [vmem:[#allocation8 + $0x68] sm:$0xff]
        %v3872 = vld [vmem:[#allocation8 + $0x70] sm:$0xff]
        %v3873 = vld [vmem:[#allocation8 + $0x78] sm:$0xff]
        %v3874 = vld [vmem:[#allocation8 + $0x80] sm:$0xff]
        %v3875 = vld [vmem:[#allocation8 + $0x88] sm:$0xff]
        %v3876 = vld [vmem:[#allocation8 + $0x90] sm:$0xff]
        %v3877 = vld [vmem:[#allocation8 + $0x98] sm:$0xff]
        %v3878 = vld [vmem:[#allocation8 + $0xa0] sm:$0xff]
        %v3879 = vld [vmem:[#allocation8 + $0xa8] sm:$0xff]
        %v3880 = vld [vmem:[#allocation8 + $0xb0] sm:$0xff]
        %v3881 = vld [vmem:[#allocation8 + $0xb8] sm:$0xff]
        %v3882 = vld [vmem:[#allocation8 + $0xc0] sm:$0xff]
        %v3883 = vld [vmem:[#allocation8 + $0xc8] sm:$0xff]
        %v3884 = vld [vmem:[#allocation8 + $0xd0] sm:$0xff]
        %v3885 = vld [vmem:[#allocation8 + $0xd8] sm:$0xff]
        %v3886 = vld [vmem:[#allocation8 + $0xe0] sm:$0xff]
        %v3887 = vld [vmem:[#allocation8 + $0xe8] sm:$0xff]
        %v3888 = vld [vmem:[#allocation8 + $0xf0] sm:$0xff]
        %v3889 = vld [vmem:[#allocation8 + $0xf8] sm:$0xff]
        %v3890 = vld [vmem:[#allocation8 + $0x100] sm:$0xff]
        %v3891 = vld [vmem:[#allocation8 + $0x108] sm:$0xff]
        %v3892 = vld [vmem:[#allocation8 + $0x110] sm:$0xff]
        %v3893 = vld [vmem:[#allocation8 + $0x118] sm:$0xff]
        %v3894 = vld [vmem:[#allocation8 + $0x120] sm:$0xff]
        %v3895 = vld [vmem:[#allocation8 + $0x128] sm:$0xff]
        %v3896 = vld [vmem:[#allocation8 + $0x130] sm:$0xff]
        %v3897 = vld [vmem:[#allocation8 + $0x138] sm:$0xff]
        %v3898 = vld [vmem:[#allocation8 + $0x140] sm:$0xff]
        %v3899 = vld [vmem:[#allocation8 + $0x148] sm:$0xff]
        %v3900 = vld [vmem:[#allocation8 + $0x150] sm:$0xff]
        %v3901 = vld [vmem:[#allocation8 + $0x158] sm:$0xff]
        %v3902 = vld [vmem:[#allocation8 + $0x160] sm:$0xff]
        %v3903 = vld [vmem:[#allocation8 + $0x168] sm:$0xff]
        %v3904 = vld [vmem:[#allocation8 + $0x170] sm:$0xff]
        %v3905 = vld [vmem:[#allocation8 + $0x178] sm:$0xff]
        %v3906 = vld [vmem:[#allocation8 + $0x180] sm:$0xff]
        %v3907 = vld [vmem:[#allocation8 + $0x188] sm:$0xff]
        %v3908 = vld [vmem:[#allocation8 + $0x190] sm:$0xff]
        %v3909 = vld [vmem:[#allocation8 + $0x198] sm:$0xff]
        %v3910 = vld [vmem:[#allocation8 + $0x1a0] sm:$0xff]
        %v3911 = vld [vmem:[#allocation8 + $0x1a8] sm:$0xff]
        %v3912 = vld [vmem:[#allocation8 + $0x1b0] sm:$0xff]
        %v3913 = vld [vmem:[#allocation8 + $0x1b8] sm:$0xff]
        %v3914 = vld [vmem:[#allocation8 + $0x1c0] sm:$0xff]
        %v3915 = vld [vmem:[#allocation8 + $0x1c8] sm:$0xff]
        %v3916 = vld [vmem:[#allocation8 + $0x1d0] sm:$0xff]
        %v3917 = vld [vmem:[#allocation8 + $0x1d8] sm:$0xff]
        %v3918 = vld [vmem:[#allocation8 + $0x1e0] sm:$0xff]
        %v3919 = vld [vmem:[#allocation8 + $0x1e8] sm:$0xff]
        %v3920 = vld [vmem:[#allocation8 + $0x1f0] sm:$0xff]
        %v3921 = vld [vmem:[#allocation8 + $0x1f8] sm:$0xff]
        %v3922 = vld [vmem:[#allocation8 + $0x200] sm:$0xff]
        %v3923 = vld [vmem:[#allocation8 + $0x208] sm:$0xff]
        %v3924 = vld [vmem:[#allocation8 + $0x210] sm:$0xff]
        %v3925 = vld [vmem:[#allocation8 + $0x218] sm:$0xff]
        %v3926 = vld [vmem:[#allocation8 + $0x220] sm:$0xff]
        %v3927 = vld [vmem:[#allocation8 + $0x228] sm:$0xff]
        %v3928 = vld [vmem:[#allocation8 + $0x230] sm:$0xff]
        %v3929 = vld [vmem:[#allocation8 + $0x238] sm:$0xff]
        %v3930 = vld [vmem:[#allocation8 + $0x240] sm:$0xff]
        %v3931 = vld [vmem:[#allocation8 + $0x248] sm:$0xff]
        %v3932 = vld [vmem:[#allocation8 + $0x250] sm:$0xff]
        %v3933 = vld [vmem:[#allocation8 + $0x258] sm:$0xff]
        %v3934 = vld [vmem:[#allocation8 + $0x260] sm:$0xff]
        %v3935 = vld [vmem:[#allocation8 + $0x268] sm:$0xff]
        %v3936 = vld [vmem:[#allocation8 + $0x270] sm:$0xff]
        %v3937 = vld [vmem:[#allocation8 + $0x278] sm:$0xff]
        %v3938 = vld [vmem:[#allocation8 + $0x280] sm:$0xff]
        %v3939 = vld [vmem:[#allocation8 + $0x288] sm:$0xff]
        %v3940 = vld [vmem:[#allocation8 + $0x290] sm:$0xff]
        %v3941 = vld [vmem:[#allocation8 + $0x298] sm:$0xff]
        %v3942 = vld [vmem:[#allocation8 + $0x2a0] sm:$0xff]
        %v3943 = vld [vmem:[#allocation8 + $0x2a8] sm:$0xff]
        %v3944 = vld [vmem:[#allocation8 + $0x2b0] sm:$0xff]
        %v3945 = vld [vmem:[#allocation8 + $0x2b8] sm:$0xff]
        %v3946 = vld [vmem:[#allocation8 + $0x2c0] sm:$0xff]
        %v3947 = vld [vmem:[#allocation8 + $0x2c8] sm:$0xff]
        %v3948 = vld [vmem:[#allocation8 + $0x2d0] sm:$0xff]
        %v3949 = vld [vmem:[#allocation8 + $0x2d8] sm:$0xff]
        %v3950 = vld [vmem:[#allocation8 + $0x2e0] sm:$0xff]
        %v3951 = vld [vmem:[#allocation8 + $0x2e8] sm:$0xff]
        %v3952 = vld [vmem:[#allocation8 + $0x2f0] sm:$0xff]
        %v3953 = vld [vmem:[#allocation8 + $0x2f8] sm:$0xff]
        %v3954 = vld [vmem:[#allocation8 + $0x300] sm:$0xff]
        %v3955 = vld [vmem:[#allocation8 + $0x308] sm:$0xff]
        %v3956 = vld [vmem:[#allocation8 + $0x310] sm:$0xff]
        %v3957 = vld [vmem:[#allocation8 + $0x318] sm:$0xff]
        %v3958 = vld [vmem:[#allocation8 + $0x320] sm:$0xff]
        %v3959 = vld [vmem:[#allocation8 + $0x328] sm:$0xff]
        %v3960 = vld [vmem:[#allocation8 + $0x330] sm:$0xff]
        %v3961 = vld [vmem:[#allocation8 + $0x338] sm:$0xff]
        %v3962 = vld [vmem:[#allocation8 + $0x340] sm:$0xff]
        %v3963 = vld [vmem:[#allocation8 + $0x348] sm:$0xff]
        %v3964 = vld [vmem:[#allocation8 + $0x350] sm:$0xff]
        %v3965 = vld [vmem:[#allocation8 + $0x358] sm:$0xff]
        %v3966 = vld [vmem:[#allocation8 + $0x360] sm:$0xff]
        %v3967 = vld [vmem:[#allocation8 + $0x368] sm:$0xff]
        %v3968 = vld [vmem:[#allocation8 + $0x370] sm:$0xff]
        %v3969 = vld [vmem:[#allocation8 + $0x378] sm:$0xff]
        %v3970 = vld [vmem:[#allocation8 + $0x380] sm:$0xff]
        %v3971 = vld [vmem:[#allocation8 + $0x388] sm:$0xff]
        %v3972 = vld [vmem:[#allocation8 + $0x390] sm:$0xff]
        %v3973 = vld [vmem:[#allocation8 + $0x398] sm:$0xff]
        %v3974 = vld [vmem:[#allocation8 + $0x3a0] sm:$0xff]
        %v3975 = vld [vmem:[#allocation8 + $0x3a8] sm:$0xff]
        %v3976 = vld [vmem:[#allocation8 + $0x3b0] sm:$0xff]
        %v3977 = vld [vmem:[#allocation8 + $0x3b8] sm:$0xff]
        %v3978 = vld [vmem:[#allocation8 + $0x3c0] sm:$0xff]
        %v3979 = vld [vmem:[#allocation8 + $0x3c8] sm:$0xff]
        %v3980 = vld [vmem:[#allocation8 + $0x3d0] sm:$0xff]
        %v3981 = vld [vmem:[#allocation8 + $0x3d8] sm:$0xff]
        %v3982 = vld [vmem:[#allocation8 + $0x3e0] sm:$0xff]
        %v3983 = vld [vmem:[#allocation8 + $0x3e8] sm:$0xff]
        %v3984 = vld [vmem:[#allocation8 + $0x3f0] sm:$0xff]
        %v3985 = vld [vmem:[#allocation8 + $0x3f8] sm:$0xff]
        %v3986 = vld [vmem:[#allocation2] sm:$0xfe]
        %v3987 = vld [vmem:[#allocation2 + $0x8] sm:$0xfe]
        %v3988 = vld [vmem:[#allocation2 + $0x10] sm:$0xfe]
        %v3989 = vld [vmem:[#allocation2 + $0x18] sm:$0xfe]
        %v3990 = vld [vmem:[#allocation2 + $0x40] sm:$0x1]
        %v3991 = vld [vmem:[#allocation2 + $0x48] sm:$0x1]
        %v3992 = vld [vmem:[#allocation2 + $0x50] sm:$0x1]
        %v3993 = vld [vmem:[#allocation2 + $0x58] sm:$0x1]
        %v3994 = vpack.c.bf16 %v3850, %v3986
        %v3995 = vpack.c.bf16 %v3851, %v3987
        %v3996 = vpack.c.bf16 %v3852, %v3988
        %v3997 = vpack.c.bf16 %v3853, %v3989
        %v3998 = vpack.c.bf16 %v3990, %v3990
        %v3999 = vpack.c.bf16 %v3991, %v3991
        %v4000 = vpack.c.bf16 %v3992, %v3992
        %v4001 = vpack.c.bf16 %v3993, %v3993
        %s4002 = scalar_lea.vmem [#allocation8], 1024
        %v4003 = vld [vmem:[%s4002] sm:$0xff]
        %v4004 = vld [vmem:[%s4002 + $0x8] sm:$0xff]
        %v4005 = vld [vmem:[%s4002 + $0x10] sm:$0xff]
        %v4006 = vld [vmem:[%s4002 + $0x18] sm:$0xff]
        %v4007 = vld [vmem:[%s4002 + $0x20] sm:$0xff]
        %v4008 = vld [vmem:[%s4002 + $0x28] sm:$0xff]
        %v4009 = vld [vmem:[%s4002 + $0x30] sm:$0xff]
        %v4010 = vld [vmem:[%s4002 + $0x38] sm:$0xff]
        %v4011 = vld [vmem:[%s4002 + $0x40] sm:$0xff]
        %v4012 = vld [vmem:[%s4002 + $0x48] sm:$0xff]
        %v4013 = vld [vmem:[%s4002 + $0x50] sm:$0xff]
        %v4014 = vld [vmem:[%s4002 + $0x58] sm:$0xff]
        %v4015 = vld [vmem:[%s4002 + $0x60] sm:$0xff]
        %v4016 = vld [vmem:[%s4002 + $0x68] sm:$0xff]
        %v4017 = vld [vmem:[%s4002 + $0x70] sm:$0xff]
        %v4018 = vld [vmem:[%s4002 + $0x78] sm:$0xff]
        %v4019 = vld [vmem:[%s4002 + $0x80] sm:$0xff]
        %v4020 = vld [vmem:[%s4002 + $0x88] sm:$0xff]
        %v4021 = vld [vmem:[%s4002 + $0x90] sm:$0xff]
        %v4022 = vld [vmem:[%s4002 + $0x98] sm:$0xff]
        %v4023 = vld [vmem:[%s4002 + $0xa0] sm:$0xff]
        %v4024 = vld [vmem:[%s4002 + $0xa8] sm:$0xff]
        %v4025 = vld [vmem:[%s4002 + $0xb0] sm:$0xff]
        %v4026 = vld [vmem:[%s4002 + $0xb8] sm:$0xff]
        %v4027 = vld [vmem:[%s4002 + $0xc0] sm:$0xff]
        %v4028 = vld [vmem:[%s4002 + $0xc8] sm:$0xff]
        %v4029 = vld [vmem:[%s4002 + $0xd0] sm:$0xff]
        %v4030 = vld [vmem:[%s4002 + $0xd8] sm:$0xff]
        %v4031 = vld [vmem:[%s4002 + $0xe0] sm:$0xff]
        %v4032 = vld [vmem:[%s4002 + $0xe8] sm:$0xff]
        %v4033 = vld [vmem:[%s4002 + $0xf0] sm:$0xff]
        %v4034 = vld [vmem:[%s4002 + $0xf8] sm:$0xff]
        %v4035 = vld [vmem:[%s4002 + $0x100] sm:$0xff]
        %v4036 = vld [vmem:[%s4002 + $0x108] sm:$0xff]
        %v4037 = vld [vmem:[%s4002 + $0x110] sm:$0xff]
        %v4038 = vld [vmem:[%s4002 + $0x118] sm:$0xff]
        %v4039 = vld [vmem:[%s4002 + $0x120] sm:$0xff]
        %v4040 = vld [vmem:[%s4002 + $0x128] sm:$0xff]
        %v4041 = vld [vmem:[%s4002 + $0x130] sm:$0xff]
        %v4042 = vld [vmem:[%s4002 + $0x138] sm:$0xff]
        %v4043 = vld [vmem:[%s4002 + $0x140] sm:$0xff]
        %v4044 = vld [vmem:[%s4002 + $0x148] sm:$0xff]
        %v4045 = vld [vmem:[%s4002 + $0x150] sm:$0xff]
        %v4046 = vld [vmem:[%s4002 + $0x158] sm:$0xff]
        %v4047 = vld [vmem:[%s4002 + $0x160] sm:$0xff]
        %v4048 = vld [vmem:[%s4002 + $0x168] sm:$0xff]
        %v4049 = vld [vmem:[%s4002 + $0x170] sm:$0xff]
        %v4050 = vld [vmem:[%s4002 + $0x178] sm:$0xff]
        %v4051 = vld [vmem:[%s4002 + $0x180] sm:$0xff]
        %v4052 = vld [vmem:[%s4002 + $0x188] sm:$0xff]
        %v4053 = vld [vmem:[%s4002 + $0x190] sm:$0xff]
        %v4054 = vld [vmem:[%s4002 + $0x198] sm:$0xff]
        %v4055 = vld [vmem:[%s4002 + $0x1a0] sm:$0xff]
        %v4056 = vld [vmem:[%s4002 + $0x1a8] sm:$0xff]
        %v4057 = vld [vmem:[%s4002 + $0x1b0] sm:$0xff]
        %v4058 = vld [vmem:[%s4002 + $0x1b8] sm:$0xff]
        %v4059 = vld [vmem:[%s4002 + $0x1c0] sm:$0xff]
        %v4060 = vld [vmem:[%s4002 + $0x1c8] sm:$0xff]
        %v4061 = vld [vmem:[%s4002 + $0x1d0] sm:$0xff]
        %v4062 = vld [vmem:[%s4002 + $0x1d8] sm:$0xff]
        %v4063 = vld [vmem:[%s4002 + $0x1e0] sm:$0xff]
        %v4064 = vld [vmem:[%s4002 + $0x1e8] sm:$0xff]
        %v4065 = vld [vmem:[%s4002 + $0x1f0] sm:$0xff]
        %v4066 = vld [vmem:[%s4002 + $0x1f8] sm:$0xff]
        %v4067 = vld [vmem:[%s4002 + $0x200] sm:$0xff]
        %v4068 = vld [vmem:[%s4002 + $0x208] sm:$0xff]
        %v4069 = vld [vmem:[%s4002 + $0x210] sm:$0xff]
        %v4070 = vld [vmem:[%s4002 + $0x218] sm:$0xff]
        %v4071 = vld [vmem:[%s4002 + $0x220] sm:$0xff]
        %v4072 = vld [vmem:[%s4002 + $0x228] sm:$0xff]
        %v4073 = vld [vmem:[%s4002 + $0x230] sm:$0xff]
        %v4074 = vld [vmem:[%s4002 + $0x238] sm:$0xff]
        %v4075 = vld [vmem:[%s4002 + $0x240] sm:$0xff]
        %v4076 = vld [vmem:[%s4002 + $0x248] sm:$0xff]
        %v4077 = vld [vmem:[%s4002 + $0x250] sm:$0xff]
        %v4078 = vld [vmem:[%s4002 + $0x258] sm:$0xff]
        %v4079 = vld [vmem:[%s4002 + $0x260] sm:$0xff]
        %v4080 = vld [vmem:[%s4002 + $0x268] sm:$0xff]
        %v4081 = vld [vmem:[%s4002 + $0x270] sm:$0xff]
        %v4082 = vld [vmem:[%s4002 + $0x278] sm:$0xff]
        %v4083 = vld [vmem:[%s4002 + $0x280] sm:$0xff]
        %v4084 = vld [vmem:[%s4002 + $0x288] sm:$0xff]
        %v4085 = vld [vmem:[%s4002 + $0x290] sm:$0xff]
        %v4086 = vld [vmem:[%s4002 + $0x298] sm:$0xff]
        %v4087 = vld [vmem:[%s4002 + $0x2a0] sm:$0xff]
        %v4088 = vld [vmem:[%s4002 + $0x2a8] sm:$0xff]
        %v4089 = vld [vmem:[%s4002 + $0x2b0] sm:$0xff]
        %v4090 = vld [vmem:[%s4002 + $0x2b8] sm:$0xff]
        %v4091 = vld [vmem:[%s4002 + $0x2c0] sm:$0xff]
        %v4092 = vld [vmem:[%s4002 + $0x2c8] sm:$0xff]
        %v4093 = vld [vmem:[%s4002 + $0x2d0] sm:$0xff]
        %v4094 = vld [vmem:[%s4002 + $0x2d8] sm:$0xff]
        %v4095 = vld [vmem:[%s4002 + $0x2e0] sm:$0xff]
        %v4096 = vld [vmem:[%s4002 + $0x2e8] sm:$0xff]
        %v4097 = vld [vmem:[%s4002 + $0x2f0] sm:$0xff]
        %v4098 = vld [vmem:[%s4002 + $0x2f8] sm:$0xff]
        %v4099 = vld [vmem:[%s4002 + $0x300] sm:$0xff]
        %v4100 = vld [vmem:[%s4002 + $0x308] sm:$0xff]
        %v4101 = vld [vmem:[%s4002 + $0x310] sm:$0xff]
        %v4102 = vld [vmem:[%s4002 + $0x318] sm:$0xff]
        %v4103 = vld [vmem:[%s4002 + $0x320] sm:$0xff]
        %v4104 = vld [vmem:[%s4002 + $0x328] sm:$0xff]
        %v4105 = vld [vmem:[%s4002 + $0x330] sm:$0xff]
        %v4106 = vld [vmem:[%s4002 + $0x338] sm:$0xff]
        %v4107 = vld [vmem:[%s4002 + $0x340] sm:$0xff]
        %v4108 = vld [vmem:[%s4002 + $0x348] sm:$0xff]
        %v4109 = vld [vmem:[%s4002 + $0x350] sm:$0xff]
        %v4110 = vld [vmem:[%s4002 + $0x358] sm:$0xff]
        %v4111 = vld [vmem:[%s4002 + $0x360] sm:$0xff]
        %v4112 = vld [vmem:[%s4002 + $0x368] sm:$0xff]
        %v4113 = vld [vmem:[%s4002 + $0x370] sm:$0xff]
        %v4114 = vld [vmem:[%s4002 + $0x378] sm:$0xff]
        %v4115 = vld [vmem:[%s4002 + $0x380] sm:$0xff]
        %v4116 = vld [vmem:[%s4002 + $0x388] sm:$0xff]
        %v4117 = vld [vmem:[%s4002 + $0x390] sm:$0xff]
        %v4118 = vld [vmem:[%s4002 + $0x398] sm:$0xff]
        %v4119 = vld [vmem:[%s4002 + $0x3a0] sm:$0xff]
        %v4120 = vld [vmem:[%s4002 + $0x3a8] sm:$0xff]
        %v4121 = vld [vmem:[%s4002 + $0x3b0] sm:$0xff]
        %v4122 = vld [vmem:[%s4002 + $0x3b8] sm:$0xff]
        %v4123 = vld [vmem:[%s4002 + $0x3c0] sm:$0xff]
        %v4124 = vld [vmem:[%s4002 + $0x3c8] sm:$0xff]
        %v4125 = vld [vmem:[%s4002 + $0x3d0] sm:$0xff]
        %v4126 = vld [vmem:[%s4002 + $0x3d8] sm:$0xff]
        %v4127 = vld [vmem:[%s4002 + $0x3e0] sm:$0xff]
        %v4128 = vld [vmem:[%s4002 + $0x3e8] sm:$0xff]
        %v4129 = vld [vmem:[%s4002 + $0x3f0] sm:$0xff]
        %v4130 = vld [vmem:[%s4002 + $0x3f8] sm:$0xff]
        %v4132 = vshrl.u32 %v3994, 16
        %v4134 = vshll.u32 %v3994, 16
        %v4136 = vrot.slane %v4134, 1
        %v4137 = vor.u32 %v4132, %v4136
        %v4139 = vshll.u32 %v3998, 16
        %v4141 = vrot.slane %v4139, 1
        %v4142 = vsel %vm730, %v4137, %v4141
        %v4144 = vshrl.u32 %v3995, 16
        %v4146 = vshll.u32 %v3995, 16
        %v4148 = vrot.slane %v4146, 1
        %v4149 = vor.u32 %v4144, %v4148
        %v4151 = vshll.u32 %v3999, 16
        %v4153 = vrot.slane %v4151, 1
        %v4154 = vsel %vm730, %v4149, %v4153
        %v4156 = vshrl.u32 %v3996, 16
        %v4158 = vshll.u32 %v3996, 16
        %v4160 = vrot.slane %v4158, 1
        %v4161 = vor.u32 %v4156, %v4160
        %v4163 = vshll.u32 %v4000, 16
        %v4165 = vrot.slane %v4163, 1
        %v4166 = vsel %vm730, %v4161, %v4165
        %v4168 = vshrl.u32 %v3997, 16
        %v4170 = vshll.u32 %v3997, 16
        %v4172 = vrot.slane %v4170, 1
        %v4173 = vor.u32 %v4168, %v4172
        %v4175 = vshll.u32 %v4001, 16
        %v4177 = vrot.slane %v4175, 1
        %v4178 = vsel %vm730, %v4173, %v4177
        %v4311 = vunpack.c.l.b16 %v4003
        %v4312 = vunpack.c.h.b16 %v4003
        %v4313 = vunpack.c.l.b16 %v4004
        %v4314 = vunpack.c.h.b16 %v4004
        %v4315 = vunpack.c.l.b16 %v4005
        %v4316 = vunpack.c.h.b16 %v4005
        %v4317 = vunpack.c.l.b16 %v4006
        %v4318 = vunpack.c.h.b16 %v4006
        %v4319 = vunpack.c.l.b16 %v4007
        %v4320 = vunpack.c.h.b16 %v4007
        %v4321 = vunpack.c.l.b16 %v4008
        %v4322 = vunpack.c.h.b16 %v4008
        %v4323 = vunpack.c.l.b16 %v4009
        %v4324 = vunpack.c.h.b16 %v4009
        %v4325 = vunpack.c.l.b16 %v4010
        %v4326 = vunpack.c.h.b16 %v4010
        %v4327 = vunpack.c.l.b16 %v4011
        %v4328 = vunpack.c.h.b16 %v4011
        %v4329 = vunpack.c.l.b16 %v4012
        %v4330 = vunpack.c.h.b16 %v4012
        %v4331 = vunpack.c.l.b16 %v4013
        %v4332 = vunpack.c.h.b16 %v4013
        %v4333 = vunpack.c.l.b16 %v4014
        %v4334 = vunpack.c.h.b16 %v4014
        %v4335 = vunpack.c.l.b16 %v4015
        %v4336 = vunpack.c.h.b16 %v4015
        %v4337 = vunpack.c.l.b16 %v4016
        %v4338 = vunpack.c.h.b16 %v4016
        %v4339 = vunpack.c.l.b16 %v4017
        %v4340 = vunpack.c.h.b16 %v4017
        %v4341 = vunpack.c.l.b16 %v4018
        %v4342 = vunpack.c.h.b16 %v4018
        %v4343 = vunpack.c.l.b16 %v4019
        %v4344 = vunpack.c.h.b16 %v4019
        %v4345 = vunpack.c.l.b16 %v4020
        %v4346 = vunpack.c.h.b16 %v4020
        %v4347 = vunpack.c.l.b16 %v4021
        %v4348 = vunpack.c.h.b16 %v4021
        %v4349 = vunpack.c.l.b16 %v4022
        %v4350 = vunpack.c.h.b16 %v4022
        %v4351 = vunpack.c.l.b16 %v4023
        %v4352 = vunpack.c.h.b16 %v4023
        %v4353 = vunpack.c.l.b16 %v4024
        %v4354 = vunpack.c.h.b16 %v4024
        %v4355 = vunpack.c.l.b16 %v4025
        %v4356 = vunpack.c.h.b16 %v4025
        %v4357 = vunpack.c.l.b16 %v4026
        %v4358 = vunpack.c.h.b16 %v4026
        %v4359 = vunpack.c.l.b16 %v4027
        %v4360 = vunpack.c.h.b16 %v4027
        %v4361 = vunpack.c.l.b16 %v4028
        %v4362 = vunpack.c.h.b16 %v4028
        %v4363 = vunpack.c.l.b16 %v4029
        %v4364 = vunpack.c.h.b16 %v4029
        %v4365 = vunpack.c.l.b16 %v4030
        %v4366 = vunpack.c.h.b16 %v4030
        %v4367 = vunpack.c.l.b16 %v4031
        %v4368 = vunpack.c.h.b16 %v4031
        %v4369 = vunpack.c.l.b16 %v4032
        %v4370 = vunpack.c.h.b16 %v4032
        %v4371 = vunpack.c.l.b16 %v4033
        %v4372 = vunpack.c.h.b16 %v4033
        %v4373 = vunpack.c.l.b16 %v4034
        %v4374 = vunpack.c.h.b16 %v4034
        %v4375 = vunpack.c.l.b16 %v4035
        %v4376 = vunpack.c.h.b16 %v4035
        %v4377 = vunpack.c.l.b16 %v4036
        %v4378 = vunpack.c.h.b16 %v4036
        %v4379 = vunpack.c.l.b16 %v4037
        %v4380 = vunpack.c.h.b16 %v4037
        %v4381 = vunpack.c.l.b16 %v4038
        %v4382 = vunpack.c.h.b16 %v4038
        %v4383 = vunpack.c.l.b16 %v4039
        %v4384 = vunpack.c.h.b16 %v4039
        %v4385 = vunpack.c.l.b16 %v4040
        %v4386 = vunpack.c.h.b16 %v4040
        %v4387 = vunpack.c.l.b16 %v4041
        %v4388 = vunpack.c.h.b16 %v4041
        %v4389 = vunpack.c.l.b16 %v4042
        %v4390 = vunpack.c.h.b16 %v4042
        %v4391 = vunpack.c.l.b16 %v4043
        %v4392 = vunpack.c.h.b16 %v4043
        %v4393 = vunpack.c.l.b16 %v4044
        %v4394 = vunpack.c.h.b16 %v4044
        %v4395 = vunpack.c.l.b16 %v4045
        %v4396 = vunpack.c.h.b16 %v4045
        %v4397 = vunpack.c.l.b16 %v4046
        %v4398 = vunpack.c.h.b16 %v4046
        %v4399 = vunpack.c.l.b16 %v4047
        %v4400 = vunpack.c.h.b16 %v4047
        %v4401 = vunpack.c.l.b16 %v4048
        %v4402 = vunpack.c.h.b16 %v4048
        %v4403 = vunpack.c.l.b16 %v4049
        %v4404 = vunpack.c.h.b16 %v4049
        %v4405 = vunpack.c.l.b16 %v4050
        %v4406 = vunpack.c.h.b16 %v4050
        %v4407 = vunpack.c.l.b16 %v4051
        %v4408 = vunpack.c.h.b16 %v4051
        %v4409 = vunpack.c.l.b16 %v4052
        %v4410 = vunpack.c.h.b16 %v4052
        %v4411 = vunpack.c.l.b16 %v4053
        %v4412 = vunpack.c.h.b16 %v4053
        %v4413 = vunpack.c.l.b16 %v4054
        %v4414 = vunpack.c.h.b16 %v4054
        %v4415 = vunpack.c.l.b16 %v4055
        %v4416 = vunpack.c.h.b16 %v4055
        %v4417 = vunpack.c.l.b16 %v4056
        %v4418 = vunpack.c.h.b16 %v4056
        %v4419 = vunpack.c.l.b16 %v4057
        %v4420 = vunpack.c.h.b16 %v4057
        %v4421 = vunpack.c.l.b16 %v4058
        %v4422 = vunpack.c.h.b16 %v4058
        %v4423 = vunpack.c.l.b16 %v4059
        %v4424 = vunpack.c.h.b16 %v4059
        %v4425 = vunpack.c.l.b16 %v4060
        %v4426 = vunpack.c.h.b16 %v4060
        %v4427 = vunpack.c.l.b16 %v4061
        %v4428 = vunpack.c.h.b16 %v4061
        %v4429 = vunpack.c.l.b16 %v4062
        %v4430 = vunpack.c.h.b16 %v4062
        %v4431 = vunpack.c.l.b16 %v4063
        %v4432 = vunpack.c.h.b16 %v4063
        %v4433 = vunpack.c.l.b16 %v4064
        %v4434 = vunpack.c.h.b16 %v4064
        %v4435 = vunpack.c.l.b16 %v4065
        %v4436 = vunpack.c.h.b16 %v4065
        %v4437 = vunpack.c.l.b16 %v4066
        %v4438 = vunpack.c.h.b16 %v4066
        %v4439 = vunpack.c.l.b16 %v4067
        %v4440 = vunpack.c.h.b16 %v4067
        %v4441 = vunpack.c.l.b16 %v4068
        %v4442 = vunpack.c.h.b16 %v4068
        %v4443 = vunpack.c.l.b16 %v4069
        %v4444 = vunpack.c.h.b16 %v4069
        %v4445 = vunpack.c.l.b16 %v4070
        %v4446 = vunpack.c.h.b16 %v4070
        %v4447 = vunpack.c.l.b16 %v4071
        %v4448 = vunpack.c.h.b16 %v4071
        %v4449 = vunpack.c.l.b16 %v4072
        %v4450 = vunpack.c.h.b16 %v4072
        %v4451 = vunpack.c.l.b16 %v4073
        %v4452 = vunpack.c.h.b16 %v4073
        %v4453 = vunpack.c.l.b16 %v4074
        %v4454 = vunpack.c.h.b16 %v4074
        %v4455 = vunpack.c.l.b16 %v4075
        %v4456 = vunpack.c.h.b16 %v4075
        %v4457 = vunpack.c.l.b16 %v4076
        %v4458 = vunpack.c.h.b16 %v4076
        %v4459 = vunpack.c.l.b16 %v4077
        %v4460 = vunpack.c.h.b16 %v4077
        %v4461 = vunpack.c.l.b16 %v4078
        %v4462 = vunpack.c.h.b16 %v4078
        %v4463 = vunpack.c.l.b16 %v4079
        %v4464 = vunpack.c.h.b16 %v4079
        %v4465 = vunpack.c.l.b16 %v4080
        %v4466 = vunpack.c.h.b16 %v4080
        %v4467 = vunpack.c.l.b16 %v4081
        %v4468 = vunpack.c.h.b16 %v4081
        %v4469 = vunpack.c.l.b16 %v4082
        %v4470 = vunpack.c.h.b16 %v4082
        %v4471 = vunpack.c.l.b16 %v4083
        %v4472 = vunpack.c.h.b16 %v4083
        %v4473 = vunpack.c.l.b16 %v4084
        %v4474 = vunpack.c.h.b16 %v4084
        %v4475 = vunpack.c.l.b16 %v4085
        %v4476 = vunpack.c.h.b16 %v4085
        %v4477 = vunpack.c.l.b16 %v4086
        %v4478 = vunpack.c.h.b16 %v4086
        %v4479 = vunpack.c.l.b16 %v4087
        %v4480 = vunpack.c.h.b16 %v4087
        %v4481 = vunpack.c.l.b16 %v4088
        %v4482 = vunpack.c.h.b16 %v4088
        %v4483 = vunpack.c.l.b16 %v4089
        %v4484 = vunpack.c.h.b16 %v4089
        %v4485 = vunpack.c.l.b16 %v4090
        %v4486 = vunpack.c.h.b16 %v4090
        %v4487 = vunpack.c.l.b16 %v4091
        %v4488 = vunpack.c.h.b16 %v4091
        %v4489 = vunpack.c.l.b16 %v4092
        %v4490 = vunpack.c.h.b16 %v4092
        %v4491 = vunpack.c.l.b16 %v4093
        %v4492 = vunpack.c.h.b16 %v4093
        %v4493 = vunpack.c.l.b16 %v4094
        %v4494 = vunpack.c.h.b16 %v4094
        %v4495 = vunpack.c.l.b16 %v4095
        %v4496 = vunpack.c.h.b16 %v4095
        %v4497 = vunpack.c.l.b16 %v4096
        %v4498 = vunpack.c.h.b16 %v4096
        %v4499 = vunpack.c.l.b16 %v4097
        %v4500 = vunpack.c.h.b16 %v4097
        %v4501 = vunpack.c.l.b16 %v4098
        %v4502 = vunpack.c.h.b16 %v4098
        %v4503 = vunpack.c.l.b16 %v4099
        %v4504 = vunpack.c.h.b16 %v4099
        %v4505 = vunpack.c.l.b16 %v4100
        %v4506 = vunpack.c.h.b16 %v4100
        %v4507 = vunpack.c.l.b16 %v4101
        %v4508 = vunpack.c.h.b16 %v4101
        %v4509 = vunpack.c.l.b16 %v4102
        %v4510 = vunpack.c.h.b16 %v4102
        %v4511 = vunpack.c.l.b16 %v4103
        %v4512 = vunpack.c.h.b16 %v4103
        %v4513 = vunpack.c.l.b16 %v4104
        %v4514 = vunpack.c.h.b16 %v4104
        %v4515 = vunpack.c.l.b16 %v4105
        %v4516 = vunpack.c.h.b16 %v4105
        %v4517 = vunpack.c.l.b16 %v4106
        %v4518 = vunpack.c.h.b16 %v4106
        %v4519 = vunpack.c.l.b16 %v4107
        %v4520 = vunpack.c.h.b16 %v4107
        %v4521 = vunpack.c.l.b16 %v4108
        %v4522 = vunpack.c.h.b16 %v4108
        %v4523 = vunpack.c.l.b16 %v4109
        %v4524 = vunpack.c.h.b16 %v4109
        %v4525 = vunpack.c.l.b16 %v4110
        %v4526 = vunpack.c.h.b16 %v4110
        %v4527 = vunpack.c.l.b16 %v4111
        %v4528 = vunpack.c.h.b16 %v4111
        %v4529 = vunpack.c.l.b16 %v4112
        %v4530 = vunpack.c.h.b16 %v4112
        %v4531 = vunpack.c.l.b16 %v4113
        %v4532 = vunpack.c.h.b16 %v4113
        %v4533 = vunpack.c.l.b16 %v4114
        %v4534 = vunpack.c.h.b16 %v4114
        %v4535 = vunpack.c.l.b16 %v4115
        %v4536 = vunpack.c.h.b16 %v4115
        %v4537 = vunpack.c.l.b16 %v4116
        %v4538 = vunpack.c.h.b16 %v4116
        %v4539 = vunpack.c.l.b16 %v4117
        %v4540 = vunpack.c.h.b16 %v4117
        %v4541 = vunpack.c.l.b16 %v4118
        %v4542 = vunpack.c.h.b16 %v4118
        %v4543 = vunpack.c.l.b16 %v4119
        %v4544 = vunpack.c.h.b16 %v4119
        %v4545 = vunpack.c.l.b16 %v4120
        %v4546 = vunpack.c.h.b16 %v4120
        %v4547 = vunpack.c.l.b16 %v4121
        %v4548 = vunpack.c.h.b16 %v4121
        %v4549 = vunpack.c.l.b16 %v4122
        %v4550 = vunpack.c.h.b16 %v4122
        %v4551 = vunpack.c.l.b16 %v4123
        %v4552 = vunpack.c.h.b16 %v4123
        %v4553 = vunpack.c.l.b16 %v4124
        %v4554 = vunpack.c.h.b16 %v4124
        %v4555 = vunpack.c.l.b16 %v4125
        %v4556 = vunpack.c.h.b16 %v4125
        %v4557 = vunpack.c.l.b16 %v4126
        %v4558 = vunpack.c.h.b16 %v4126
        %v4559 = vunpack.c.l.b16 %v4127
        %v4560 = vunpack.c.h.b16 %v4127
        %v4561 = vunpack.c.l.b16 %v4128
        %v4562 = vunpack.c.h.b16 %v4128
        %v4563 = vunpack.c.l.b16 %v4129
        %v4564 = vunpack.c.h.b16 %v4129
        %v4565 = vunpack.c.l.b16 %v4130
        %v4566 = vunpack.c.h.b16 %v4130
        %v4567 = vpack.c.b16 %v4315, %v4311
        %v4568 = vpack.c.b16 %v4316, %v4312
        %v4569 = vpack.c.b16 %v4317, %v4313
        %v4570 = vpack.c.b16 %v4318, %v4314
        %v4571 = vpack.c.b16 %v4323, %v4319
        %v4572 = vpack.c.b16 %v4324, %v4320
        %v4573 = vpack.c.b16 %v4325, %v4321
        %v4574 = vpack.c.b16 %v4326, %v4322
        %v4575 = vpack.c.b16 %v4331, %v4327
        %v4576 = vpack.c.b16 %v4332, %v4328
        %v4577 = vpack.c.b16 %v4333, %v4329
        %v4578 = vpack.c.b16 %v4334, %v4330
        %v4579 = vpack.c.b16 %v4339, %v4335
        %v4580 = vpack.c.b16 %v4340, %v4336
        %v4581 = vpack.c.b16 %v4341, %v4337
        %v4582 = vpack.c.b16 %v4342, %v4338
        %v4583 = vpack.c.b16 %v4347, %v4343
        %v4584 = vpack.c.b16 %v4348, %v4344
        %v4585 = vpack.c.b16 %v4349, %v4345
        %v4586 = vpack.c.b16 %v4350, %v4346
        %v4587 = vpack.c.b16 %v4355, %v4351
        %v4588 = vpack.c.b16 %v4356, %v4352
        %v4589 = vpack.c.b16 %v4357, %v4353
        %v4590 = vpack.c.b16 %v4358, %v4354
        %v4591 = vpack.c.b16 %v4363, %v4359
        %v4592 = vpack.c.b16 %v4364, %v4360
        %v4593 = vpack.c.b16 %v4365, %v4361
        %v4594 = vpack.c.b16 %v4366, %v4362
        %v4595 = vpack.c.b16 %v4371, %v4367
        %v4596 = vpack.c.b16 %v4372, %v4368
        %v4597 = vpack.c.b16 %v4373, %v4369
        %v4598 = vpack.c.b16 %v4374, %v4370
        %v4599 = vpack.c.b16 %v4379, %v4375
        %v4600 = vpack.c.b16 %v4380, %v4376
        %v4601 = vpack.c.b16 %v4381, %v4377
        %v4602 = vpack.c.b16 %v4382, %v4378
        %v4603 = vpack.c.b16 %v4387, %v4383
        %v4604 = vpack.c.b16 %v4388, %v4384
        %v4605 = vpack.c.b16 %v4389, %v4385
        %v4606 = vpack.c.b16 %v4390, %v4386
        %v4607 = vpack.c.b16 %v4395, %v4391
        %v4608 = vpack.c.b16 %v4396, %v4392
        %v4609 = vpack.c.b16 %v4397, %v4393
        %v4610 = vpack.c.b16 %v4398, %v4394
        %v4611 = vpack.c.b16 %v4403, %v4399
        %v4612 = vpack.c.b16 %v4404, %v4400
        %v4613 = vpack.c.b16 %v4405, %v4401
        %v4614 = vpack.c.b16 %v4406, %v4402
        %v4615 = vpack.c.b16 %v4411, %v4407
        %v4616 = vpack.c.b16 %v4412, %v4408
        %v4617 = vpack.c.b16 %v4413, %v4409
        %v4618 = vpack.c.b16 %v4414, %v4410
        %v4619 = vpack.c.b16 %v4419, %v4415
        %v4620 = vpack.c.b16 %v4420, %v4416
        %v4621 = vpack.c.b16 %v4421, %v4417
        %v4622 = vpack.c.b16 %v4422, %v4418
        %v4623 = vpack.c.b16 %v4427, %v4423
        %v4624 = vpack.c.b16 %v4428, %v4424
        %v4625 = vpack.c.b16 %v4429, %v4425
        %v4626 = vpack.c.b16 %v4430, %v4426
        %v4627 = vpack.c.b16 %v4435, %v4431
        %v4628 = vpack.c.b16 %v4436, %v4432
        %v4629 = vpack.c.b16 %v4437, %v4433
        %v4630 = vpack.c.b16 %v4438, %v4434
        %v4631 = vpack.c.b16 %v4443, %v4439
        %v4632 = vpack.c.b16 %v4444, %v4440
        %v4633 = vpack.c.b16 %v4445, %v4441
        %v4634 = vpack.c.b16 %v4446, %v4442
        %v4635 = vpack.c.b16 %v4451, %v4447
        %v4636 = vpack.c.b16 %v4452, %v4448
        %v4637 = vpack.c.b16 %v4453, %v4449
        %v4638 = vpack.c.b16 %v4454, %v4450
        %v4639 = vpack.c.b16 %v4459, %v4455
        %v4640 = vpack.c.b16 %v4460, %v4456
        %v4641 = vpack.c.b16 %v4461, %v4457
        %v4642 = vpack.c.b16 %v4462, %v4458
        %v4643 = vpack.c.b16 %v4467, %v4463
        %v4644 = vpack.c.b16 %v4468, %v4464
        %v4645 = vpack.c.b16 %v4469, %v4465
        %v4646 = vpack.c.b16 %v4470, %v4466
        %v4647 = vpack.c.b16 %v4475, %v4471
        %v4648 = vpack.c.b16 %v4476, %v4472
        %v4649 = vpack.c.b16 %v4477, %v4473
        %v4650 = vpack.c.b16 %v4478, %v4474
        %v4651 = vpack.c.b16 %v4483, %v4479
        %v4652 = vpack.c.b16 %v4484, %v4480
        %v4653 = vpack.c.b16 %v4485, %v4481
        %v4654 = vpack.c.b16 %v4486, %v4482
        %v4655 = vpack.c.b16 %v4491, %v4487
        %v4656 = vpack.c.b16 %v4492, %v4488
        %v4657 = vpack.c.b16 %v4493, %v4489
        %v4658 = vpack.c.b16 %v4494, %v4490
        %v4659 = vpack.c.b16 %v4499, %v4495
        %v4660 = vpack.c.b16 %v4500, %v4496
        %v4661 = vpack.c.b16 %v4501, %v4497
        %v4662 = vpack.c.b16 %v4502, %v4498
        %v4663 = vpack.c.b16 %v4507, %v4503
        %v4664 = vpack.c.b16 %v4508, %v4504
        %v4665 = vpack.c.b16 %v4509, %v4505
        %v4666 = vpack.c.b16 %v4510, %v4506
        %v4667 = vpack.c.b16 %v4515, %v4511
        %v4668 = vpack.c.b16 %v4516, %v4512
        %v4669 = vpack.c.b16 %v4517, %v4513
        %v4670 = vpack.c.b16 %v4518, %v4514
        %v4671 = vpack.c.b16 %v4523, %v4519
        %v4672 = vpack.c.b16 %v4524, %v4520
        %v4673 = vpack.c.b16 %v4525, %v4521
        %v4674 = vpack.c.b16 %v4526, %v4522
        %v4675 = vpack.c.b16 %v4531, %v4527
        %v4676 = vpack.c.b16 %v4532, %v4528
        %v4677 = vpack.c.b16 %v4533, %v4529
        %v4678 = vpack.c.b16 %v4534, %v4530
        %v4679 = vpack.c.b16 %v4539, %v4535
        %v4680 = vpack.c.b16 %v4540, %v4536
        %v4681 = vpack.c.b16 %v4541, %v4537
        %v4682 = vpack.c.b16 %v4542, %v4538
        %v4683 = vpack.c.b16 %v4547, %v4543
        %v4684 = vpack.c.b16 %v4548, %v4544
        %v4685 = vpack.c.b16 %v4549, %v4545
        %v4686 = vpack.c.b16 %v4550, %v4546
        %v4687 = vpack.c.b16 %v4555, %v4551
        %v4688 = vpack.c.b16 %v4556, %v4552
        %v4689 = vpack.c.b16 %v4557, %v4553
        %v4690 = vpack.c.b16 %v4558, %v4554
        %v4691 = vpack.c.b16 %v4563, %v4559
        %v4692 = vpack.c.b16 %v4564, %v4560
        %v4693 = vpack.c.b16 %v4565, %v4561
        %v4694 = vpack.c.b16 %v4566, %v4562
        %4823 = vmatpush.bf16.msra.mxu0 %v4595
        %4824 = vmatpush.bf16.msra.mxu0 %v4591
        %4825 = vmatpush.bf16.msra.mxu0 %v4587
        %4826 = vmatpush.bf16.msra.mxu0 %v4583
        %4827 = vmatpush.bf16.msra.mxu0 %v4579
        %4828 = vmatpush.bf16.msra.mxu0 %v4575
        %4829 = vmatpush.bf16.msra.mxu0 %v4571
        %4830 = vmatpush.bf16.msra.mxu0 %v4567
        %4831 = vmatmul.bf16.gmra.mxu0 %v4142
        %v4832 = vpop.f32.mrf.mxu0
        %v4833 = vadd.f32 0.0, %v4832
        %v4834 = vpop.f32.mrf.mxu0
        %v4835 = vadd.f32 0.0, %v4834
        %4836 = vdwg.mxu0
        %4837 = vmatpush.bf16.msra.mxu0 %v4627
        %4838 = vmatpush.bf16.msra.mxu0 %v4623
        %4839 = vmatpush.bf16.msra.mxu0 %v4619
        %4840 = vmatpush.bf16.msra.mxu0 %v4615
        %4841 = vmatpush.bf16.msra.mxu0 %v4611
        %4842 = vmatpush.bf16.msra.mxu0 %v4607
        %4843 = vmatpush.bf16.msra.mxu0 %v4603
        %4844 = vmatpush.bf16.msra.mxu0 %v4599
        %4845 = vmatmul.bf16.gmra.mxu0 %v4154
        %v4846 = vpop.f32.mrf.mxu0
        %v4847 = vadd.f32 %v4833, %v4846
        %v4848 = vpop.f32.mrf.mxu0
        %v4849 = vadd.f32 %v4835, %v4848
        %4850 = vdwg.mxu0
        %4851 = vmatpush.bf16.msra.mxu0 %v4659
        %4852 = vmatpush.bf16.msra.mxu0 %v4655
        %4853 = vmatpush.bf16.msra.mxu0 %v4651
        %4854 = vmatpush.bf16.msra.mxu0 %v4647
        %4855 = vmatpush.bf16.msra.mxu0 %v4643
        %4856 = vmatpush.bf16.msra.mxu0 %v4639
        %4857 = vmatpush.bf16.msra.mxu0 %v4635
        %4858 = vmatpush.bf16.msra.mxu0 %v4631
        %4859 = vmatmul.bf16.gmra.mxu0 %v4166
        %v4860 = vpop.f32.mrf.mxu0
        %v4861 = vadd.f32 %v4847, %v4860
        %v4862 = vpop.f32.mrf.mxu0
        %v4863 = vadd.f32 %v4849, %v4862
        %4864 = vdwg.mxu0
        %4865 = vmatpush.bf16.msra.mxu0 %v4691
        %4866 = vmatpush.bf16.msra.mxu0 %v4687
        %4867 = vmatpush.bf16.msra.mxu0 %v4683
        %4868 = vmatpush.bf16.msra.mxu0 %v4679
        %4869 = vmatpush.bf16.msra.mxu0 %v4675
        %4870 = vmatpush.bf16.msra.mxu0 %v4671
        %4871 = vmatpush.bf16.msra.mxu0 %v4667
        %4872 = vmatpush.bf16.msra.mxu0 %v4663
        %4873 = vmatmul.bf16.gmra.mxu0 %v4178
        %v4874 = vpop.f32.mrf.mxu0
        %v4875 = vadd.f32 %v4861, %v4874
        %v4876 = vpop.f32.mrf.mxu0
        %v4877 = vadd.f32 %v4863, %v4876
        %4878 = vdwg.mxu0
        %4879 = vmatpush.bf16.msra.mxu0 %v4596
        %4880 = vmatpush.bf16.msra.mxu0 %v4592
        %4881 = vmatpush.bf16.msra.mxu0 %v4588
        %4882 = vmatpush.bf16.msra.mxu0 %v4584
        %4883 = vmatpush.bf16.msra.mxu0 %v4580
        %4884 = vmatpush.bf16.msra.mxu0 %v4576
        %4885 = vmatpush.bf16.msra.mxu0 %v4572
        %4886 = vmatpush.bf16.msra.mxu0 %v4568
        %4887 = vmatmul.bf16.gmra.mxu0 %v4142
        %v4888 = vpop.f32.mrf.mxu0
        %v4889 = vadd.f32 0.0, %v4888
        %v4890 = vpop.f32.mrf.mxu0
        %v4891 = vadd.f32 0.0, %v4890
        %4892 = vdwg.mxu0
        %4893 = vmatpush.bf16.msra.mxu0 %v4628
        %4894 = vmatpush.bf16.msra.mxu0 %v4624
        %4895 = vmatpush.bf16.msra.mxu0 %v4620
        %4896 = vmatpush.bf16.msra.mxu0 %v4616
        %4897 = vmatpush.bf16.msra.mxu0 %v4612
        %4898 = vmatpush.bf16.msra.mxu0 %v4608
        %4899 = vmatpush.bf16.msra.mxu0 %v4604
        %4900 = vmatpush.bf16.msra.mxu0 %v4600
        %4901 = vmatmul.bf16.gmra.mxu0 %v4154
        %v4902 = vpop.f32.mrf.mxu0
        %v4903 = vadd.f32 %v4889, %v4902
        %v4904 = vpop.f32.mrf.mxu0
        %v4905 = vadd.f32 %v4891, %v4904
        %4906 = vdwg.mxu0
        %4907 = vmatpush.bf16.msra.mxu0 %v4660
        %4908 = vmatpush.bf16.msra.mxu0 %v4656
        %4909 = vmatpush.bf16.msra.mxu0 %v4652
        %4910 = vmatpush.bf16.msra.mxu0 %v4648
        %4911 = vmatpush.bf16.msra.mxu0 %v4644
        %4912 = vmatpush.bf16.msra.mxu0 %v4640
        %4913 = vmatpush.bf16.msra.mxu0 %v4636
        %4914 = vmatpush.bf16.msra.mxu0 %v4632
        %4915 = vmatmul.bf16.gmra.mxu0 %v4166
        %v4916 = vpop.f32.mrf.mxu0
        %v4917 = vadd.f32 %v4903, %v4916
        %v4918 = vpop.f32.mrf.mxu0
        %v4919 = vadd.f32 %v4905, %v4918
        %4920 = vdwg.mxu0
        %4921 = vmatpush.bf16.msra.mxu0 %v4692
        %4922 = vmatpush.bf16.msra.mxu0 %v4688
        %4923 = vmatpush.bf16.msra.mxu0 %v4684
        %4924 = vmatpush.bf16.msra.mxu0 %v4680
        %4925 = vmatpush.bf16.msra.mxu0 %v4676
        %4926 = vmatpush.bf16.msra.mxu0 %v4672
        %4927 = vmatpush.bf16.msra.mxu0 %v4668
        %4928 = vmatpush.bf16.msra.mxu0 %v4664
        %4929 = vmatmul.bf16.gmra.mxu0 %v4178
        %v4930 = vpop.f32.mrf.mxu0
        %v4931 = vadd.f32 %v4917, %v4930
        %v4932 = vpop.f32.mrf.mxu0
        %v4933 = vadd.f32 %v4919, %v4932
        %4934 = vdwg.mxu0
        %4935 = vmatpush.bf16.msra.mxu0 %v4597
        %4936 = vmatpush.bf16.msra.mxu0 %v4593
        %4937 = vmatpush.bf16.msra.mxu0 %v4589
        %4938 = vmatpush.bf16.msra.mxu0 %v4585
        %4939 = vmatpush.bf16.msra.mxu0 %v4581
        %4940 = vmatpush.bf16.msra.mxu0 %v4577
        %4941 = vmatpush.bf16.msra.mxu0 %v4573
        %4942 = vmatpush.bf16.msra.mxu0 %v4569
        %4943 = vmatmul.bf16.gmra.mxu0 %v4142
        %v4944 = vpop.f32.mrf.mxu0
        %v4945 = vadd.f32 0.0, %v4944
        %v4946 = vpop.f32.mrf.mxu0
        %v4947 = vadd.f32 0.0, %v4946
        %4948 = vdwg.mxu0
        %4949 = vmatpush.bf16.msra.mxu0 %v4629
        %4950 = vmatpush.bf16.msra.mxu0 %v4625
        %4951 = vmatpush.bf16.msra.mxu0 %v4621
        %4952 = vmatpush.bf16.msra.mxu0 %v4617
        %4953 = vmatpush.bf16.msra.mxu0 %v4613
        %4954 = vmatpush.bf16.msra.mxu0 %v4609
        %4955 = vmatpush.bf16.msra.mxu0 %v4605
        %4956 = vmatpush.bf16.msra.mxu0 %v4601
        %4957 = vmatmul.bf16.gmra.mxu0 %v4154
        %v4958 = vpop.f32.mrf.mxu0
        %v4959 = vadd.f32 %v4945, %v4958
        %v4960 = vpop.f32.mrf.mxu0
        %v4961 = vadd.f32 %v4947, %v4960
        %4962 = vdwg.mxu0
        %4963 = vmatpush.bf16.msra.mxu0 %v4661
        %4964 = vmatpush.bf16.msra.mxu0 %v4657
        %4965 = vmatpush.bf16.msra.mxu0 %v4653
        %4966 = vmatpush.bf16.msra.mxu0 %v4649
        %4967 = vmatpush.bf16.msra.mxu0 %v4645
        %4968 = vmatpush.bf16.msra.mxu0 %v4641
        %4969 = vmatpush.bf16.msra.mxu0 %v4637
        %4970 = vmatpush.bf16.msra.mxu0 %v4633
        %4971 = vmatmul.bf16.gmra.mxu0 %v4166
        %v4972 = vpop.f32.mrf.mxu0
        %v4973 = vadd.f32 %v4959, %v4972
        %v4974 = vpop.f32.mrf.mxu0
        %v4975 = vadd.f32 %v4961, %v4974
        %4976 = vdwg.mxu0
        %4977 = vmatpush.bf16.msra.mxu0 %v4693
        %4978 = vmatpush.bf16.msra.mxu0 %v4689
        %4979 = vmatpush.bf16.msra.mxu0 %v4685
        %4980 = vmatpush.bf16.msra.mxu0 %v4681
        %4981 = vmatpush.bf16.msra.mxu0 %v4677
        %4982 = vmatpush.bf16.msra.mxu0 %v4673
        %4983 = vmatpush.bf16.msra.mxu0 %v4669
        %4984 = vmatpush.bf16.msra.mxu0 %v4665
        %4985 = vmatmul.bf16.gmra.mxu0 %v4178
        %v4986 = vpop.f32.mrf.mxu0
        %v4987 = vadd.f32 %v4973, %v4986
        %v4988 = vpop.f32.mrf.mxu0
        %v4989 = vadd.f32 %v4975, %v4988
        %4990 = vdwg.mxu0
        %4991 = vmatpush.bf16.msra.mxu0 %v4598
        %4992 = vmatpush.bf16.msra.mxu0 %v4594
        %4993 = vmatpush.bf16.msra.mxu0 %v4590
        %4994 = vmatpush.bf16.msra.mxu0 %v4586
        %4995 = vmatpush.bf16.msra.mxu0 %v4582
        %4996 = vmatpush.bf16.msra.mxu0 %v4578
        %4997 = vmatpush.bf16.msra.mxu0 %v4574
        %4998 = vmatpush.bf16.msra.mxu0 %v4570
        %4999 = vmatmul.bf16.gmra.mxu0 %v4142
        %v5000 = vpop.f32.mrf.mxu0
        %v5001 = vadd.f32 0.0, %v5000
        %v5002 = vpop.f32.mrf.mxu0
        %v5003 = vadd.f32 0.0, %v5002
        %5004 = vdwg.mxu0
        %5005 = vmatpush.bf16.msra.mxu0 %v4630
        %5006 = vmatpush.bf16.msra.mxu0 %v4626
        %5007 = vmatpush.bf16.msra.mxu0 %v4622
        %5008 = vmatpush.bf16.msra.mxu0 %v4618
        %5009 = vmatpush.bf16.msra.mxu0 %v4614
        %5010 = vmatpush.bf16.msra.mxu0 %v4610
        %5011 = vmatpush.bf16.msra.mxu0 %v4606
        %5012 = vmatpush.bf16.msra.mxu0 %v4602
        %5013 = vmatmul.bf16.gmra.mxu0 %v4154
        %v5014 = vpop.f32.mrf.mxu0
        %v5015 = vadd.f32 %v5001, %v5014
        %v5016 = vpop.f32.mrf.mxu0
        %v5017 = vadd.f32 %v5003, %v5016
        %5018 = vdwg.mxu0
        %5019 = vmatpush.bf16.msra.mxu0 %v4662
        %5020 = vmatpush.bf16.msra.mxu0 %v4658
        %5021 = vmatpush.bf16.msra.mxu0 %v4654
        %5022 = vmatpush.bf16.msra.mxu0 %v4650
        %5023 = vmatpush.bf16.msra.mxu0 %v4646
        %5024 = vmatpush.bf16.msra.mxu0 %v4642
        %5025 = vmatpush.bf16.msra.mxu0 %v4638
        %5026 = vmatpush.bf16.msra.mxu0 %v4634
        %5027 = vmatmul.bf16.gmra.mxu0 %v4166
        %v5028 = vpop.f32.mrf.mxu0
        %v5029 = vadd.f32 %v5015, %v5028
        %v5030 = vpop.f32.mrf.mxu0
        %v5031 = vadd.f32 %v5017, %v5030
        %5032 = vdwg.mxu0
        %5033 = vmatpush.bf16.msra.mxu0 %v4694
        %5034 = vmatpush.bf16.msra.mxu0 %v4690
        %5035 = vmatpush.bf16.msra.mxu0 %v4686
        %5036 = vmatpush.bf16.msra.mxu0 %v4682
        %5037 = vmatpush.bf16.msra.mxu0 %v4678
        %5038 = vmatpush.bf16.msra.mxu0 %v4674
        %5039 = vmatpush.bf16.msra.mxu0 %v4670
        %5040 = vmatpush.bf16.msra.mxu0 %v4666
        %5041 = vmatmul.bf16.gmra.mxu0 %v4178
        %v5042 = vpop.f32.mrf.mxu0
        %v5043 = vadd.f32 %v5029, %v5042
        %v5044 = vpop.f32.mrf.mxu0
        %v5045 = vadd.f32 %v5031, %v5044
        %5046 = vdwg.mxu0
        %v5175 = vunpack.c.l.b16 %v3858
        %v5176 = vunpack.c.h.b16 %v3858
        %v5177 = vunpack.c.l.b16 %v3859
        %v5178 = vunpack.c.h.b16 %v3859
        %v5179 = vunpack.c.l.b16 %v3860
        %v5180 = vunpack.c.h.b16 %v3860
        %v5181 = vunpack.c.l.b16 %v3861
        %v5182 = vunpack.c.h.b16 %v3861
        %v5183 = vunpack.c.l.b16 %v3862
        %v5184 = vunpack.c.h.b16 %v3862
        %v5185 = vunpack.c.l.b16 %v3863
        %v5186 = vunpack.c.h.b16 %v3863
        %v5187 = vunpack.c.l.b16 %v3864
        %v5188 = vunpack.c.h.b16 %v3864
        %v5189 = vunpack.c.l.b16 %v3865
        %v5190 = vunpack.c.h.b16 %v3865
        %v5191 = vunpack.c.l.b16 %v3866
        %v5192 = vunpack.c.h.b16 %v3866
        %v5193 = vunpack.c.l.b16 %v3867
        %v5194 = vunpack.c.h.b16 %v3867
        %v5195 = vunpack.c.l.b16 %v3868
        %v5196 = vunpack.c.h.b16 %v3868
        %v5197 = vunpack.c.l.b16 %v3869
        %v5198 = vunpack.c.h.b16 %v3869
        %v5199 = vunpack.c.l.b16 %v3870
        %v5200 = vunpack.c.h.b16 %v3870
        %v5201 = vunpack.c.l.b16 %v3871
        %v5202 = vunpack.c.h.b16 %v3871
        %v5203 = vunpack.c.l.b16 %v3872
        %v5204 = vunpack.c.h.b16 %v3872
        %v5205 = vunpack.c.l.b16 %v3873
        %v5206 = vunpack.c.h.b16 %v3873
        %v5207 = vunpack.c.l.b16 %v3874
        %v5208 = vunpack.c.h.b16 %v3874
        %v5209 = vunpack.c.l.b16 %v3875
        %v5210 = vunpack.c.h.b16 %v3875
        %v5211 = vunpack.c.l.b16 %v3876
        %v5212 = vunpack.c.h.b16 %v3876
        %v5213 = vunpack.c.l.b16 %v3877
        %v5214 = vunpack.c.h.b16 %v3877
        %v5215 = vunpack.c.l.b16 %v3878
        %v5216 = vunpack.c.h.b16 %v3878
        %v5217 = vunpack.c.l.b16 %v3879
        %v5218 = vunpack.c.h.b16 %v3879
        %v5219 = vunpack.c.l.b16 %v3880
        %v5220 = vunpack.c.h.b16 %v3880
        %v5221 = vunpack.c.l.b16 %v3881
        %v5222 = vunpack.c.h.b16 %v3881
        %v5223 = vunpack.c.l.b16 %v3882
        %v5224 = vunpack.c.h.b16 %v3882
        %v5225 = vunpack.c.l.b16 %v3883
        %v5226 = vunpack.c.h.b16 %v3883
        %v5227 = vunpack.c.l.b16 %v3884
        %v5228 = vunpack.c.h.b16 %v3884
        %v5229 = vunpack.c.l.b16 %v3885
        %v5230 = vunpack.c.h.b16 %v3885
        %v5231 = vunpack.c.l.b16 %v3886
        %v5232 = vunpack.c.h.b16 %v3886
        %v5233 = vunpack.c.l.b16 %v3887
        %v5234 = vunpack.c.h.b16 %v3887
        %v5235 = vunpack.c.l.b16 %v3888
        %v5236 = vunpack.c.h.b16 %v3888
        %v5237 = vunpack.c.l.b16 %v3889
        %v5238 = vunpack.c.h.b16 %v3889
        %v5239 = vunpack.c.l.b16 %v3890
        %v5240 = vunpack.c.h.b16 %v3890
        %v5241 = vunpack.c.l.b16 %v3891
        %v5242 = vunpack.c.h.b16 %v3891
        %v5243 = vunpack.c.l.b16 %v3892
        %v5244 = vunpack.c.h.b16 %v3892
        %v5245 = vunpack.c.l.b16 %v3893
        %v5246 = vunpack.c.h.b16 %v3893
        %v5247 = vunpack.c.l.b16 %v3894
        %v5248 = vunpack.c.h.b16 %v3894
        %v5249 = vunpack.c.l.b16 %v3895
        %v5250 = vunpack.c.h.b16 %v3895
        %v5251 = vunpack.c.l.b16 %v3896
        %v5252 = vunpack.c.h.b16 %v3896
        %v5253 = vunpack.c.l.b16 %v3897
        %v5254 = vunpack.c.h.b16 %v3897
        %v5255 = vunpack.c.l.b16 %v3898
        %v5256 = vunpack.c.h.b16 %v3898
        %v5257 = vunpack.c.l.b16 %v3899
        %v5258 = vunpack.c.h.b16 %v3899
        %v5259 = vunpack.c.l.b16 %v3900
        %v5260 = vunpack.c.h.b16 %v3900
        %v5261 = vunpack.c.l.b16 %v3901
        %v5262 = vunpack.c.h.b16 %v3901
        %v5263 = vunpack.c.l.b16 %v3902
        %v5264 = vunpack.c.h.b16 %v3902
        %v5265 = vunpack.c.l.b16 %v3903
        %v5266 = vunpack.c.h.b16 %v3903
        %v5267 = vunpack.c.l.b16 %v3904
        %v5268 = vunpack.c.h.b16 %v3904
        %v5269 = vunpack.c.l.b16 %v3905
        %v5270 = vunpack.c.h.b16 %v3905
        %v5271 = vunpack.c.l.b16 %v3906
        %v5272 = vunpack.c.h.b16 %v3906
        %v5273 = vunpack.c.l.b16 %v3907
        %v5274 = vunpack.c.h.b16 %v3907
        %v5275 = vunpack.c.l.b16 %v3908
        %v5276 = vunpack.c.h.b16 %v3908
        %v5277 = vunpack.c.l.b16 %v3909
        %v5278 = vunpack.c.h.b16 %v3909
        %v5279 = vunpack.c.l.b16 %v3910
        %v5280 = vunpack.c.h.b16 %v3910
        %v5281 = vunpack.c.l.b16 %v3911
        %v5282 = vunpack.c.h.b16 %v3911
        %v5283 = vunpack.c.l.b16 %v3912
        %v5284 = vunpack.c.h.b16 %v3912
        %v5285 = vunpack.c.l.b16 %v3913
        %v5286 = vunpack.c.h.b16 %v3913
        %v5287 = vunpack.c.l.b16 %v3914
        %v5288 = vunpack.c.h.b16 %v3914
        %v5289 = vunpack.c.l.b16 %v3915
        %v5290 = vunpack.c.h.b16 %v3915
        %v5291 = vunpack.c.l.b16 %v3916
        %v5292 = vunpack.c.h.b16 %v3916
        %v5293 = vunpack.c.l.b16 %v3917
        %v5294 = vunpack.c.h.b16 %v3917
        %v5295 = vunpack.c.l.b16 %v3918
        %v5296 = vunpack.c.h.b16 %v3918
        %v5297 = vunpack.c.l.b16 %v3919
        %v5298 = vunpack.c.h.b16 %v3919
        %v5299 = vunpack.c.l.b16 %v3920
        %v5300 = vunpack.c.h.b16 %v3920
        %v5301 = vunpack.c.l.b16 %v3921
        %v5302 = vunpack.c.h.b16 %v3921
        %v5303 = vunpack.c.l.b16 %v3922
        %v5304 = vunpack.c.h.b16 %v3922
        %v5305 = vunpack.c.l.b16 %v3923
        %v5306 = vunpack.c.h.b16 %v3923
        %v5307 = vunpack.c.l.b16 %v3924
        %v5308 = vunpack.c.h.b16 %v3924
        %v5309 = vunpack.c.l.b16 %v3925
        %v5310 = vunpack.c.h.b16 %v3925
        %v5311 = vunpack.c.l.b16 %v3926
        %v5312 = vunpack.c.h.b16 %v3926
        %v5313 = vunpack.c.l.b16 %v3927
        %v5314 = vunpack.c.h.b16 %v3927
        %v5315 = vunpack.c.l.b16 %v3928
        %v5316 = vunpack.c.h.b16 %v3928
        %v5317 = vunpack.c.l.b16 %v3929
        %v5318 = vunpack.c.h.b16 %v3929
        %v5319 = vunpack.c.l.b16 %v3930
        %v5320 = vunpack.c.h.b16 %v3930
        %v5321 = vunpack.c.l.b16 %v3931
        %v5322 = vunpack.c.h.b16 %v3931
        %v5323 = vunpack.c.l.b16 %v3932
        %v5324 = vunpack.c.h.b16 %v3932
        %v5325 = vunpack.c.l.b16 %v3933
        %v5326 = vunpack.c.h.b16 %v3933
        %v5327 = vunpack.c.l.b16 %v3934
        %v5328 = vunpack.c.h.b16 %v3934
        %v5329 = vunpack.c.l.b16 %v3935
        %v5330 = vunpack.c.h.b16 %v3935
        %v5331 = vunpack.c.l.b16 %v3936
        %v5332 = vunpack.c.h.b16 %v3936
        %v5333 = vunpack.c.l.b16 %v3937
        %v5334 = vunpack.c.h.b16 %v3937
        %v5335 = vunpack.c.l.b16 %v3938
        %v5336 = vunpack.c.h.b16 %v3938
        %v5337 = vunpack.c.l.b16 %v3939
        %v5338 = vunpack.c.h.b16 %v3939
        %v5339 = vunpack.c.l.b16 %v3940
        %v5340 = vunpack.c.h.b16 %v3940
        %v5341 = vunpack.c.l.b16 %v3941
        %v5342 = vunpack.c.h.b16 %v3941
        %v5343 = vunpack.c.l.b16 %v3942
        %v5344 = vunpack.c.h.b16 %v3942
        %v5345 = vunpack.c.l.b16 %v3943
        %v5346 = vunpack.c.h.b16 %v3943
        %v5347 = vunpack.c.l.b16 %v3944
        %v5348 = vunpack.c.h.b16 %v3944
        %v5349 = vunpack.c.l.b16 %v3945
        %v5350 = vunpack.c.h.b16 %v3945
        %v5351 = vunpack.c.l.b16 %v3946
        %v5352 = vunpack.c.h.b16 %v3946
        %v5353 = vunpack.c.l.b16 %v3947
        %v5354 = vunpack.c.h.b16 %v3947
        %v5355 = vunpack.c.l.b16 %v3948
        %v5356 = vunpack.c.h.b16 %v3948
        %v5357 = vunpack.c.l.b16 %v3949
        %v5358 = vunpack.c.h.b16 %v3949
        %v5359 = vunpack.c.l.b16 %v3950
        %v5360 = vunpack.c.h.b16 %v3950
        %v5361 = vunpack.c.l.b16 %v3951
        %v5362 = vunpack.c.h.b16 %v3951
        %v5363 = vunpack.c.l.b16 %v3952
        %v5364 = vunpack.c.h.b16 %v3952
        %v5365 = vunpack.c.l.b16 %v3953
        %v5366 = vunpack.c.h.b16 %v3953
        %v5367 = vunpack.c.l.b16 %v3954
        %v5368 = vunpack.c.h.b16 %v3954
        %v5369 = vunpack.c.l.b16 %v3955
        %v5370 = vunpack.c.h.b16 %v3955
        %v5371 = vunpack.c.l.b16 %v3956
        %v5372 = vunpack.c.h.b16 %v3956
        %v5373 = vunpack.c.l.b16 %v3957
        %v5374 = vunpack.c.h.b16 %v3957
        %v5375 = vunpack.c.l.b16 %v3958
        %v5376 = vunpack.c.h.b16 %v3958
        %v5377 = vunpack.c.l.b16 %v3959
        %v5378 = vunpack.c.h.b16 %v3959
        %v5379 = vunpack.c.l.b16 %v3960
        %v5380 = vunpack.c.h.b16 %v3960
        %v5381 = vunpack.c.l.b16 %v3961
        %v5382 = vunpack.c.h.b16 %v3961
        %v5383 = vunpack.c.l.b16 %v3962
        %v5384 = vunpack.c.h.b16 %v3962
        %v5385 = vunpack.c.l.b16 %v3963
        %v5386 = vunpack.c.h.b16 %v3963
        %v5387 = vunpack.c.l.b16 %v3964
        %v5388 = vunpack.c.h.b16 %v3964
        %v5389 = vunpack.c.l.b16 %v3965
        %v5390 = vunpack.c.h.b16 %v3965
        %v5391 = vunpack.c.l.b16 %v3966
        %v5392 = vunpack.c.h.b16 %v3966
        %v5393 = vunpack.c.l.b16 %v3967
        %v5394 = vunpack.c.h.b16 %v3967
        %v5395 = vunpack.c.l.b16 %v3968
        %v5396 = vunpack.c.h.b16 %v3968
        %v5397 = vunpack.c.l.b16 %v3969
        %v5398 = vunpack.c.h.b16 %v3969
        %v5399 = vunpack.c.l.b16 %v3970
        %v5400 = vunpack.c.h.b16 %v3970
        %v5401 = vunpack.c.l.b16 %v3971
        %v5402 = vunpack.c.h.b16 %v3971
        %v5403 = vunpack.c.l.b16 %v3972
        %v5404 = vunpack.c.h.b16 %v3972
        %v5405 = vunpack.c.l.b16 %v3973
        %v5406 = vunpack.c.h.b16 %v3973
        %v5407 = vunpack.c.l.b16 %v3974
        %v5408 = vunpack.c.h.b16 %v3974
        %v5409 = vunpack.c.l.b16 %v3975
        %v5410 = vunpack.c.h.b16 %v3975
        %v5411 = vunpack.c.l.b16 %v3976
        %v5412 = vunpack.c.h.b16 %v3976
        %v5413 = vunpack.c.l.b16 %v3977
        %v5414 = vunpack.c.h.b16 %v3977
        %v5415 = vunpack.c.l.b16 %v3978
        %v5416 = vunpack.c.h.b16 %v3978
        %v5417 = vunpack.c.l.b16 %v3979
        %v5418 = vunpack.c.h.b16 %v3979
        %v5419 = vunpack.c.l.b16 %v3980
        %v5420 = vunpack.c.h.b16 %v3980
        %v5421 = vunpack.c.l.b16 %v3981
        %v5422 = vunpack.c.h.b16 %v3981
        %v5423 = vunpack.c.l.b16 %v3982
        %v5424 = vunpack.c.h.b16 %v3982
        %v5425 = vunpack.c.l.b16 %v3983
        %v5426 = vunpack.c.h.b16 %v3983
        %v5427 = vunpack.c.l.b16 %v3984
        %v5428 = vunpack.c.h.b16 %v3984
        %v5429 = vunpack.c.l.b16 %v3985
        %v5430 = vunpack.c.h.b16 %v3985
        %v5431 = vpack.c.b16 %v5179, %v5175
        %v5432 = vpack.c.b16 %v5180, %v5176
        %v5433 = vpack.c.b16 %v5181, %v5177
        %v5434 = vpack.c.b16 %v5182, %v5178
        %v5435 = vpack.c.b16 %v5187, %v5183
        %v5436 = vpack.c.b16 %v5188, %v5184
        %v5437 = vpack.c.b16 %v5189, %v5185
        %v5438 = vpack.c.b16 %v5190, %v5186
        %v5439 = vpack.c.b16 %v5195, %v5191
        %v5440 = vpack.c.b16 %v5196, %v5192
        %v5441 = vpack.c.b16 %v5197, %v5193
        %v5442 = vpack.c.b16 %v5198, %v5194
        %v5443 = vpack.c.b16 %v5203, %v5199
        %v5444 = vpack.c.b16 %v5204, %v5200
        %v5445 = vpack.c.b16 %v5205, %v5201
        %v5446 = vpack.c.b16 %v5206, %v5202
        %v5447 = vpack.c.b16 %v5211, %v5207
        %v5448 = vpack.c.b16 %v5212, %v5208
        %v5449 = vpack.c.b16 %v5213, %v5209
        %v5450 = vpack.c.b16 %v5214, %v5210
        %v5451 = vpack.c.b16 %v5219, %v5215
        %v5452 = vpack.c.b16 %v5220, %v5216
        %v5453 = vpack.c.b16 %v5221, %v5217
        %v5454 = vpack.c.b16 %v5222, %v5218
        %v5455 = vpack.c.b16 %v5227, %v5223
        %v5456 = vpack.c.b16 %v5228, %v5224
        %v5457 = vpack.c.b16 %v5229, %v5225
        %v5458 = vpack.c.b16 %v5230, %v5226
        %v5459 = vpack.c.b16 %v5235, %v5231
        %v5460 = vpack.c.b16 %v5236, %v5232
        %v5461 = vpack.c.b16 %v5237, %v5233
        %v5462 = vpack.c.b16 %v5238, %v5234
        %v5463 = vpack.c.b16 %v5243, %v5239
        %v5464 = vpack.c.b16 %v5244, %v5240
        %v5465 = vpack.c.b16 %v5245, %v5241
        %v5466 = vpack.c.b16 %v5246, %v5242
        %v5467 = vpack.c.b16 %v5251, %v5247
        %v5468 = vpack.c.b16 %v5252, %v5248
        %v5469 = vpack.c.b16 %v5253, %v5249
        %v5470 = vpack.c.b16 %v5254, %v5250
        %v5471 = vpack.c.b16 %v5259, %v5255
        %v5472 = vpack.c.b16 %v5260, %v5256
        %v5473 = vpack.c.b16 %v5261, %v5257
        %v5474 = vpack.c.b16 %v5262, %v5258
        %v5475 = vpack.c.b16 %v5267, %v5263
        %v5476 = vpack.c.b16 %v5268, %v5264
        %v5477 = vpack.c.b16 %v5269, %v5265
        %v5478 = vpack.c.b16 %v5270, %v5266
        %v5479 = vpack.c.b16 %v5275, %v5271
        %v5480 = vpack.c.b16 %v5276, %v5272
        %v5481 = vpack.c.b16 %v5277, %v5273
        %v5482 = vpack.c.b16 %v5278, %v5274
        %v5483 = vpack.c.b16 %v5283, %v5279
        %v5484 = vpack.c.b16 %v5284, %v5280
        %v5485 = vpack.c.b16 %v5285, %v5281
        %v5486 = vpack.c.b16 %v5286, %v5282
        %v5487 = vpack.c.b16 %v5291, %v5287
        %v5488 = vpack.c.b16 %v5292, %v5288
        %v5489 = vpack.c.b16 %v5293, %v5289
        %v5490 = vpack.c.b16 %v5294, %v5290
        %v5491 = vpack.c.b16 %v5299, %v5295
        %v5492 = vpack.c.b16 %v5300, %v5296
        %v5493 = vpack.c.b16 %v5301, %v5297
        %v5494 = vpack.c.b16 %v5302, %v5298
        %v5495 = vpack.c.b16 %v5307, %v5303
        %v5496 = vpack.c.b16 %v5308, %v5304
        %v5497 = vpack.c.b16 %v5309, %v5305
        %v5498 = vpack.c.b16 %v5310, %v5306
        %v5499 = vpack.c.b16 %v5315, %v5311
        %v5500 = vpack.c.b16 %v5316, %v5312
        %v5501 = vpack.c.b16 %v5317, %v5313
        %v5502 = vpack.c.b16 %v5318, %v5314
        %v5503 = vpack.c.b16 %v5323, %v5319
        %v5504 = vpack.c.b16 %v5324, %v5320
        %v5505 = vpack.c.b16 %v5325, %v5321
        %v5506 = vpack.c.b16 %v5326, %v5322
        %v5507 = vpack.c.b16 %v5331, %v5327
        %v5508 = vpack.c.b16 %v5332, %v5328
        %v5509 = vpack.c.b16 %v5333, %v5329
        %v5510 = vpack.c.b16 %v5334, %v5330
        %v5511 = vpack.c.b16 %v5339, %v5335
        %v5512 = vpack.c.b16 %v5340, %v5336
        %v5513 = vpack.c.b16 %v5341, %v5337
        %v5514 = vpack.c.b16 %v5342, %v5338
        %v5515 = vpack.c.b16 %v5347, %v5343
        %v5516 = vpack.c.b16 %v5348, %v5344
        %v5517 = vpack.c.b16 %v5349, %v5345
        %v5518 = vpack.c.b16 %v5350, %v5346
        %v5519 = vpack.c.b16 %v5355, %v5351
        %v5520 = vpack.c.b16 %v5356, %v5352
        %v5521 = vpack.c.b16 %v5357, %v5353
        %v5522 = vpack.c.b16 %v5358, %v5354
        %v5523 = vpack.c.b16 %v5363, %v5359
        %v5524 = vpack.c.b16 %v5364, %v5360
        %v5525 = vpack.c.b16 %v5365, %v5361
        %v5526 = vpack.c.b16 %v5366, %v5362
        %v5527 = vpack.c.b16 %v5371, %v5367
        %v5528 = vpack.c.b16 %v5372, %v5368
        %v5529 = vpack.c.b16 %v5373, %v5369
        %v5530 = vpack.c.b16 %v5374, %v5370
        %v5531 = vpack.c.b16 %v5379, %v5375
        %v5532 = vpack.c.b16 %v5380, %v5376
        %v5533 = vpack.c.b16 %v5381, %v5377
        %v5534 = vpack.c.b16 %v5382, %v5378
        %v5535 = vpack.c.b16 %v5387, %v5383
        %v5536 = vpack.c.b16 %v5388, %v5384
        %v5537 = vpack.c.b16 %v5389, %v5385
        %v5538 = vpack.c.b16 %v5390, %v5386
        %v5539 = vpack.c.b16 %v5395, %v5391
        %v5540 = vpack.c.b16 %v5396, %v5392
        %v5541 = vpack.c.b16 %v5397, %v5393
        %v5542 = vpack.c.b16 %v5398, %v5394
        %v5543 = vpack.c.b16 %v5403, %v5399
        %v5544 = vpack.c.b16 %v5404, %v5400
        %v5545 = vpack.c.b16 %v5405, %v5401
        %v5546 = vpack.c.b16 %v5406, %v5402
        %v5547 = vpack.c.b16 %v5411, %v5407
        %v5548 = vpack.c.b16 %v5412, %v5408
        %v5549 = vpack.c.b16 %v5413, %v5409
        %v5550 = vpack.c.b16 %v5414, %v5410
        %v5551 = vpack.c.b16 %v5419, %v5415
        %v5552 = vpack.c.b16 %v5420, %v5416
        %v5553 = vpack.c.b16 %v5421, %v5417
        %v5554 = vpack.c.b16 %v5422, %v5418
        %v5555 = vpack.c.b16 %v5427, %v5423
        %v5556 = vpack.c.b16 %v5428, %v5424
        %v5557 = vpack.c.b16 %v5429, %v5425
        %v5558 = vpack.c.b16 %v5430, %v5426
        %5687 = vmatpush.bf16.msra.mxu0 %v5459
        %5688 = vmatpush.bf16.msra.mxu0 %v5455
        %5689 = vmatpush.bf16.msra.mxu0 %v5451
        %5690 = vmatpush.bf16.msra.mxu0 %v5447
        %5691 = vmatpush.bf16.msra.mxu0 %v5443
        %5692 = vmatpush.bf16.msra.mxu0 %v5439
        %5693 = vmatpush.bf16.msra.mxu0 %v5435
        %5694 = vmatpush.bf16.msra.mxu0 %v5431
        %5695 = vmatmul.bf16.gmra.mxu0 %v3854
        %v5696 = vpop.f32.mrf.mxu0
        %v5697 = vadd.f32 %v4875, %v5696
        %v5698 = vpop.f32.mrf.mxu0
        %v5699 = vadd.f32 %v4877, %v5698
        %5700 = vdwg.mxu0
        %5701 = vmatpush.bf16.msra.mxu0 %v5491
        %5702 = vmatpush.bf16.msra.mxu0 %v5487
        %5703 = vmatpush.bf16.msra.mxu0 %v5483
        %5704 = vmatpush.bf16.msra.mxu0 %v5479
        %5705 = vmatpush.bf16.msra.mxu0 %v5475
        %5706 = vmatpush.bf16.msra.mxu0 %v5471
        %5707 = vmatpush.bf16.msra.mxu0 %v5467
        %5708 = vmatpush.bf16.msra.mxu0 %v5463
        %5709 = vmatmul.bf16.gmra.mxu0 %v3855
        %v5710 = vpop.f32.mrf.mxu0
        %v5711 = vadd.f32 %v5697, %v5710
        %v5712 = vpop.f32.mrf.mxu0
        %v5713 = vadd.f32 %v5699, %v5712
        %5714 = vdwg.mxu0
        %5715 = vmatpush.bf16.msra.mxu0 %v5523
        %5716 = vmatpush.bf16.msra.mxu0 %v5519
        %5717 = vmatpush.bf16.msra.mxu0 %v5515
        %5718 = vmatpush.bf16.msra.mxu0 %v5511
        %5719 = vmatpush.bf16.msra.mxu0 %v5507
        %5720 = vmatpush.bf16.msra.mxu0 %v5503
        %5721 = vmatpush.bf16.msra.mxu0 %v5499
        %5722 = vmatpush.bf16.msra.mxu0 %v5495
        %5723 = vmatmul.bf16.gmra.mxu0 %v3856
        %v5724 = vpop.f32.mrf.mxu0
        %v5725 = vadd.f32 %v5711, %v5724
        %v5726 = vpop.f32.mrf.mxu0
        %v5727 = vadd.f32 %v5713, %v5726
        %5728 = vdwg.mxu0
        %5729 = vmatpush.bf16.msra.mxu0 %v5555
        %5730 = vmatpush.bf16.msra.mxu0 %v5551
        %5731 = vmatpush.bf16.msra.mxu0 %v5547
        %5732 = vmatpush.bf16.msra.mxu0 %v5543
        %5733 = vmatpush.bf16.msra.mxu0 %v5539
        %5734 = vmatpush.bf16.msra.mxu0 %v5535
        %5735 = vmatpush.bf16.msra.mxu0 %v5531
        %5736 = vmatpush.bf16.msra.mxu0 %v5527
        %5737 = vmatmul.bf16.gmra.mxu0 %v3857
        %v5738 = vpop.f32.mrf.mxu0
        %v5739 = vadd.f32 %v5725, %v5738
        %v5740 = vpop.f32.mrf.mxu0
        %v5741 = vadd.f32 %v5727, %v5740
        %5742 = vdwg.mxu0
        %5743 = vmatpush.bf16.msra.mxu0 %v5460
        %5744 = vmatpush.bf16.msra.mxu0 %v5456
        %5745 = vmatpush.bf16.msra.mxu0 %v5452
        %5746 = vmatpush.bf16.msra.mxu0 %v5448
        %5747 = vmatpush.bf16.msra.mxu0 %v5444
        %5748 = vmatpush.bf16.msra.mxu0 %v5440
        %5749 = vmatpush.bf16.msra.mxu0 %v5436
        %5750 = vmatpush.bf16.msra.mxu0 %v5432
        %5751 = vmatmul.bf16.gmra.mxu0 %v3854
        %v5752 = vpop.f32.mrf.mxu0
        %v5753 = vadd.f32 %v4931, %v5752
        %v5754 = vpop.f32.mrf.mxu0
        %v5755 = vadd.f32 %v4933, %v5754
        %5756 = vdwg.mxu0
        %5757 = vmatpush.bf16.msra.mxu0 %v5492
        %5758 = vmatpush.bf16.msra.mxu0 %v5488
        %5759 = vmatpush.bf16.msra.mxu0 %v5484
        %5760 = vmatpush.bf16.msra.mxu0 %v5480
        %5761 = vmatpush.bf16.msra.mxu0 %v5476
        %5762 = vmatpush.bf16.msra.mxu0 %v5472
        %5763 = vmatpush.bf16.msra.mxu0 %v5468
        %5764 = vmatpush.bf16.msra.mxu0 %v5464
        %5765 = vmatmul.bf16.gmra.mxu0 %v3855
        %v5766 = vpop.f32.mrf.mxu0
        %v5767 = vadd.f32 %v5753, %v5766
        %v5768 = vpop.f32.mrf.mxu0
        %v5769 = vadd.f32 %v5755, %v5768
        %5770 = vdwg.mxu0
        %5771 = vmatpush.bf16.msra.mxu0 %v5524
        %5772 = vmatpush.bf16.msra.mxu0 %v5520
        %5773 = vmatpush.bf16.msra.mxu0 %v5516
        %5774 = vmatpush.bf16.msra.mxu0 %v5512
        %5775 = vmatpush.bf16.msra.mxu0 %v5508
        %5776 = vmatpush.bf16.msra.mxu0 %v5504
        %5777 = vmatpush.bf16.msra.mxu0 %v5500
        %5778 = vmatpush.bf16.msra.mxu0 %v5496
        %5779 = vmatmul.bf16.gmra.mxu0 %v3856
        %v5780 = vpop.f32.mrf.mxu0
        %v5781 = vadd.f32 %v5767, %v5780
        %v5782 = vpop.f32.mrf.mxu0
        %v5783 = vadd.f32 %v5769, %v5782
        %5784 = vdwg.mxu0
        %5785 = vmatpush.bf16.msra.mxu0 %v5556
        %5786 = vmatpush.bf16.msra.mxu0 %v5552
        %5787 = vmatpush.bf16.msra.mxu0 %v5548
        %5788 = vmatpush.bf16.msra.mxu0 %v5544
        %5789 = vmatpush.bf16.msra.mxu0 %v5540
        %5790 = vmatpush.bf16.msra.mxu0 %v5536
        %5791 = vmatpush.bf16.msra.mxu0 %v5532
        %5792 = vmatpush.bf16.msra.mxu0 %v5528
        %5793 = vmatmul.bf16.gmra.mxu0 %v3857
        %v5794 = vpop.f32.mrf.mxu0
        %v5795 = vadd.f32 %v5781, %v5794
        %v5796 = vpop.f32.mrf.mxu0
        %v5797 = vadd.f32 %v5783, %v5796
        %5798 = vdwg.mxu0
        %5799 = vmatpush.bf16.msra.mxu0 %v5461
        %5800 = vmatpush.bf16.msra.mxu0 %v5457
        %5801 = vmatpush.bf16.msra.mxu0 %v5453
        %5802 = vmatpush.bf16.msra.mxu0 %v5449
        %5803 = vmatpush.bf16.msra.mxu0 %v5445
        %5804 = vmatpush.bf16.msra.mxu0 %v5441
        %5805 = vmatpush.bf16.msra.mxu0 %v5437
        %5806 = vmatpush.bf16.msra.mxu0 %v5433
        %5807 = vmatmul.bf16.gmra.mxu0 %v3854
        %v5808 = vpop.f32.mrf.mxu0
        %v5809 = vadd.f32 %v4987, %v5808
        %v5810 = vpop.f32.mrf.mxu0
        %v5811 = vadd.f32 %v4989, %v5810
        %5812 = vdwg.mxu0
        %5813 = vmatpush.bf16.msra.mxu0 %v5493
        %5814 = vmatpush.bf16.msra.mxu0 %v5489
        %5815 = vmatpush.bf16.msra.mxu0 %v5485
        %5816 = vmatpush.bf16.msra.mxu0 %v5481
        %5817 = vmatpush.bf16.msra.mxu0 %v5477
        %5818 = vmatpush.bf16.msra.mxu0 %v5473
        %5819 = vmatpush.bf16.msra.mxu0 %v5469
        %5820 = vmatpush.bf16.msra.mxu0 %v5465
        %5821 = vmatmul.bf16.gmra.mxu0 %v3855
        %v5822 = vpop.f32.mrf.mxu0
        %v5823 = vadd.f32 %v5809, %v5822
        %v5824 = vpop.f32.mrf.mxu0
        %v5825 = vadd.f32 %v5811, %v5824
        %5826 = vdwg.mxu0
        %5827 = vmatpush.bf16.msra.mxu0 %v5525
        %5828 = vmatpush.bf16.msra.mxu0 %v5521
        %5829 = vmatpush.bf16.msra.mxu0 %v5517
        %5830 = vmatpush.bf16.msra.mxu0 %v5513
        %5831 = vmatpush.bf16.msra.mxu0 %v5509
        %5832 = vmatpush.bf16.msra.mxu0 %v5505
        %5833 = vmatpush.bf16.msra.mxu0 %v5501
        %5834 = vmatpush.bf16.msra.mxu0 %v5497
        %5835 = vmatmul.bf16.gmra.mxu0 %v3856
        %v5836 = vpop.f32.mrf.mxu0
        %v5837 = vadd.f32 %v5823, %v5836
        %v5838 = vpop.f32.mrf.mxu0
        %v5839 = vadd.f32 %v5825, %v5838
        %5840 = vdwg.mxu0
        %5841 = vmatpush.bf16.msra.mxu0 %v5557
        %5842 = vmatpush.bf16.msra.mxu0 %v5553
        %5843 = vmatpush.bf16.msra.mxu0 %v5549
        %5844 = vmatpush.bf16.msra.mxu0 %v5545
        %5845 = vmatpush.bf16.msra.mxu0 %v5541
        %5846 = vmatpush.bf16.msra.mxu0 %v5537
        %5847 = vmatpush.bf16.msra.mxu0 %v5533
        %5848 = vmatpush.bf16.msra.mxu0 %v5529
        %5849 = vmatmul.bf16.gmra.mxu0 %v3857
        %v5850 = vpop.f32.mrf.mxu0
        %v5851 = vadd.f32 %v5837, %v5850
        %v5852 = vpop.f32.mrf.mxu0
        %v5853 = vadd.f32 %v5839, %v5852
        %5854 = vdwg.mxu0
        %5855 = vmatpush.bf16.msra.mxu0 %v5462
        %5856 = vmatpush.bf16.msra.mxu0 %v5458
        %5857 = vmatpush.bf16.msra.mxu0 %v5454
        %5858 = vmatpush.bf16.msra.mxu0 %v5450
        %5859 = vmatpush.bf16.msra.mxu0 %v5446
        %5860 = vmatpush.bf16.msra.mxu0 %v5442
        %5861 = vmatpush.bf16.msra.mxu0 %v5438
        %5862 = vmatpush.bf16.msra.mxu0 %v5434
        %5863 = vmatmul.bf16.gmra.mxu0 %v3854
        %v5864 = vpop.f32.mrf.mxu0
        %v5865 = vadd.f32 %v5043, %v5864
        %v5866 = vpop.f32.mrf.mxu0
        %v5867 = vadd.f32 %v5045, %v5866
        %5868 = vdwg.mxu0
        %5869 = vmatpush.bf16.msra.mxu0 %v5494
        %5870 = vmatpush.bf16.msra.mxu0 %v5490
        %5871 = vmatpush.bf16.msra.mxu0 %v5486
        %5872 = vmatpush.bf16.msra.mxu0 %v5482
        %5873 = vmatpush.bf16.msra.mxu0 %v5478
        %5874 = vmatpush.bf16.msra.mxu0 %v5474
        %5875 = vmatpush.bf16.msra.mxu0 %v5470
        %5876 = vmatpush.bf16.msra.mxu0 %v5466
        %5877 = vmatmul.bf16.gmra.mxu0 %v3855
        %v5878 = vpop.f32.mrf.mxu0
        %v5879 = vadd.f32 %v5865, %v5878
        %v5880 = vpop.f32.mrf.mxu0
        %v5881 = vadd.f32 %v5867, %v5880
        %5882 = vdwg.mxu0
        %5883 = vmatpush.bf16.msra.mxu0 %v5526
        %5884 = vmatpush.bf16.msra.mxu0 %v5522
        %5885 = vmatpush.bf16.msra.mxu0 %v5518
        %5886 = vmatpush.bf16.msra.mxu0 %v5514
        %5887 = vmatpush.bf16.msra.mxu0 %v5510
        %5888 = vmatpush.bf16.msra.mxu0 %v5506
        %5889 = vmatpush.bf16.msra.mxu0 %v5502
        %5890 = vmatpush.bf16.msra.mxu0 %v5498
        %5891 = vmatmul.bf16.gmra.mxu0 %v3856
        %v5892 = vpop.f32.mrf.mxu0
        %v5893 = vadd.f32 %v5879, %v5892
        %v5894 = vpop.f32.mrf.mxu0
        %v5895 = vadd.f32 %v5881, %v5894
        %5896 = vdwg.mxu0
        %5897 = vmatpush.bf16.msra.mxu0 %v5558
        %5898 = vmatpush.bf16.msra.mxu0 %v5554
        %5899 = vmatpush.bf16.msra.mxu0 %v5550
        %5900 = vmatpush.bf16.msra.mxu0 %v5546
        %5901 = vmatpush.bf16.msra.mxu0 %v5542
        %5902 = vmatpush.bf16.msra.mxu0 %v5538
        %5903 = vmatpush.bf16.msra.mxu0 %v5534
        %5904 = vmatpush.bf16.msra.mxu0 %v5530
        %5905 = vmatmul.bf16.gmra.mxu0 %v3857
        %v5906 = vpop.f32.mrf.mxu0
        %v5907 = vadd.f32 %v5893, %v5906
        %v5908 = vpop.f32.mrf.mxu0
        %v5909 = vadd.f32 %v5895, %v5908
        %5910 = vdwg.mxu0
        %v5911 = vld [vmem:[#allocation2] sm:$0xfc]
        %v5912 = vld [vmem:[#allocation2 + $0x8] sm:$0xfc]
        %v5913 = vld [vmem:[#allocation2 + $0x10] sm:$0xfc]
        %v5914 = vld [vmem:[#allocation2 + $0x18] sm:$0xfc]
        %v5915 = vld [vmem:[#allocation2 + $0x40] sm:$0x3]
        %v5916 = vld [vmem:[#allocation2 + $0x48] sm:$0x3]
        %v5917 = vld [vmem:[#allocation2 + $0x50] sm:$0x3]
        %v5918 = vld [vmem:[#allocation2 + $0x58] sm:$0x3]
        %v5919 = vpack.c.bf16 %v3850, %v5911
        %v5920 = vpack.c.bf16 %v3851, %v5912
        %v5921 = vpack.c.bf16 %v3852, %v5913
        %v5922 = vpack.c.bf16 %v3853, %v5914
        %v5923 = vpack.c.bf16 %v5915, %v5915
        %v5924 = vpack.c.bf16 %v5916, %v5916
        %v5925 = vpack.c.bf16 %v5917, %v5917
        %v5926 = vpack.c.bf16 %v5918, %v5918
        %s5927 = scalar_lea.vmem [#allocation8], 2048
        %v5928 = vld [vmem:[%s5927] sm:$0xff]
        %v5929 = vld [vmem:[%s5927 + $0x8] sm:$0xff]
        %v5930 = vld [vmem:[%s5927 + $0x10] sm:$0xff]
        %v5931 = vld [vmem:[%s5927 + $0x18] sm:$0xff]
        %v5932 = vld [vmem:[%s5927 + $0x20] sm:$0xff]
        %v5933 = vld [vmem:[%s5927 + $0x28] sm:$0xff]
        %v5934 = vld [vmem:[%s5927 + $0x30] sm:$0xff]
        %v5935 = vld [vmem:[%s5927 + $0x38] sm:$0xff]
        %v5936 = vld [vmem:[%s5927 + $0x40] sm:$0xff]
        %v5937 = vld [vmem:[%s5927 + $0x48] sm:$0xff]
        %v5938 = vld [vmem:[%s5927 + $0x50] sm:$0xff]
        %v5939 = vld [vmem:[%s5927 + $0x58] sm:$0xff]
        %v5940 = vld [vmem:[%s5927 + $0x60] sm:$0xff]
        %v5941 = vld [vmem:[%s5927 + $0x68] sm:$0xff]
        %v5942 = vld [vmem:[%s5927 + $0x70] sm:$0xff]
        %v5943 = vld [vmem:[%s5927 + $0x78] sm:$0xff]
        %v5944 = vld [vmem:[%s5927 + $0x80] sm:$0xff]
        %v5945 = vld [vmem:[%s5927 + $0x88] sm:$0xff]
        %v5946 = vld [vmem:[%s5927 + $0x90] sm:$0xff]
        %v5947 = vld [vmem:[%s5927 + $0x98] sm:$0xff]
        %v5948 = vld [vmem:[%s5927 + $0xa0] sm:$0xff]
        %v5949 = vld [vmem:[%s5927 + $0xa8] sm:$0xff]
        %v5950 = vld [vmem:[%s5927 + $0xb0] sm:$0xff]
        %v5951 = vld [vmem:[%s5927 + $0xb8] sm:$0xff]
        %v5952 = vld [vmem:[%s5927 + $0xc0] sm:$0xff]
        %v5953 = vld [vmem:[%s5927 + $0xc8] sm:$0xff]
        %v5954 = vld [vmem:[%s5927 + $0xd0] sm:$0xff]
        %v5955 = vld [vmem:[%s5927 + $0xd8] sm:$0xff]
        %v5956 = vld [vmem:[%s5927 + $0xe0] sm:$0xff]
        %v5957 = vld [vmem:[%s5927 + $0xe8] sm:$0xff]
        %v5958 = vld [vmem:[%s5927 + $0xf0] sm:$0xff]
        %v5959 = vld [vmem:[%s5927 + $0xf8] sm:$0xff]
        %v5960 = vld [vmem:[%s5927 + $0x100] sm:$0xff]
        %v5961 = vld [vmem:[%s5927 + $0x108] sm:$0xff]
        %v5962 = vld [vmem:[%s5927 + $0x110] sm:$0xff]
        %v5963 = vld [vmem:[%s5927 + $0x118] sm:$0xff]
        %v5964 = vld [vmem:[%s5927 + $0x120] sm:$0xff]
        %v5965 = vld [vmem:[%s5927 + $0x128] sm:$0xff]
        %v5966 = vld [vmem:[%s5927 + $0x130] sm:$0xff]
        %v5967 = vld [vmem:[%s5927 + $0x138] sm:$0xff]
        %v5968 = vld [vmem:[%s5927 + $0x140] sm:$0xff]
        %v5969 = vld [vmem:[%s5927 + $0x148] sm:$0xff]
        %v5970 = vld [vmem:[%s5927 + $0x150] sm:$0xff]
        %v5971 = vld [vmem:[%s5927 + $0x158] sm:$0xff]
        %v5972 = vld [vmem:[%s5927 + $0x160] sm:$0xff]
        %v5973 = vld [vmem:[%s5927 + $0x168] sm:$0xff]
        %v5974 = vld [vmem:[%s5927 + $0x170] sm:$0xff]
        %v5975 = vld [vmem:[%s5927 + $0x178] sm:$0xff]
        %v5976 = vld [vmem:[%s5927 + $0x180] sm:$0xff]
        %v5977 = vld [vmem:[%s5927 + $0x188] sm:$0xff]
        %v5978 = vld [vmem:[%s5927 + $0x190] sm:$0xff]
        %v5979 = vld [vmem:[%s5927 + $0x198] sm:$0xff]
        %v5980 = vld [vmem:[%s5927 + $0x1a0] sm:$0xff]
        %v5981 = vld [vmem:[%s5927 + $0x1a8] sm:$0xff]
        %v5982 = vld [vmem:[%s5927 + $0x1b0] sm:$0xff]
        %v5983 = vld [vmem:[%s5927 + $0x1b8] sm:$0xff]
        %v5984 = vld [vmem:[%s5927 + $0x1c0] sm:$0xff]
        %v5985 = vld [vmem:[%s5927 + $0x1c8] sm:$0xff]
        %v5986 = vld [vmem:[%s5927 + $0x1d0] sm:$0xff]
        %v5987 = vld [vmem:[%s5927 + $0x1d8] sm:$0xff]
        %v5988 = vld [vmem:[%s5927 + $0x1e0] sm:$0xff]
        %v5989 = vld [vmem:[%s5927 + $0x1e8] sm:$0xff]
        %v5990 = vld [vmem:[%s5927 + $0x1f0] sm:$0xff]
        %v5991 = vld [vmem:[%s5927 + $0x1f8] sm:$0xff]
        %v5992 = vld [vmem:[%s5927 + $0x200] sm:$0xff]
        %v5993 = vld [vmem:[%s5927 + $0x208] sm:$0xff]
        %v5994 = vld [vmem:[%s5927 + $0x210] sm:$0xff]
        %v5995 = vld [vmem:[%s5927 + $0x218] sm:$0xff]
        %v5996 = vld [vmem:[%s5927 + $0x220] sm:$0xff]
        %v5997 = vld [vmem:[%s5927 + $0x228] sm:$0xff]
        %v5998 = vld [vmem:[%s5927 + $0x230] sm:$0xff]
        %v5999 = vld [vmem:[%s5927 + $0x238] sm:$0xff]
        %v6000 = vld [vmem:[%s5927 + $0x240] sm:$0xff]
        %v6001 = vld [vmem:[%s5927 + $0x248] sm:$0xff]
        %v6002 = vld [vmem:[%s5927 + $0x250] sm:$0xff]
        %v6003 = vld [vmem:[%s5927 + $0x258] sm:$0xff]
        %v6004 = vld [vmem:[%s5927 + $0x260] sm:$0xff]
        %v6005 = vld [vmem:[%s5927 + $0x268] sm:$0xff]
        %v6006 = vld [vmem:[%s5927 + $0x270] sm:$0xff]
        %v6007 = vld [vmem:[%s5927 + $0x278] sm:$0xff]
        %v6008 = vld [vmem:[%s5927 + $0x280] sm:$0xff]
        %v6009 = vld [vmem:[%s5927 + $0x288] sm:$0xff]
        %v6010 = vld [vmem:[%s5927 + $0x290] sm:$0xff]
        %v6011 = vld [vmem:[%s5927 + $0x298] sm:$0xff]
        %v6012 = vld [vmem:[%s5927 + $0x2a0] sm:$0xff]
        %v6013 = vld [vmem:[%s5927 + $0x2a8] sm:$0xff]
        %v6014 = vld [vmem:[%s5927 + $0x2b0] sm:$0xff]
        %v6015 = vld [vmem:[%s5927 + $0x2b8] sm:$0xff]
        %v6016 = vld [vmem:[%s5927 + $0x2c0] sm:$0xff]
        %v6017 = vld [vmem:[%s5927 + $0x2c8] sm:$0xff]
        %v6018 = vld [vmem:[%s5927 + $0x2d0] sm:$0xff]
        %v6019 = vld [vmem:[%s5927 + $0x2d8] sm:$0xff]
        %v6020 = vld [vmem:[%s5927 + $0x2e0] sm:$0xff]
        %v6021 = vld [vmem:[%s5927 + $0x2e8] sm:$0xff]
        %v6022 = vld [vmem:[%s5927 + $0x2f0] sm:$0xff]
        %v6023 = vld [vmem:[%s5927 + $0x2f8] sm:$0xff]
        %v6024 = vld [vmem:[%s5927 + $0x300] sm:$0xff]
        %v6025 = vld [vmem:[%s5927 + $0x308] sm:$0xff]
        %v6026 = vld [vmem:[%s5927 + $0x310] sm:$0xff]
        %v6027 = vld [vmem:[%s5927 + $0x318] sm:$0xff]
        %v6028 = vld [vmem:[%s5927 + $0x320] sm:$0xff]
        %v6029 = vld [vmem:[%s5927 + $0x328] sm:$0xff]
        %v6030 = vld [vmem:[%s5927 + $0x330] sm:$0xff]
        %v6031 = vld [vmem:[%s5927 + $0x338] sm:$0xff]
        %v6032 = vld [vmem:[%s5927 + $0x340] sm:$0xff]
        %v6033 = vld [vmem:[%s5927 + $0x348] sm:$0xff]
        %v6034 = vld [vmem:[%s5927 + $0x350] sm:$0xff]
        %v6035 = vld [vmem:[%s5927 + $0x358] sm:$0xff]
        %v6036 = vld [vmem:[%s5927 + $0x360] sm:$0xff]
        %v6037 = vld [vmem:[%s5927 + $0x368] sm:$0xff]
        %v6038 = vld [vmem:[%s5927 + $0x370] sm:$0xff]
        %v6039 = vld [vmem:[%s5927 + $0x378] sm:$0xff]
        %v6040 = vld [vmem:[%s5927 + $0x380] sm:$0xff]
        %v6041 = vld [vmem:[%s5927 + $0x388] sm:$0xff]
        %v6042 = vld [vmem:[%s5927 + $0x390] sm:$0xff]
        %v6043 = vld [vmem:[%s5927 + $0x398] sm:$0xff]
        %v6044 = vld [vmem:[%s5927 + $0x3a0] sm:$0xff]
        %v6045 = vld [vmem:[%s5927 + $0x3a8] sm:$0xff]
        %v6046 = vld [vmem:[%s5927 + $0x3b0] sm:$0xff]
        %v6047 = vld [vmem:[%s5927 + $0x3b8] sm:$0xff]
        %v6048 = vld [vmem:[%s5927 + $0x3c0] sm:$0xff]
        %v6049 = vld [vmem:[%s5927 + $0x3c8] sm:$0xff]
        %v6050 = vld [vmem:[%s5927 + $0x3d0] sm:$0xff]
        %v6051 = vld [vmem:[%s5927 + $0x3d8] sm:$0xff]
        %v6052 = vld [vmem:[%s5927 + $0x3e0] sm:$0xff]
        %v6053 = vld [vmem:[%s5927 + $0x3e8] sm:$0xff]
        %v6054 = vld [vmem:[%s5927 + $0x3f0] sm:$0xff]
        %v6055 = vld [vmem:[%s5927 + $0x3f8] sm:$0xff]
        %v6064 = vrot.slane %v5919, 1
        %v6065 = vrot.slane %v5923, 1
        %v6066 = vsel %vm2808, %v6064, %v6065
        %v6067 = vrot.slane %v5920, 1
        %v6068 = vrot.slane %v5924, 1
        %v6069 = vsel %vm2808, %v6067, %v6068
        %v6070 = vrot.slane %v5921, 1
        %v6071 = vrot.slane %v5925, 1
        %v6072 = vsel %vm2808, %v6070, %v6071
        %v6073 = vrot.slane %v5922, 1
        %v6074 = vrot.slane %v5926, 1
        %v6075 = vsel %vm2808, %v6073, %v6074
        %v6208 = vunpack.c.l.b16 %v5928
        %v6209 = vunpack.c.h.b16 %v5928
        %v6210 = vunpack.c.l.b16 %v5929
        %v6211 = vunpack.c.h.b16 %v5929
        %v6212 = vunpack.c.l.b16 %v5930
        %v6213 = vunpack.c.h.b16 %v5930
        %v6214 = vunpack.c.l.b16 %v5931
        %v6215 = vunpack.c.h.b16 %v5931
        %v6216 = vunpack.c.l.b16 %v5932
        %v6217 = vunpack.c.h.b16 %v5932
        %v6218 = vunpack.c.l.b16 %v5933
        %v6219 = vunpack.c.h.b16 %v5933
        %v6220 = vunpack.c.l.b16 %v5934
        %v6221 = vunpack.c.h.b16 %v5934
        %v6222 = vunpack.c.l.b16 %v5935
        %v6223 = vunpack.c.h.b16 %v5935
        %v6224 = vunpack.c.l.b16 %v5936
        %v6225 = vunpack.c.h.b16 %v5936
        %v6226 = vunpack.c.l.b16 %v5937
        %v6227 = vunpack.c.h.b16 %v5937
        %v6228 = vunpack.c.l.b16 %v5938
        %v6229 = vunpack.c.h.b16 %v5938
        %v6230 = vunpack.c.l.b16 %v5939
        %v6231 = vunpack.c.h.b16 %v5939
        %v6232 = vunpack.c.l.b16 %v5940
        %v6233 = vunpack.c.h.b16 %v5940
        %v6234 = vunpack.c.l.b16 %v5941
        %v6235 = vunpack.c.h.b16 %v5941
        %v6236 = vunpack.c.l.b16 %v5942
        %v6237 = vunpack.c.h.b16 %v5942
        %v6238 = vunpack.c.l.b16 %v5943
        %v6239 = vunpack.c.h.b16 %v5943
        %v6240 = vunpack.c.l.b16 %v5944
        %v6241 = vunpack.c.h.b16 %v5944
        %v6242 = vunpack.c.l.b16 %v5945
        %v6243 = vunpack.c.h.b16 %v5945
        %v6244 = vunpack.c.l.b16 %v5946
        %v6245 = vunpack.c.h.b16 %v5946
        %v6246 = vunpack.c.l.b16 %v5947
        %v6247 = vunpack.c.h.b16 %v5947
        %v6248 = vunpack.c.l.b16 %v5948
        %v6249 = vunpack.c.h.b16 %v5948
        %v6250 = vunpack.c.l.b16 %v5949
        %v6251 = vunpack.c.h.b16 %v5949
        %v6252 = vunpack.c.l.b16 %v5950
        %v6253 = vunpack.c.h.b16 %v5950
        %v6254 = vunpack.c.l.b16 %v5951
        %v6255 = vunpack.c.h.b16 %v5951
        %v6256 = vunpack.c.l.b16 %v5952
        %v6257 = vunpack.c.h.b16 %v5952
        %v6258 = vunpack.c.l.b16 %v5953
        %v6259 = vunpack.c.h.b16 %v5953
        %v6260 = vunpack.c.l.b16 %v5954
        %v6261 = vunpack.c.h.b16 %v5954
        %v6262 = vunpack.c.l.b16 %v5955
        %v6263 = vunpack.c.h.b16 %v5955
        %v6264 = vunpack.c.l.b16 %v5956
        %v6265 = vunpack.c.h.b16 %v5956
        %v6266 = vunpack.c.l.b16 %v5957
        %v6267 = vunpack.c.h.b16 %v5957
        %v6268 = vunpack.c.l.b16 %v5958
        %v6269 = vunpack.c.h.b16 %v5958
        %v6270 = vunpack.c.l.b16 %v5959
        %v6271 = vunpack.c.h.b16 %v5959
        %v6272 = vunpack.c.l.b16 %v5960
        %v6273 = vunpack.c.h.b16 %v5960
        %v6274 = vunpack.c.l.b16 %v5961
        %v6275 = vunpack.c.h.b16 %v5961
        %v6276 = vunpack.c.l.b16 %v5962
        %v6277 = vunpack.c.h.b16 %v5962
        %v6278 = vunpack.c.l.b16 %v5963
        %v6279 = vunpack.c.h.b16 %v5963
        %v6280 = vunpack.c.l.b16 %v5964
        %v6281 = vunpack.c.h.b16 %v5964
        %v6282 = vunpack.c.l.b16 %v5965
        %v6283 = vunpack.c.h.b16 %v5965
        %v6284 = vunpack.c.l.b16 %v5966
        %v6285 = vunpack.c.h.b16 %v5966
        %v6286 = vunpack.c.l.b16 %v5967
        %v6287 = vunpack.c.h.b16 %v5967
        %v6288 = vunpack.c.l.b16 %v5968
        %v6289 = vunpack.c.h.b16 %v5968
        %v6290 = vunpack.c.l.b16 %v5969
        %v6291 = vunpack.c.h.b16 %v5969
        %v6292 = vunpack.c.l.b16 %v5970
        %v6293 = vunpack.c.h.b16 %v5970
        %v6294 = vunpack.c.l.b16 %v5971
        %v6295 = vunpack.c.h.b16 %v5971
        %v6296 = vunpack.c.l.b16 %v5972
        %v6297 = vunpack.c.h.b16 %v5972
        %v6298 = vunpack.c.l.b16 %v5973
        %v6299 = vunpack.c.h.b16 %v5973
        %v6300 = vunpack.c.l.b16 %v5974
        %v6301 = vunpack.c.h.b16 %v5974
        %v6302 = vunpack.c.l.b16 %v5975
        %v6303 = vunpack.c.h.b16 %v5975
        %v6304 = vunpack.c.l.b16 %v5976
        %v6305 = vunpack.c.h.b16 %v5976
        %v6306 = vunpack.c.l.b16 %v5977
        %v6307 = vunpack.c.h.b16 %v5977
        %v6308 = vunpack.c.l.b16 %v5978
        %v6309 = vunpack.c.h.b16 %v5978
        %v6310 = vunpack.c.l.b16 %v5979
        %v6311 = vunpack.c.h.b16 %v5979
        %v6312 = vunpack.c.l.b16 %v5980
        %v6313 = vunpack.c.h.b16 %v5980
        %v6314 = vunpack.c.l.b16 %v5981
        %v6315 = vunpack.c.h.b16 %v5981
        %v6316 = vunpack.c.l.b16 %v5982
        %v6317 = vunpack.c.h.b16 %v5982
        %v6318 = vunpack.c.l.b16 %v5983
        %v6319 = vunpack.c.h.b16 %v5983
        %v6320 = vunpack.c.l.b16 %v5984
        %v6321 = vunpack.c.h.b16 %v5984
        %v6322 = vunpack.c.l.b16 %v5985
        %v6323 = vunpack.c.h.b16 %v5985
        %v6324 = vunpack.c.l.b16 %v5986
        %v6325 = vunpack.c.h.b16 %v5986
        %v6326 = vunpack.c.l.b16 %v5987
        %v6327 = vunpack.c.h.b16 %v5987
        %v6328 = vunpack.c.l.b16 %v5988
        %v6329 = vunpack.c.h.b16 %v5988
        %v6330 = vunpack.c.l.b16 %v5989
        %v6331 = vunpack.c.h.b16 %v5989
        %v6332 = vunpack.c.l.b16 %v5990
        %v6333 = vunpack.c.h.b16 %v5990
        %v6334 = vunpack.c.l.b16 %v5991
        %v6335 = vunpack.c.h.b16 %v5991
        %v6336 = vunpack.c.l.b16 %v5992
        %v6337 = vunpack.c.h.b16 %v5992
        %v6338 = vunpack.c.l.b16 %v5993
        %v6339 = vunpack.c.h.b16 %v5993
        %v6340 = vunpack.c.l.b16 %v5994
        %v6341 = vunpack.c.h.b16 %v5994
        %v6342 = vunpack.c.l.b16 %v5995
        %v6343 = vunpack.c.h.b16 %v5995
        %v6344 = vunpack.c.l.b16 %v5996
        %v6345 = vunpack.c.h.b16 %v5996
        %v6346 = vunpack.c.l.b16 %v5997
        %v6347 = vunpack.c.h.b16 %v5997
        %v6348 = vunpack.c.l.b16 %v5998
        %v6349 = vunpack.c.h.b16 %v5998
        %v6350 = vunpack.c.l.b16 %v5999
        %v6351 = vunpack.c.h.b16 %v5999
        %v6352 = vunpack.c.l.b16 %v6000
        %v6353 = vunpack.c.h.b16 %v6000
        %v6354 = vunpack.c.l.b16 %v6001
        %v6355 = vunpack.c.h.b16 %v6001
        %v6356 = vunpack.c.l.b16 %v6002
        %v6357 = vunpack.c.h.b16 %v6002
        %v6358 = vunpack.c.l.b16 %v6003
        %v6359 = vunpack.c.h.b16 %v6003
        %v6360 = vunpack.c.l.b16 %v6004
        %v6361 = vunpack.c.h.b16 %v6004
        %v6362 = vunpack.c.l.b16 %v6005
        %v6363 = vunpack.c.h.b16 %v6005
        %v6364 = vunpack.c.l.b16 %v6006
        %v6365 = vunpack.c.h.b16 %v6006
        %v6366 = vunpack.c.l.b16 %v6007
        %v6367 = vunpack.c.h.b16 %v6007
        %v6368 = vunpack.c.l.b16 %v6008
        %v6369 = vunpack.c.h.b16 %v6008
        %v6370 = vunpack.c.l.b16 %v6009
        %v6371 = vunpack.c.h.b16 %v6009
        %v6372 = vunpack.c.l.b16 %v6010
        %v6373 = vunpack.c.h.b16 %v6010
        %v6374 = vunpack.c.l.b16 %v6011
        %v6375 = vunpack.c.h.b16 %v6011
        %v6376 = vunpack.c.l.b16 %v6012
        %v6377 = vunpack.c.h.b16 %v6012
        %v6378 = vunpack.c.l.b16 %v6013
        %v6379 = vunpack.c.h.b16 %v6013
        %v6380 = vunpack.c.l.b16 %v6014
        %v6381 = vunpack.c.h.b16 %v6014
        %v6382 = vunpack.c.l.b16 %v6015
        %v6383 = vunpack.c.h.b16 %v6015
        %v6384 = vunpack.c.l.b16 %v6016
        %v6385 = vunpack.c.h.b16 %v6016
        %v6386 = vunpack.c.l.b16 %v6017
        %v6387 = vunpack.c.h.b16 %v6017
        %v6388 = vunpack.c.l.b16 %v6018
        %v6389 = vunpack.c.h.b16 %v6018
        %v6390 = vunpack.c.l.b16 %v6019
        %v6391 = vunpack.c.h.b16 %v6019
        %v6392 = vunpack.c.l.b16 %v6020
        %v6393 = vunpack.c.h.b16 %v6020
        %v6394 = vunpack.c.l.b16 %v6021
        %v6395 = vunpack.c.h.b16 %v6021
        %v6396 = vunpack.c.l.b16 %v6022
        %v6397 = vunpack.c.h.b16 %v6022
        %v6398 = vunpack.c.l.b16 %v6023
        %v6399 = vunpack.c.h.b16 %v6023
        %v6400 = vunpack.c.l.b16 %v6024
        %v6401 = vunpack.c.h.b16 %v6024
        %v6402 = vunpack.c.l.b16 %v6025
        %v6403 = vunpack.c.h.b16 %v6025
        %v6404 = vunpack.c.l.b16 %v6026
        %v6405 = vunpack.c.h.b16 %v6026
        %v6406 = vunpack.c.l.b16 %v6027
        %v6407 = vunpack.c.h.b16 %v6027
        %v6408 = vunpack.c.l.b16 %v6028
        %v6409 = vunpack.c.h.b16 %v6028
        %v6410 = vunpack.c.l.b16 %v6029
        %v6411 = vunpack.c.h.b16 %v6029
        %v6412 = vunpack.c.l.b16 %v6030
        %v6413 = vunpack.c.h.b16 %v6030
        %v6414 = vunpack.c.l.b16 %v6031
        %v6415 = vunpack.c.h.b16 %v6031
        %v6416 = vunpack.c.l.b16 %v6032
        %v6417 = vunpack.c.h.b16 %v6032
        %v6418 = vunpack.c.l.b16 %v6033
        %v6419 = vunpack.c.h.b16 %v6033
        %v6420 = vunpack.c.l.b16 %v6034
        %v6421 = vunpack.c.h.b16 %v6034
        %v6422 = vunpack.c.l.b16 %v6035
        %v6423 = vunpack.c.h.b16 %v6035
        %v6424 = vunpack.c.l.b16 %v6036
        %v6425 = vunpack.c.h.b16 %v6036
        %v6426 = vunpack.c.l.b16 %v6037
        %v6427 = vunpack.c.h.b16 %v6037
        %v6428 = vunpack.c.l.b16 %v6038
        %v6429 = vunpack.c.h.b16 %v6038
        %v6430 = vunpack.c.l.b16 %v6039
        %v6431 = vunpack.c.h.b16 %v6039
        %v6432 = vunpack.c.l.b16 %v6040
        %v6433 = vunpack.c.h.b16 %v6040
        %v6434 = vunpack.c.l.b16 %v6041
        %v6435 = vunpack.c.h.b16 %v6041
        %v6436 = vunpack.c.l.b16 %v6042
        %v6437 = vunpack.c.h.b16 %v6042
        %v6438 = vunpack.c.l.b16 %v6043
        %v6439 = vunpack.c.h.b16 %v6043
        %v6440 = vunpack.c.l.b16 %v6044
        %v6441 = vunpack.c.h.b16 %v6044
        %v6442 = vunpack.c.l.b16 %v6045
        %v6443 = vunpack.c.h.b16 %v6045
        %v6444 = vunpack.c.l.b16 %v6046
        %v6445 = vunpack.c.h.b16 %v6046
        %v6446 = vunpack.c.l.b16 %v6047
        %v6447 = vunpack.c.h.b16 %v6047
        %v6448 = vunpack.c.l.b16 %v6048
        %v6449 = vunpack.c.h.b16 %v6048
        %v6450 = vunpack.c.l.b16 %v6049
        %v6451 = vunpack.c.h.b16 %v6049
        %v6452 = vunpack.c.l.b16 %v6050
        %v6453 = vunpack.c.h.b16 %v6050
        %v6454 = vunpack.c.l.b16 %v6051
        %v6455 = vunpack.c.h.b16 %v6051
        %v6456 = vunpack.c.l.b16 %v6052
        %v6457 = vunpack.c.h.b16 %v6052
        %v6458 = vunpack.c.l.b16 %v6053
        %v6459 = vunpack.c.h.b16 %v6053
        %v6460 = vunpack.c.l.b16 %v6054
        %v6461 = vunpack.c.h.b16 %v6054
        %v6462 = vunpack.c.l.b16 %v6055
        %v6463 = vunpack.c.h.b16 %v6055
        %v6464 = vpack.c.b16 %v6212, %v6208
        %v6465 = vpack.c.b16 %v6213, %v6209
        %v6466 = vpack.c.b16 %v6214, %v6210
        %v6467 = vpack.c.b16 %v6215, %v6211
        %v6468 = vpack.c.b16 %v6220, %v6216
        %v6469 = vpack.c.b16 %v6221, %v6217
        %v6470 = vpack.c.b16 %v6222, %v6218
        %v6471 = vpack.c.b16 %v6223, %v6219
        %v6472 = vpack.c.b16 %v6228, %v6224
        %v6473 = vpack.c.b16 %v6229, %v6225
        %v6474 = vpack.c.b16 %v6230, %v6226
        %v6475 = vpack.c.b16 %v6231, %v6227
        %v6476 = vpack.c.b16 %v6236, %v6232
        %v6477 = vpack.c.b16 %v6237, %v6233
        %v6478 = vpack.c.b16 %v6238, %v6234
        %v6479 = vpack.c.b16 %v6239, %v6235
        %v6480 = vpack.c.b16 %v6244, %v6240
        %v6481 = vpack.c.b16 %v6245, %v6241
        %v6482 = vpack.c.b16 %v6246, %v6242
        %v6483 = vpack.c.b16 %v6247, %v6243
        %v6484 = vpack.c.b16 %v6252, %v6248
        %v6485 = vpack.c.b16 %v6253, %v6249
        %v6486 = vpack.c.b16 %v6254, %v6250
        %v6487 = vpack.c.b16 %v6255, %v6251
        %v6488 = vpack.c.b16 %v6260, %v6256
        %v6489 = vpack.c.b16 %v6261, %v6257
        %v6490 = vpack.c.b16 %v6262, %v6258
        %v6491 = vpack.c.b16 %v6263, %v6259
        %v6492 = vpack.c.b16 %v6268, %v6264
        %v6493 = vpack.c.b16 %v6269, %v6265
        %v6494 = vpack.c.b16 %v6270, %v6266
        %v6495 = vpack.c.b16 %v6271, %v6267
        %v6496 = vpack.c.b16 %v6276, %v6272
        %v6497 = vpack.c.b16 %v6277, %v6273
        %v6498 = vpack.c.b16 %v6278, %v6274
        %v6499 = vpack.c.b16 %v6279, %v6275
        %v6500 = vpack.c.b16 %v6284, %v6280
        %v6501 = vpack.c.b16 %v6285, %v6281
        %v6502 = vpack.c.b16 %v6286, %v6282
        %v6503 = vpack.c.b16 %v6287, %v6283
        %v6504 = vpack.c.b16 %v6292, %v6288
        %v6505 = vpack.c.b16 %v6293, %v6289
        %v6506 = vpack.c.b16 %v6294, %v6290
        %v6507 = vpack.c.b16 %v6295, %v6291
        %v6508 = vpack.c.b16 %v6300, %v6296
        %v6509 = vpack.c.b16 %v6301, %v6297
        %v6510 = vpack.c.b16 %v6302, %v6298
        %v6511 = vpack.c.b16 %v6303, %v6299
        %v6512 = vpack.c.b16 %v6308, %v6304
        %v6513 = vpack.c.b16 %v6309, %v6305
        %v6514 = vpack.c.b16 %v6310, %v6306
        %v6515 = vpack.c.b16 %v6311, %v6307
        %v6516 = vpack.c.b16 %v6316, %v6312
        %v6517 = vpack.c.b16 %v6317, %v6313
        %v6518 = vpack.c.b16 %v6318, %v6314
        %v6519 = vpack.c.b16 %v6319, %v6315
        %v6520 = vpack.c.b16 %v6324, %v6320
        %v6521 = vpack.c.b16 %v6325, %v6321
        %v6522 = vpack.c.b16 %v6326, %v6322
        %v6523 = vpack.c.b16 %v6327, %v6323
        %v6524 = vpack.c.b16 %v6332, %v6328
        %v6525 = vpack.c.b16 %v6333, %v6329
        %v6526 = vpack.c.b16 %v6334, %v6330
        %v6527 = vpack.c.b16 %v6335, %v6331
        %v6528 = vpack.c.b16 %v6340, %v6336
        %v6529 = vpack.c.b16 %v6341, %v6337
        %v6530 = vpack.c.b16 %v6342, %v6338
        %v6531 = vpack.c.b16 %v6343, %v6339
        %v6532 = vpack.c.b16 %v6348, %v6344
        %v6533 = vpack.c.b16 %v6349, %v6345
        %v6534 = vpack.c.b16 %v6350, %v6346
        %v6535 = vpack.c.b16 %v6351, %v6347
        %v6536 = vpack.c.b16 %v6356, %v6352
        %v6537 = vpack.c.b16 %v6357, %v6353
        %v6538 = vpack.c.b16 %v6358, %v6354
        %v6539 = vpack.c.b16 %v6359, %v6355
        %v6540 = vpack.c.b16 %v6364, %v6360
        %v6541 = vpack.c.b16 %v6365, %v6361
        %v6542 = vpack.c.b16 %v6366, %v6362
        %v6543 = vpack.c.b16 %v6367, %v6363
        %v6544 = vpack.c.b16 %v6372, %v6368
        %v6545 = vpack.c.b16 %v6373, %v6369
        %v6546 = vpack.c.b16 %v6374, %v6370
        %v6547 = vpack.c.b16 %v6375, %v6371
        %v6548 = vpack.c.b16 %v6380, %v6376
        %v6549 = vpack.c.b16 %v6381, %v6377
        %v6550 = vpack.c.b16 %v6382, %v6378
        %v6551 = vpack.c.b16 %v6383, %v6379
        %v6552 = vpack.c.b16 %v6388, %v6384
        %v6553 = vpack.c.b16 %v6389, %v6385
        %v6554 = vpack.c.b16 %v6390, %v6386
        %v6555 = vpack.c.b16 %v6391, %v6387
        %v6556 = vpack.c.b16 %v6396, %v6392
        %v6557 = vpack.c.b16 %v6397, %v6393
        %v6558 = vpack.c.b16 %v6398, %v6394
        %v6559 = vpack.c.b16 %v6399, %v6395
        %v6560 = vpack.c.b16 %v6404, %v6400
        %v6561 = vpack.c.b16 %v6405, %v6401
        %v6562 = vpack.c.b16 %v6406, %v6402
        %v6563 = vpack.c.b16 %v6407, %v6403
        %v6564 = vpack.c.b16 %v6412, %v6408
        %v6565 = vpack.c.b16 %v6413, %v6409
        %v6566 = vpack.c.b16 %v6414, %v6410
        %v6567 = vpack.c.b16 %v6415, %v6411
        %v6568 = vpack.c.b16 %v6420, %v6416
        %v6569 = vpack.c.b16 %v6421, %v6417
        %v6570 = vpack.c.b16 %v6422, %v6418
        %v6571 = vpack.c.b16 %v6423, %v6419
        %v6572 = vpack.c.b16 %v6428, %v6424
        %v6573 = vpack.c.b16 %v6429, %v6425
        %v6574 = vpack.c.b16 %v6430, %v6426
        %v6575 = vpack.c.b16 %v6431, %v6427
        %v6576 = vpack.c.b16 %v6436, %v6432
        %v6577 = vpack.c.b16 %v6437, %v6433
        %v6578 = vpack.c.b16 %v6438, %v6434
        %v6579 = vpack.c.b16 %v6439, %v6435
        %v6580 = vpack.c.b16 %v6444, %v6440
        %v6581 = vpack.c.b16 %v6445, %v6441
        %v6582 = vpack.c.b16 %v6446, %v6442
        %v6583 = vpack.c.b16 %v6447, %v6443
        %v6584 = vpack.c.b16 %v6452, %v6448
        %v6585 = vpack.c.b16 %v6453, %v6449
        %v6586 = vpack.c.b16 %v6454, %v6450
        %v6587 = vpack.c.b16 %v6455, %v6451
        %v6588 = vpack.c.b16 %v6460, %v6456
        %v6589 = vpack.c.b16 %v6461, %v6457
        %v6590 = vpack.c.b16 %v6462, %v6458
        %v6591 = vpack.c.b16 %v6463, %v6459
        %6720 = vmatpush.bf16.msra.mxu0 %v6492
        %6721 = vmatpush.bf16.msra.mxu0 %v6488
        %6722 = vmatpush.bf16.msra.mxu0 %v6484
        %6723 = vmatpush.bf16.msra.mxu0 %v6480
        %6724 = vmatpush.bf16.msra.mxu0 %v6476
        %6725 = vmatpush.bf16.msra.mxu0 %v6472
        %6726 = vmatpush.bf16.msra.mxu0 %v6468
        %6727 = vmatpush.bf16.msra.mxu0 %v6464
        %6728 = vmatmul.bf16.gmra.mxu0 %v6066
        %v6729 = vpop.f32.mrf.mxu0
        %v6730 = vadd.f32 0.0, %v6729
        %v6731 = vpop.f32.mrf.mxu0
        %v6732 = vadd.f32 0.0, %v6731
        %6733 = vdwg.mxu0
        %6734 = vmatpush.bf16.msra.mxu0 %v6524
        %6735 = vmatpush.bf16.msra.mxu0 %v6520
        %6736 = vmatpush.bf16.msra.mxu0 %v6516
        %6737 = vmatpush.bf16.msra.mxu0 %v6512
        %6738 = vmatpush.bf16.msra.mxu0 %v6508
        %6739 = vmatpush.bf16.msra.mxu0 %v6504
        %6740 = vmatpush.bf16.msra.mxu0 %v6500
        %6741 = vmatpush.bf16.msra.mxu0 %v6496
        %6742 = vmatmul.bf16.gmra.mxu0 %v6069
        %v6743 = vpop.f32.mrf.mxu0
        %v6744 = vadd.f32 %v6730, %v6743
        %v6745 = vpop.f32.mrf.mxu0
        %v6746 = vadd.f32 %v6732, %v6745
        %6747 = vdwg.mxu0
        %6748 = vmatpush.bf16.msra.mxu0 %v6556
        %6749 = vmatpush.bf16.msra.mxu0 %v6552
        %6750 = vmatpush.bf16.msra.mxu0 %v6548
        %6751 = vmatpush.bf16.msra.mxu0 %v6544
        %6752 = vmatpush.bf16.msra.mxu0 %v6540
        %6753 = vmatpush.bf16.msra.mxu0 %v6536
        %6754 = vmatpush.bf16.msra.mxu0 %v6532
        %6755 = vmatpush.bf16.msra.mxu0 %v6528
        %6756 = vmatmul.bf16.gmra.mxu0 %v6072
        %v6757 = vpop.f32.mrf.mxu0
        %v6758 = vadd.f32 %v6744, %v6757
        %v6759 = vpop.f32.mrf.mxu0
        %v6760 = vadd.f32 %v6746, %v6759
        %6761 = vdwg.mxu0
        %6762 = vmatpush.bf16.msra.mxu0 %v6588
        %6763 = vmatpush.bf16.msra.mxu0 %v6584
        %6764 = vmatpush.bf16.msra.mxu0 %v6580
        %6765 = vmatpush.bf16.msra.mxu0 %v6576
        %6766 = vmatpush.bf16.msra.mxu0 %v6572
        %6767 = vmatpush.bf16.msra.mxu0 %v6568
        %6768 = vmatpush.bf16.msra.mxu0 %v6564
        %6769 = vmatpush.bf16.msra.mxu0 %v6560
        %6770 = vmatmul.bf16.gmra.mxu0 %v6075
        %v6771 = vpop.f32.mrf.mxu0
        %v6772 = vadd.f32 %v6758, %v6771
        %v6773 = vpop.f32.mrf.mxu0
        %v6774 = vadd.f32 %v6760, %v6773
        %6775 = vdwg.mxu0
        %6776 = vmatpush.bf16.msra.mxu0 %v6493
        %6777 = vmatpush.bf16.msra.mxu0 %v6489
        %6778 = vmatpush.bf16.msra.mxu0 %v6485
        %6779 = vmatpush.bf16.msra.mxu0 %v6481
        %6780 = vmatpush.bf16.msra.mxu0 %v6477
        %6781 = vmatpush.bf16.msra.mxu0 %v6473
        %6782 = vmatpush.bf16.msra.mxu0 %v6469
        %6783 = vmatpush.bf16.msra.mxu0 %v6465
        %6784 = vmatmul.bf16.gmra.mxu0 %v6066
        %v6785 = vpop.f32.mrf.mxu0
        %v6786 = vadd.f32 0.0, %v6785
        %v6787 = vpop.f32.mrf.mxu0
        %v6788 = vadd.f32 0.0, %v6787
        %6789 = vdwg.mxu0
        %6790 = vmatpush.bf16.msra.mxu0 %v6525
        %6791 = vmatpush.bf16.msra.mxu0 %v6521
        %6792 = vmatpush.bf16.msra.mxu0 %v6517
        %6793 = vmatpush.bf16.msra.mxu0 %v6513
        %6794 = vmatpush.bf16.msra.mxu0 %v6509
        %6795 = vmatpush.bf16.msra.mxu0 %v6505
        %6796 = vmatpush.bf16.msra.mxu0 %v6501
        %6797 = vmatpush.bf16.msra.mxu0 %v6497
        %6798 = vmatmul.bf16.gmra.mxu0 %v6069
        %v6799 = vpop.f32.mrf.mxu0
        %v6800 = vadd.f32 %v6786, %v6799
        %v6801 = vpop.f32.mrf.mxu0
        %v6802 = vadd.f32 %v6788, %v6801
        %6803 = vdwg.mxu0
        %6804 = vmatpush.bf16.msra.mxu0 %v6557
        %6805 = vmatpush.bf16.msra.mxu0 %v6553
        %6806 = vmatpush.bf16.msra.mxu0 %v6549
        %6807 = vmatpush.bf16.msra.mxu0 %v6545
        %6808 = vmatpush.bf16.msra.mxu0 %v6541
        %6809 = vmatpush.bf16.msra.mxu0 %v6537
        %6810 = vmatpush.bf16.msra.mxu0 %v6533
        %6811 = vmatpush.bf16.msra.mxu0 %v6529
        %6812 = vmatmul.bf16.gmra.mxu0 %v6072
        %v6813 = vpop.f32.mrf.mxu0
        %v6814 = vadd.f32 %v6800, %v6813
        %v6815 = vpop.f32.mrf.mxu0
        %v6816 = vadd.f32 %v6802, %v6815
        %6817 = vdwg.mxu0
        %6818 = vmatpush.bf16.msra.mxu0 %v6589
        %6819 = vmatpush.bf16.msra.mxu0 %v6585
        %6820 = vmatpush.bf16.msra.mxu0 %v6581
        %6821 = vmatpush.bf16.msra.mxu0 %v6577
        %6822 = vmatpush.bf16.msra.mxu0 %v6573
        %6823 = vmatpush.bf16.msra.mxu0 %v6569
        %6824 = vmatpush.bf16.msra.mxu0 %v6565
        %6825 = vmatpush.bf16.msra.mxu0 %v6561
        %6826 = vmatmul.bf16.gmra.mxu0 %v6075
        %v6827 = vpop.f32.mrf.mxu0
        %v6828 = vadd.f32 %v6814, %v6827
        %v6829 = vpop.f32.mrf.mxu0
        %v6830 = vadd.f32 %v6816, %v6829
        %6831 = vdwg.mxu0
        %6832 = vmatpush.bf16.msra.mxu0 %v6494
        %6833 = vmatpush.bf16.msra.mxu0 %v6490
        %6834 = vmatpush.bf16.msra.mxu0 %v6486
        %6835 = vmatpush.bf16.msra.mxu0 %v6482
        %6836 = vmatpush.bf16.msra.mxu0 %v6478
        %6837 = vmatpush.bf16.msra.mxu0 %v6474
        %6838 = vmatpush.bf16.msra.mxu0 %v6470
        %6839 = vmatpush.bf16.msra.mxu0 %v6466
        %6840 = vmatmul.bf16.gmra.mxu0 %v6066
        %v6841 = vpop.f32.mrf.mxu0
        %v6842 = vadd.f32 0.0, %v6841
        %v6843 = vpop.f32.mrf.mxu0
        %v6844 = vadd.f32 0.0, %v6843
        %6845 = vdwg.mxu0
        %6846 = vmatpush.bf16.msra.mxu0 %v6526
        %6847 = vmatpush.bf16.msra.mxu0 %v6522
        %6848 = vmatpush.bf16.msra.mxu0 %v6518
        %6849 = vmatpush.bf16.msra.mxu0 %v6514
        %6850 = vmatpush.bf16.msra.mxu0 %v6510
        %6851 = vmatpush.bf16.msra.mxu0 %v6506
        %6852 = vmatpush.bf16.msra.mxu0 %v6502
        %6853 = vmatpush.bf16.msra.mxu0 %v6498
        %6854 = vmatmul.bf16.gmra.mxu0 %v6069
        %v6855 = vpop.f32.mrf.mxu0
        %v6856 = vadd.f32 %v6842, %v6855
        %v6857 = vpop.f32.mrf.mxu0
        %v6858 = vadd.f32 %v6844, %v6857
        %6859 = vdwg.mxu0
        %6860 = vmatpush.bf16.msra.mxu0 %v6558
        %6861 = vmatpush.bf16.msra.mxu0 %v6554
        %6862 = vmatpush.bf16.msra.mxu0 %v6550
        %6863 = vmatpush.bf16.msra.mxu0 %v6546
        %6864 = vmatpush.bf16.msra.mxu0 %v6542
        %6865 = vmatpush.bf16.msra.mxu0 %v6538
        %6866 = vmatpush.bf16.msra.mxu0 %v6534
        %6867 = vmatpush.bf16.msra.mxu0 %v6530
        %6868 = vmatmul.bf16.gmra.mxu0 %v6072
        %v6869 = vpop.f32.mrf.mxu0
        %v6870 = vadd.f32 %v6856, %v6869
        %v6871 = vpop.f32.mrf.mxu0
        %v6872 = vadd.f32 %v6858, %v6871
        %6873 = vdwg.mxu0
        %6874 = vmatpush.bf16.msra.mxu0 %v6590
        %6875 = vmatpush.bf16.msra.mxu0 %v6586
        %6876 = vmatpush.bf16.msra.mxu0 %v6582
        %6877 = vmatpush.bf16.msra.mxu0 %v6578
        %6878 = vmatpush.bf16.msra.mxu0 %v6574
        %6879 = vmatpush.bf16.msra.mxu0 %v6570
        %6880 = vmatpush.bf16.msra.mxu0 %v6566
        %6881 = vmatpush.bf16.msra.mxu0 %v6562
        %6882 = vmatmul.bf16.gmra.mxu0 %v6075
        %v6883 = vpop.f32.mrf.mxu0
        %v6884 = vadd.f32 %v6870, %v6883
        %v6885 = vpop.f32.mrf.mxu0
        %v6886 = vadd.f32 %v6872, %v6885
        %6887 = vdwg.mxu0
        %6888 = vmatpush.bf16.msra.mxu0 %v6495
        %6889 = vmatpush.bf16.msra.mxu0 %v6491
        %6890 = vmatpush.bf16.msra.mxu0 %v6487
        %6891 = vmatpush.bf16.msra.mxu0 %v6483
        %6892 = vmatpush.bf16.msra.mxu0 %v6479
        %6893 = vmatpush.bf16.msra.mxu0 %v6475
        %6894 = vmatpush.bf16.msra.mxu0 %v6471
        %6895 = vmatpush.bf16.msra.mxu0 %v6467
        %6896 = vmatmul.bf16.gmra.mxu0 %v6066
        %v6897 = vpop.f32.mrf.mxu0
        %v6898 = vadd.f32 0.0, %v6897
        %v6899 = vpop.f32.mrf.mxu0
        %v6900 = vadd.f32 0.0, %v6899
        %6901 = vdwg.mxu0
        %6902 = vmatpush.bf16.msra.mxu0 %v6527
        %6903 = vmatpush.bf16.msra.mxu0 %v6523
        %6904 = vmatpush.bf16.msra.mxu0 %v6519
        %6905 = vmatpush.bf16.msra.mxu0 %v6515
        %6906 = vmatpush.bf16.msra.mxu0 %v6511
        %6907 = vmatpush.bf16.msra.mxu0 %v6507
        %6908 = vmatpush.bf16.msra.mxu0 %v6503
        %6909 = vmatpush.bf16.msra.mxu0 %v6499
        %6910 = vmatmul.bf16.gmra.mxu0 %v6069
        %v6911 = vpop.f32.mrf.mxu0
        %v6912 = vadd.f32 %v6898, %v6911
        %v6913 = vpop.f32.mrf.mxu0
        %v6914 = vadd.f32 %v6900, %v6913
        %6915 = vdwg.mxu0
        %6916 = vmatpush.bf16.msra.mxu0 %v6559
        %6917 = vmatpush.bf16.msra.mxu0 %v6555
        %6918 = vmatpush.bf16.msra.mxu0 %v6551
        %6919 = vmatpush.bf16.msra.mxu0 %v6547
        %6920 = vmatpush.bf16.msra.mxu0 %v6543
        %6921 = vmatpush.bf16.msra.mxu0 %v6539
        %6922 = vmatpush.bf16.msra.mxu0 %v6535
        %6923 = vmatpush.bf16.msra.mxu0 %v6531
        %6924 = vmatmul.bf16.gmra.mxu0 %v6072
        %v6925 = vpop.f32.mrf.mxu0
        %v6926 = vadd.f32 %v6912, %v6925
        %v6927 = vpop.f32.mrf.mxu0
        %v6928 = vadd.f32 %v6914, %v6927
        %6929 = vdwg.mxu0
        %6930 = vmatpush.bf16.msra.mxu0 %v6591
        %6931 = vmatpush.bf16.msra.mxu0 %v6587
        %6932 = vmatpush.bf16.msra.mxu0 %v6583
        %6933 = vmatpush.bf16.msra.mxu0 %v6579
        %6934 = vmatpush.bf16.msra.mxu0 %v6575
        %6935 = vmatpush.bf16.msra.mxu0 %v6571
        %6936 = vmatpush.bf16.msra.mxu0 %v6567
        %6937 = vmatpush.bf16.msra.mxu0 %v6563
        %6938 = vmatmul.bf16.gmra.mxu0 %v6075
        %v6939 = vpop.f32.mrf.mxu0
        %v6940 = vadd.f32 %v6926, %v6939
        %v6941 = vpop.f32.mrf.mxu0
        %v6942 = vadd.f32 %v6928, %v6941
        %6943 = vdwg.mxu0
        %v6944 = vadd.f32 %v5739, %v6772
        %v6945 = vadd.f32 %v5795, %v6828
        %v6946 = vadd.f32 %v5851, %v6884
        %v6947 = vadd.f32 %v5907, %v6940
        %v6948 = vadd.f32 %v5741, %v6774
        %v6949 = vadd.f32 %v5797, %v6830
        %v6950 = vadd.f32 %v5853, %v6886
        %v6951 = vadd.f32 %v5909, %v6942
        %v6952 = vld [vmem:[#allocation9] sm:$0xf]
        %v6954 = vperm.slane %v6952, 0
        %v6955 = vperm.slane %v6952, 1
        %v6956 = vperm.slane %v6952, 2
        %v6957 = vperm.slane %v6952, 3
        %v6962 = vadd.f32 %v6944, %v6954
        %v6963 = vadd.f32 %v6945, %v6955
        %v6964 = vadd.f32 %v6946, %v6956
        %v6965 = vadd.f32 %v6947, %v6957
        %v6966 = vadd.f32 %v6948, %v6954
        %v6967 = vadd.f32 %v6949, %v6955
        %v6968 = vadd.f32 %v6950, %v6956
        %v6969 = vadd.f32 %v6951, %v6957
        %v6970 = vadd.f32 %v6962, %v6966
        %v6971 = vrot.slane %v6970, 4
        %v6972 = vadd.f32 %v6970, %v6971
        %v6973 = vrot.slane %v6972, 2
        %v6974 = vadd.f32 %v6972, %v6973
        %v6975 = vrot.slane %v6974, 1
        %v6976 = vadd.f32 %v6974, %v6975
        %v6977 = vadd.f32 %v6963, %v6967
        %v6978 = vrot.slane %v6977, 4
        %v6979 = vadd.f32 %v6977, %v6978
        %v6980 = vrot.slane %v6979, 2
        %v6981 = vadd.f32 %v6979, %v6980
        %v6982 = vrot.slane %v6981, 1
        %v6983 = vadd.f32 %v6981, %v6982
        %v6984 = vadd.f32 %v6964, %v6968
        %v6985 = vrot.slane %v6984, 4
        %v6986 = vadd.f32 %v6984, %v6985
        %v6987 = vrot.slane %v6986, 2
        %v6988 = vadd.f32 %v6986, %v6987
        %v6989 = vrot.slane %v6988, 1
        %v6990 = vadd.f32 %v6988, %v6989
        %v6991 = vadd.f32 %v6965, %v6969
        %v6992 = vrot.slane %v6991, 4
        %v6993 = vadd.f32 %v6991, %v6992
        %v6994 = vrot.slane %v6993, 2
        %v6995 = vadd.f32 %v6993, %v6994
        %v6996 = vrot.slane %v6995, 1
        %v6997 = vadd.f32 %v6995, %v6996
        %v6998 = vld [vmem:[#allocation11] sm:$0xff]
        %v6999 = vld [vmem:[#allocation11 + $0x8] sm:$0xff]
        %v7000 = vld [vmem:[#allocation11 + $0x10] sm:$0xff]
        %v7001 = vld [vmem:[#allocation11 + $0x18] sm:$0xff]
        %v7002 = vmul.f32 %v6998, %v6976
        %v7003 = vmul.f32 %v6999, %v6983
        %v7004 = vmul.f32 %v7000, %v6990
        %v7005 = vmul.f32 %v7001, %v6997
        %v7006 = vadd.f32 %v7002, %v7003
        %v7007 = vadd.f32 %v7006, %v7004
        %v7008 = vadd.f32 %v7007, %v7005
        %7009 = vadd.xlane.f32.xlu0 %v7008
        %v7010 = vpop.xlane.xlu0 %7009
        %v7011 = vld [vmem:[%s6] sm:$0xff]
        %v7012 = vadd.f32 %v7010, %v7011
        %v7013 = vmax.f32 %v7012, 0.0
        %v7014 = vld [vmem:[#allocation12] sm:$0xff]
        %v7015 = vld [vmem:[#allocation12 + $0x8] sm:$0xff]
        %v7016 = vld [vmem:[#allocation12 + $0x10] sm:$0xff]
        %v7017 = vld [vmem:[#allocation12 + $0x18] sm:$0xff]
        %7019 = vset.pattern.permute.xlu0 0
        %7020 = vperm.xlu0 %7019, %v7013
        %v7021 = vpop.permute.xlu0 %7020
        %v7023 = vmul.f32 %v7014, %v7021
        %v7024 = vmul.f32 %v7015, %v7021
        %v7025 = vmul.f32 %v7016, %v7021
        %v7026 = vmul.f32 %v7017, %v7021
        %v7027 = vrot.slane %v7023, 4
        %v7028 = vadd.f32 %v7023, %v7027
        %v7029 = vrot.slane %v7028, 2
        %v7030 = vadd.f32 %v7028, %v7029
        %v7031 = vrot.slane %v7030, 1
        %v7032 = vadd.f32 %v7030, %v7031
        %v7033 = vrot.slane %v7024, 4
        %v7034 = vadd.f32 %v7024, %v7033
        %v7035 = vrot.slane %v7034, 2
        %v7036 = vadd.f32 %v7034, %v7035
        %v7037 = vrot.slane %v7036, 1
        %v7038 = vadd.f32 %v7036, %v7037
        %v7039 = vrot.slane %v7025, 4
        %v7040 = vadd.f32 %v7025, %v7039
        %v7041 = vrot.slane %v7040, 2
        %v7042 = vadd.f32 %v7040, %v7041
        %v7043 = vrot.slane %v7042, 1
        %v7044 = vadd.f32 %v7042, %v7043
        %v7045 = vrot.slane %v7026, 4
        %v7046 = vadd.f32 %v7026, %v7045
        %v7047 = vrot.slane %v7046, 2
        %v7048 = vadd.f32 %v7046, %v7047
        %v7049 = vrot.slane %v7048, 1
        %v7050 = vadd.f32 %v7048, %v7049
        %v7051 = vld [vmem:[#allocation14] sm:$0xf]
        %v7053 = vperm.slane %v7051, 0
        %v7054 = vperm.slane %v7051, 1
        %v7055 = vperm.slane %v7051, 2
        %v7056 = vperm.slane %v7051, 3
        %v7061 = vadd.f32 %v7032, %v7053
        %v7062 = vadd.f32 %v7038, %v7054
        %v7063 = vadd.f32 %v7044, %v7055
        %v7064 = vadd.f32 %v7050, %v7056
        %v7065 = vxor.u32 %v7061, 2147483648
        %v7066 = vxor.u32 %v7062, 2147483648
        %v7067 = vxor.u32 %v7063, 2147483648
        %v7068 = vxor.u32 %v7064, 2147483648
        %v7069 = vmul.f32 %v7065, 1.442695
        %v7070 = vpow.pop %v7069
        %v7071 = vmul.f32 %v7066, 1.442695
        %v7072 = vpow.pop %v7071
        %v7073 = vmul.f32 %v7067, 1.442695
        %v7074 = vpow.pop %v7073
        %v7075 = vmul.f32 %v7068, 1.442695
        %v7076 = vpow.pop %v7075
        %v7077 = vadd.f32 %v7070, 1.0
        %v7078 = vadd.f32 %v7072, 1.0
        %v7079 = vadd.f32 %v7074, 1.0
        %v7080 = vadd.f32 %v7076, 1.0
        %v7081 = vrcp.pop %v7077
        %v7082 = vmul.f32 %v7077, %v7081
        %v7083 = vsub.f32 1.0, %v7082
        %v7084 = vmul.f32 %v7081, %v7083
        %v7085 = vadd.f32 %v7081, %v7084
        %vm7086 = vweird.f32 %v7077
        %vm7087 = vweird.f32 %v7081
        %vm7088 = vmor %vm7086, %vm7087
        %v7089 = vsel %vm7088, %v7081, %v7085
        %v7090 = vand.u32 2147483647, %v7077
        %vm7091 = vcmp.eq.f32.partialorder %v7090, 8.507059e+37
        %v7092 = vand.u32 %v7077, 2147483648
        %v7093 = vor.u32 1.1754944e-38, %v7092
        %v7094 = vsel %vm7091, %v7093, %v7089
        %v7095 = vmul.f32 1.0, %v7094
        %v7096 = vrcp.pop %v7078
        %v7097 = vmul.f32 %v7078, %v7096
        %v7098 = vsub.f32 1.0, %v7097
        %v7099 = vmul.f32 %v7096, %v7098
        %v7100 = vadd.f32 %v7096, %v7099
        %vm7101 = vweird.f32 %v7078
        %vm7102 = vweird.f32 %v7096
        %vm7103 = vmor %vm7101, %vm7102
        %v7104 = vsel %vm7103, %v7096, %v7100
        %v7105 = vand.u32 2147483647, %v7078
        %vm7106 = vcmp.eq.f32.partialorder %v7105, 8.507059e+37
        %v7107 = vand.u32 %v7078, 2147483648
        %v7108 = vor.u32 1.1754944e-38, %v7107
        %v7109 = vsel %vm7106, %v7108, %v7104
        %v7110 = vmul.f32 1.0, %v7109
        %v7111 = vrcp.pop %v7079
        %v7112 = vmul.f32 %v7079, %v7111
        %v7113 = vsub.f32 1.0, %v7112
        %v7114 = vmul.f32 %v7111, %v7113
        %v7115 = vadd.f32 %v7111, %v7114
        %vm7116 = vweird.f32 %v7079
        %vm7117 = vweird.f32 %v7111
        %vm7118 = vmor %vm7116, %vm7117
        %v7119 = vsel %vm7118, %v7111, %v7115
        %v7120 = vand.u32 2147483647, %v7079
        %vm7121 = vcmp.eq.f32.partialorder %v7120, 8.507059e+37
        %v7122 = vand.u32 %v7079, 2147483648
        %v7123 = vor.u32 1.1754944e-38, %v7122
        %v7124 = vsel %vm7121, %v7123, %v7119
        %v7125 = vmul.f32 1.0, %v7124
        %v7126 = vrcp.pop %v7080
        %v7127 = vmul.f32 %v7080, %v7126
        %v7128 = vsub.f32 1.0, %v7127
        %v7129 = vmul.f32 %v7126, %v7128
        %v7130 = vadd.f32 %v7126, %v7129
        %vm7131 = vweird.f32 %v7080
        %vm7132 = vweird.f32 %v7126
        %vm7133 = vmor %vm7131, %vm7132
        %v7134 = vsel %vm7133, %v7126, %v7130
        %v7135 = vand.u32 2147483647, %v7080
        %vm7136 = vcmp.eq.f32.partialorder %v7135, 8.507059e+37
        %v7137 = vand.u32 %v7080, 2147483648
        %v7138 = vor.u32 1.1754944e-38, %v7137
        %v7139 = vsel %vm7136, %v7138, %v7134
        %v7140 = vmul.f32 1.0, %v7139
        %v7141 = vld [vmem:[%s436] sm:$0xfc]
        %v7142 = vld [vmem:[%s436 + $0x8] sm:$0xfc]
        %v7143 = vld [vmem:[%s436 + $0x10] sm:$0xfc]
        %v7144 = vld [vmem:[%s436 + $0x18] sm:$0xfc]
        %v7145 = vld [vmem:[%s436 + $0x20] sm:$0xff]
        %v7146 = vld [vmem:[%s436 + $0x28] sm:$0xff]
        %v7147 = vld [vmem:[%s436 + $0x30] sm:$0xff]
        %v7148 = vld [vmem:[%s436 + $0x38] sm:$0xff]
        %v7149 = vld [vmem:[%s436 + $0x40] sm:$0x3]
        %v7150 = vld [vmem:[%s436 + $0x48] sm:$0x3]
        %v7151 = vld [vmem:[%s436 + $0x50] sm:$0x3]
        %v7152 = vld [vmem:[%s436 + $0x58] sm:$0x3]
        %v7153 = vperm.slane %v7095, 0
        %v7154 = vperm.slane %v7110, 0
        %v7155 = vperm.slane %v7125, 0
        %v7156 = vperm.slane %v7140, 0
        %v7157 = vmul.f32 %v6962, %v7153
        %v7158 = vmul.f32 %v6963, %v7154
        %v7159 = vmul.f32 %v6964, %v7155
        %v7160 = vmul.f32 %v6965, %v7156
        %v7161 = vmul.f32 %v6966, %v7153
        %v7162 = vmul.f32 %v6967, %v7154
        %v7163 = vmul.f32 %v6968, %v7155
        %v7164 = vmul.f32 %v6969, %v7156
        %vm7177 = vcmask 1045504
        %v7178 = vrot.slane %v7141, 2
        %v7179 = vrot.slane %v7145, 2
        %v7180 = vsel %vm7177, %v7178, %v7179
        %v7181 = vrot.slane %v7142, 2
        %v7182 = vrot.slane %v7146, 2
        %v7183 = vsel %vm7177, %v7181, %v7182
        %v7184 = vrot.slane %v7143, 2
        %v7185 = vrot.slane %v7147, 2
        %v7186 = vsel %vm7177, %v7184, %v7185
        %v7187 = vrot.slane %v7144, 2
        %v7188 = vrot.slane %v7148, 2
        %v7189 = vsel %vm7177, %v7187, %v7188
        %v7190 = vrot.slane %v7149, 2
        %v7191 = vsel %vm7177, %v7179, %v7190
        %v7192 = vrot.slane %v7150, 2
        %v7193 = vsel %vm7177, %v7182, %v7192
        %v7194 = vrot.slane %v7151, 2
        %v7195 = vsel %vm7177, %v7185, %v7194
        %v7196 = vrot.slane %v7152, 2
        %v7197 = vsel %vm7177, %v7188, %v7196
        %v7206 = vadd.f32 %v7157, %v7180
        %v7207 = vadd.f32 %v7158, %v7183
        %v7208 = vadd.f32 %v7159, %v7186
        %v7209 = vadd.f32 %v7160, %v7189
        %v7210 = vadd.f32 %v7161, %v7191
        %v7211 = vadd.f32 %v7162, %v7193
        %v7212 = vadd.f32 %v7163, %v7195
        %v7213 = vadd.f32 %v7164, %v7197
        %7214 = vst [vmem:[%s431] sm:$0xff] %v7206
        %7215 = vst [vmem:[%s431 + $0x8] sm:$0xff] %v7207
        %7216 = vst [vmem:[%s431 + $0x10] sm:$0xff] %v7208
        %7217 = vst [vmem:[%s431 + $0x18] sm:$0xff] %v7209
        %7218 = vst [vmem:[%s431 + $0x20] sm:$0xff] %v7210
        %7219 = vst [vmem:[%s431 + $0x28] sm:$0xff] %v7211
        %7220 = vst [vmem:[%s431 + $0x30] sm:$0xff] %v7212
        %7221 = vst [vmem:[%s431 + $0x38] sm:$0xff] %v7213
        %s7222 = sand.u32 %s229, 1
        %s7223 = scalar_lea.sflag [#allocation5], %s7222
        %s7224 = sand.u32 %s229, 1
        %s7225 = smul.addr %s7224, 64
        %s7226 = scalar_lea.vmem [#allocation15], %s7225
        // Predicated region
        $region85: #{tpu_custom_call.1} parent=55 // pred_check
          %p7227 = pneg %p239
        $region86: #{tpu_custom_call.1} parent=55 // pred_check_branch
          %7229 = sbr.rel (%p7227) target = $region88
        $region87: #{tpu_custom_call.1} parent=55 // pred_region
          %7231 = vsyncadd %s7223, 0
          %s7232 = smul.addr %s27, 8
          %s7233 = smul.addr %s7232, 8
          %s7234 = scalar_lea.hbm %s9, %s7233
          %s7235 = sshll.u32 %s7226, 4
          %s7236 = int_to_ptr.vmem [resolvable:$true] %s7235
          %s7237 = sshll.u32 %s7234, 4
          %s7238 = int_to_ptr.hbm [resolvable:$true] %s7237
          %7243 = dma.vmem_to_hbm [thread:$0]  %s7236, 1024, %s7238, %s7223, 512, 512, 32
        $region88: #{tpu_custom_call.1} parent=55 // pred_fallthru
          _
      $region56: #{tpu_custom_call.1} parent=5 // pred_fallthru
        _
      %p7244 = scmp.le.s32.totalorder 2, %s22
      // Predicated region
      $region89: #{tpu_custom_call.1} parent=5 // pred_check
        %p7245 = pneg %p7244
      $region90: #{tpu_custom_call.1} parent=5 // pred_check_branch
        %7247 = sbr.rel (%p7245) target = $region92
      $region91: #{tpu_custom_call.1} parent=5 // pred_region
        %s7248 = ssub.s32 %s22, 2
        // Predicated region
        $region93: #{tpu_custom_call.1} parent=91 // pred_check
          %p7249 = pneg %p245
        $region94: #{tpu_custom_call.1} parent=91 // pred_check_branch
          %7251 = sbr.rel (%p7249) target = $region96
        $region95: #{tpu_custom_call.1} parent=91 // pred_region
          %s7252 = sand.u32 %s230, 1
          %s7253 = scalar_lea.sflag [#allocation5], %s7252
          %s7254 = sand.u32 %s230, 1
          %s7255 = smul.addr %s7254, 64
          %s7256 = scalar_lea.vmem [#allocation15], %s7255
          %7258 = dma.done %s7253, 1024
        $region96: #{tpu_custom_call.1} parent=91 // pred_fallthru
          _
      $region92: #{tpu_custom_call.1} parent=5 // pred_fallthru
        _
    $region6: #{tpu_custom_call.1} parent=1 // loop_footer
      %s26 = sadd.s32 1, %s22
    $region7: #{tpu_custom_call.1} parent=1 // loop_footer_branch
      %21 = sbr.rel target = $region3
    $region8: #{tpu_custom_call.1} parent=1 // loop_exit
      _
    %7259 = vsyncpa [#allocation4], 1
    %s7260 = scalar_lea.sflag [#allocation4], 1
    %7261 = vsyncpa %s7260, 1
    %7262 = vsyncpa [#allocation7], 1
    %7263 = vsyncpa [#allocation10], 1
    %7264 = vsyncpa [#allocation13], 1
    %7265 = vsyncpa [#allocation5], 1
    %s7266 = scalar_lea.sflag [#allocation5], 1
    %7267 = vsyncpa %s7266, 1

</llo_original>
